<compile_context>
chip_gen: v6e
topology: v6e:2x2x1
jax: 0.10.0
libtpu: 0.0.40
codegen_flags: <defaults>
</compile_context>

<pallas_src>
import functools
import math

import jax
import jax.numpy as jnp
from jax.experimental import pallas as pl
from jax.experimental.pallas import tpu as pltpu

# ----------------------------- model config ---------------------------------
VOCAB = 512
HIDDEN = 128
N_HEADS = 4
HEAD_DIM = HIDDEN // N_HEADS
ROT = HEAD_DIM // 2           # rotary dims per head (first half of head_dim)
N_LAYERS = 2
FFN = 4 * HIDDEN
LN_EPS = 1e-5
ALPHA = (2.0 * N_LAYERS) ** 0.5


# ----------------------------- in-kernel helpers -----------------------------
def _ln(x, g, b):
    mean = jnp.mean(x, axis=-1, keepdims=True)
    c = x - mean
    var = jnp.mean(c * c, axis=-1, keepdims=True)
    return c * jax.lax.rsqrt(var + LN_EPS) * g + b


def _gelu(y):
    # ChatGLM gelu_impl (tanh approximation); kept in f32 (v5e has no bf16 VPU/EUP).
    return 0.5 * y * (1.0 + jnp.tanh(0.7978845608028654 * y * (1.0 + 0.044715 * y * y)))


def _rot_half_heads(x):
    """Per-head 'rotate half' pattern over the lane-concatenated (S, HIDDEN) tensor.

    For each head block of HEAD_DIM lanes: first ROT lanes -> [-x[ROT/2:ROT], x[0:ROT/2]];
    remaining lanes are pass-through (they get multiplied by sin == 0 anyway).
    """
    half = ROT // 2
    parts = []
    for h_idx in range(N_HEADS):
        base = h_idx * HEAD_DIM
        x1a = x[:, base:base + half]
        x1b = x[:, base + half:base + ROT]
        x2 = x[:, base + ROT:base + HEAD_DIM]
        parts += [-x1b, x1a, x2]
    return jnp.concatenate(parts, axis=-1)


# ----------------------------- fused layer kernel ----------------------------
def _glm_layer_kernel(h_ref, cos_ref, sin_ref,
                      ln1_g_ref, ln1_b_ref, qkv_w_ref, qkv_b_ref,
                      dense_w_ref, dense_b_ref,
                      ln2_g_ref, ln2_b_ref, h4h_w_ref, h4h_b_ref,
                      w4hh_ref, b4hh_ref,
                      o_ref, *, coeff):
    x = h_ref[...]                                                   # (S, H) f32

    # --- attention sub-block ---
    x_ln = _ln(x, ln1_g_ref[...], ln1_b_ref[...])                    # (S, H) f32
    qkv = jnp.dot(x_ln.astype(jnp.bfloat16), qkv_w_ref[...],
                  preferred_element_type=jnp.float32) + qkv_b_ref[...]   # (S, 3H)
    q = qkv[:, :HIDDEN]
    k = qkv[:, HIDDEN:2 * HIDDEN]
    v = qkv[:, 2 * HIDDEN:]

    # ChatGLM 2-D rotary on the first half of each head's dims (block positions are
    # zero -> identity, folded into cos==1 / sin==0 lanes of the precomputed tables).
    cos = cos_ref[...]
    sin = sin_ref[...]
    q = q * cos + _rot_half_heads(q) * sin
    k = k * cos + _rot_half_heads(k) * sin

    S = x.shape[0]
    qi = jax.lax.broadcasted_iota(jnp.int32, (S, S), 0)
    ki = jax.lax.broadcasted_iota(jnp.int32, (S, S), 1)
    causal = ki <= qi
    # TODO(synk): ChatGLM builds a prefix-bidirectional mask from the [gMASK]/bos
    # positions (get_masks); with synthetic token ids we use a plain causal mask.
    scale = 1.0 / (math.sqrt(HEAD_DIM) * coeff)

    ctx_parts = []
    for h_idx in range(N_HEADS):
        base = h_idx * HEAD_DIM
        qh = (q[:, base:base + HEAD_DIM] * scale).astype(jnp.bfloat16)
        kh = k[:, base:base + HEAD_DIM].astype(jnp.bfloat16)
        vh = v[:, base:base + HEAD_DIM].astype(jnp.bfloat16)
        s = jax.lax.dot_general(qh, kh, (((1,), (1,)), ((), ())),
                                preferred_element_type=jnp.float32)   # (S, S)
        s = s * coeff                                                 # GLM scaling coeff
        s = jnp.where(causal, s, -1e30)                               # mask after coeff
        s = s - jnp.max(s, axis=-1, keepdims=True)                    # f32 softmax
        p = jnp.exp(s)
        p = p * pl.reciprocal(jnp.sum(p, axis=-1, keepdims=True), approx=True)
        ctx_parts.append(jnp.dot(p.astype(jnp.bfloat16), vh,
                                 preferred_element_type=jnp.float32))  # (S, hd)
    ctx = jnp.concatenate(ctx_parts, axis=-1)                          # (S, H) lane-dense

    attn_out = jnp.dot(ctx.astype(jnp.bfloat16), dense_w_ref[...],
                       preferred_element_type=jnp.float32) + dense_b_ref[...]
    h1 = x_ln * ALPHA + attn_out                                       # GLM residual

    # --- MLP sub-block ---
    m_ln = _ln(h1, ln2_g_ref[...], ln2_b_ref[...])
    m = jnp.dot(m_ln.astype(jnp.bfloat16), h4h_w_ref[...],
                preferred_element_type=jnp.float32) + h4h_b_ref[...]
    m = _gelu(m)
    m2 = jnp.dot(m.astype(jnp.bfloat16), w4hh_ref[...],
                 preferred_element_type=jnp.float32) + b4hh_ref[...]
    o_ref[...] = m_ln * ALPHA + m2                                     # GLM residual


def glm_layer(h2d, cos_full, sin_full, lp, layer_id, B, S):
    coeff = float(layer_id + 1)
    kernel = functools.partial(_glm_layer_kernel, coeff=coeff)

    def full(arr):
        return pl.BlockSpec(arr.shape, lambda b: (0,) * arr.ndim)

    in_specs = [
        pl.BlockSpec((S, HIDDEN), lambda b: (b, 0)),   # activation slab of batch b
        full(cos_full), full(sin_full),
        full(lp['ln1_g']), full(lp['ln1_b']),
        full(lp['qkv_w']), full(lp['qkv_b']),
        full(lp['dense_w']), full(lp['dense_b']),
        full(lp['ln2_g']), full(lp['ln2_b']),
        full(lp['h4h_w']), full(lp['h4h_b']),
        full(lp['w4hh']), full(lp['b4hh']),
    ]
    return pl.pallas_call(
        kernel,
        out_shape=jax.ShapeDtypeStruct((B * S, HIDDEN), jnp.float32),
        grid=(B,),
        in_specs=in_specs,
        out_specs=pl.BlockSpec((S, HIDDEN), lambda b: (b, 0)),
        compiler_params=pltpu.CompilerParams(dimension_semantics=("parallel",)),
    )(h2d, cos_full, sin_full,
      lp['ln1_g'], lp['ln1_b'], lp['qkv_w'], lp['qkv_b'],
      lp['dense_w'], lp['dense_b'], lp['ln2_g'], lp['ln2_b'],
      lp['h4h_w'], lp['h4h_b'], lp['w4hh'], lp['b4hh'])


# ------------------- fused final-LN + lm_head (+ CE) kernel ------------------
def _head_kernel(*refs, compute_loss):
    if compute_loss:
        (h_ref, g_ref, b_ref, w_ref, labels_ref,
         hid_ref, logits_ref, loss_ref) = refs
    else:
        h_ref, g_ref, b_ref, w_ref, hid_ref, logits_ref = refs

    hid = _ln(h_ref[...], g_ref[...], b_ref[...])                    # (N, H)
    hid_ref[...] = hid
    logits = jnp.dot(hid.astype(jnp.bfloat16), w_ref[...],
                     preferred_element_type=jnp.float32)             # (N, V), no bias
    logits_ref[...] = logits

    if compute_loss:
        labels = labels_ref[...]                                     # (N, 1) int32
        m = jnp.max(logits, axis=-1, keepdims=True)
        lse = jnp.log(jnp.sum(jnp.exp(logits - m), axis=-1, keepdims=True)) + m
        col = jax.lax.broadcasted_iota(jnp.int32, logits.shape, 1)
        onehot = (col == labels).astype(jnp.float32)
        tgt = jnp.sum(onehot * logits, axis=-1, keepdims=True)
        valid = (labels != -100).astype(jnp.float32)                 # ignore_index=-100
        nll = (lse - tgt) * valid                                    # (N, 1)
        nll_sum = jnp.sum(nll, axis=0, keepdims=True)                # (1, 1)
        valid_sum = jnp.sum(valid, axis=0, keepdims=True)            # (1, 1)
        loss_ref[...] = nll_sum / valid_sum


def final_head(h2d, g, b, w_bf16, labels2d=None):
    N = h2d.shape[0]
    V = w_bf16.shape[1]
    compute_loss = labels2d is not None
    kernel = functools.partial(_head_kernel, compute_loss=compute_loss)

    def full(arr):
        return pl.BlockSpec(arr.shape, lambda i: (0,) * arr.ndim)

    in_specs = [full(h2d), full(g), full(b), full(w_bf16)]
    args = [h2d, g, b, w_bf16]
    out_shapes = [jax.ShapeDtypeStruct((N, HIDDEN), jnp.float32),
                  jax.ShapeDtypeStruct((N, V), jnp.float32)]
    out_specs = [pl.BlockSpec((N, HIDDEN), lambda i: (0, 0)),
                 pl.BlockSpec((N, V), lambda i: (0, 0))]
    if compute_loss:
        in_specs.append(full(labels2d))
        args.append(labels2d)
        out_shapes.append(jax.ShapeDtypeStruct((1, 1), jnp.float32))
        out_specs.append(pl.BlockSpec((1, 1), lambda i: (0, 0)))

    return pl.pallas_call(
        kernel,
        out_shape=tuple(out_shapes),
        grid=(1,),
        in_specs=in_specs,
        out_specs=tuple(out_specs),
        compiler_params=pltpu.CompilerParams(dimension_semantics=("arbitrary",)),
    )(*args)


# ----------------------------- JAX glue --------------------------------------
def rotary_tables(S):
    """Precomputed per-lane cos/sin tables, tiled over heads; pass-through lanes
    (second half of each head's dims, i.e. block positions == 0) get cos=1, sin=0."""
    # TODO(synk): ChatGLM derives (position_ids, block_position_ids) from the gMASK
    # location (get_position_ids); synthetic inputs use arange / zeros.
    positions = jnp.arange(S, dtype=jnp.float32)
    inv_freq = 1.0 / (10000.0 ** (jnp.arange(0, ROT, 2, dtype=jnp.float32) / ROT))
    freqs = positions[:, None] * inv_freq[None, :]                   # (S, ROT/2)
    emb = jnp.concatenate([freqs, freqs], axis=-1)                   # (S, ROT)
    cos_head = jnp.concatenate([jnp.cos(emb),
                                jnp.ones((S, HEAD_DIM - ROT), jnp.float32)], axis=-1)
    sin_head = jnp.concatenate([jnp.sin(emb),
                                jnp.zeros((S, HEAD_DIM - ROT), jnp.float32)], axis=-1)
    return jnp.tile(cos_head, (1, N_HEADS)), jnp.tile(sin_head, (1, N_HEADS))


def init_params(seed=0):
    key = jax.random.PRNGKey(seed)
    ks = iter(jax.random.split(key, 64))

    def nrm(shape, dtype=jnp.bfloat16):
        # matmul weights stored in bf16 (MXU operands); f32 accumulation in-kernel.
        return (0.02 * jax.random.normal(next(ks), shape, dtype=jnp.float32)).astype(dtype)

    params = {
        'word_emb': nrm((VOCAB, HIDDEN), jnp.float32),
        'lm_head_w': nrm((HIDDEN, VOCAB)),                 # bias-free lm_head
        'lnf_g': jnp.ones((1, HIDDEN), jnp.float32),
        'lnf_b': jnp.zeros((1, HIDDEN), jnp.float32),
        'layers': [],
    }
    for _ in range(N_LAYERS):
        params['layers'].append({
            'ln1_g': jnp.ones((1, HIDDEN), jnp.float32),
            'ln1_b': jnp.zeros((1, HIDDEN), jnp.float32),
            # qkv_w columns laid out [Q(all heads) | K | V], heads contiguous; a real
            # ChatGLM checkpoint would need a one-time column permutation at load time.
            'qkv_w': nrm((HIDDEN, 3 * HIDDEN)),
            'qkv_b': jnp.zeros((1, 3 * HIDDEN), jnp.float32),
            'dense_w': nrm((HIDDEN, HIDDEN)),
            'dense_b': jnp.zeros((1, HIDDEN), jnp.float32),
            'ln2_g': jnp.ones((1, HIDDEN), jnp.float32),
            'ln2_b': jnp.zeros((1, HIDDEN), jnp.float32),
            'h4h_w': nrm((HIDDEN, FFN)),
            'h4h_b': jnp.zeros((1, FFN), jnp.float32),
            'w4hh': nrm((FFN, HIDDEN)),
            'b4hh': jnp.zeros((1, HIDDEN), jnp.float32),
        })
    return params


def xiaohua_forward(params, input_ids, labels=None):
    """Mirrors XiaohuaModel.forward: returns (logits, hidden_states, loss)."""
    B, S = input_ids.shape
    cos_full, sin_full = rotary_tables(S)

    # TODO(synk): embedding gather stays as XLA glue (a DMA-gather kernel is overkill here).
    h = params['word_emb'][input_ids].reshape(B * S, HIDDEN)          # (B*S, H) f32

    for li in range(N_LAYERS):
        h = glm_layer(h, cos_full, sin_full, params['layers'][li], li, B, S)

    labels2d = None
    if labels is not None:
        # NOTE: XiaohuaModel uses `labels` only as a flag; targets are the next
        # input_ids (shift_labels = input_ids[:, 1:]); the last position of each
        # sequence is marked -100 so ignore_index drops it (== slicing logits[:, :-1]).
        shifted = jnp.concatenate(
            [input_ids[:, 1:], jnp.full((B, 1), -100, dtype=jnp.int32)], axis=1)
        labels2d = shifted.reshape(B * S, 1).astype(jnp.int32)

    outs = final_head(h, params['lnf_g'], params['lnf_b'], params['lm_head_w'], labels2d)
    if labels is not None:
        hidden2d, logits2d, loss_mat = outs
        loss = loss_mat[0, 0]
    else:
        hidden2d, logits2d = outs
        loss = None

    logits = logits2d.reshape(B, S, VOCAB)
    hidden_states = hidden2d.reshape(B, S, HIDDEN)
    return logits, hidden_states, loss


# ----------------------------- main ------------------------------------------
if __name__ == "__main__":
    B, S = 2, 8
    params = init_params(seed=0)
    key = jax.random.PRNGKey(0)
    input_ids = jax.random.randint(key, (B, S), 0, VOCAB, dtype=jnp.int32)
    labels = input_ids  # presence triggers loss computation (as in XiaohuaModel)

    fwd = jax.jit(xiaohua_forward)
    logits, hidden_states, loss = fwd(params, input_ids, labels)
    jax.block_until_ready((logits, hidden_states, loss))

    assert logits.shape == (B, S, VOCAB)
    assert hidden_states.shape == (B, S, HIDDEN)
    assert loss.shape == ()
    assert bool(jnp.isfinite(loss))
    print("KERNEL_OK")
</pallas_src>

<mosaic_0001>
module attributes {stable_mosaic.version = 11 : i64} {
  func.func @_head_kernel(%arg0: i32, %arg1: memref<16x128xf32, #tpu.memory_space<vmem>>, %arg2: memref<1x128xf32, #tpu.memory_space<vmem>>, %arg3: memref<1x128xf32, #tpu.memory_space<vmem>>, %arg4: memref<128x512xbf16, #tpu.memory_space<vmem>>, %arg5: memref<16x1xi32, #tpu.memory_space<vmem>>, %arg6: memref<16x128xf32, #tpu.memory_space<vmem>>, %arg7: memref<16x512xf32, #tpu.memory_space<vmem>>, %arg8: memref<1x1xf32, #tpu.memory_space<vmem>>) attributes {dimension_semantics = [#tpu.dimension_semantics<arbitrary>], iteration_bounds = array<i64: 1>, scalar_prefetch = 0 : i64, scratch_operands = 0 : i64, tpu.core_type = #tpu.core_type<tc>, window_params = [{pipeline_mode = #tpu.pipeline_mode<synchronous>, transform_indices = @transform_0, window_bounds = array<i64: 16, 128>}, {pipeline_mode = #tpu.pipeline_mode<synchronous>, transform_indices = @transform_1, window_bounds = array<i64: 1, 128>}, {pipeline_mode = #tpu.pipeline_mode<synchronous>, transform_indices = @transform_2, window_bounds = array<i64: 1, 128>}, {pipeline_mode = #tpu.pipeline_mode<synchronous>, transform_indices = @transform_3, window_bounds = array<i64: 128, 512>}, {pipeline_mode = #tpu.pipeline_mode<synchronous>, transform_indices = @transform_4, window_bounds = array<i64: 16, 1>}, {pipeline_mode = #tpu.pipeline_mode<synchronous>, transform_indices = @transform_5, window_bounds = array<i64: 16, 128>}, {pipeline_mode = #tpu.pipeline_mode<synchronous>, transform_indices = @transform_6, window_bounds = array<i64: 16, 512>}, {pipeline_mode = #tpu.pipeline_mode<synchronous>, transform_indices = @transform_7, window_bounds = array<i64: 1, 1>}]} {
    %c0 = arith.constant 0 : index
    %c0_0 = arith.constant 0 : index
    %0 = vector.load %arg1[%c0, %c0_0] : memref<16x128xf32, #tpu.memory_space<vmem>>, vector<16x128xf32>
    %c0_1 = arith.constant 0 : index
    %c0_2 = arith.constant 0 : index
    %1 = vector.load %arg2[%c0_1, %c0_2] : memref<1x128xf32, #tpu.memory_space<vmem>>, vector<1x128xf32>
    %c0_3 = arith.constant 0 : index
    %c0_4 = arith.constant 0 : index
    %2 = vector.load %arg3[%c0_3, %c0_4] : memref<1x128xf32, #tpu.memory_space<vmem>>, vector<1x128xf32>
    %cst = arith.constant dense<0.000000e+00> : vector<16xf32>
    %3 = vector.multi_reduction <add>, %0, %cst [1] : vector<16x128xf32> to vector<16xf32>
    %4 = vector.shape_cast %3 : vector<16xf32> to vector<16x1xf32>
    %cst_5 = arith.constant 1.280000e+02 : f32
    %5 = vector.broadcast %cst_5 : f32 to vector<16x1xf32>
    %6 = arith.divf %4, %5 : vector<16x1xf32>
    %7 = vector.broadcast %6 : vector<16x1xf32> to vector<16x128xf32>
    %8 = arith.subf %0, %7 : vector<16x128xf32>
    %9 = arith.mulf %8, %8 : vector<16x128xf32>
    %cst_6 = arith.constant dense<0.000000e+00> : vector<16xf32>
    %10 = vector.multi_reduction <add>, %9, %cst_6 [1] : vector<16x128xf32> to vector<16xf32>
    %11 = vector.shape_cast %10 : vector<16xf32> to vector<16x1xf32>
    %cst_7 = arith.constant 1.280000e+02 : f32
    %12 = vector.broadcast %cst_7 : f32 to vector<16x1xf32>
    %13 = arith.divf %11, %12 : vector<16x1xf32>
    %cst_8 = arith.constant 9.99999974E-6 : f32
    %14 = vector.broadcast %cst_8 : f32 to vector<16x1xf32>
    %15 = arith.addf %13, %14 : vector<16x1xf32>
    %16 = math.rsqrt %15 : vector<16x1xf32>
    %17 = vector.broadcast %16 : vector<16x1xf32> to vector<16x128xf32>
    %18 = arith.mulf %8, %17 : vector<16x128xf32>
    %19 = vector.broadcast %1 : vector<1x128xf32> to vector<16x128xf32>
    %20 = arith.mulf %18, %19 : vector<16x128xf32>
    %21 = vector.broadcast %2 : vector<1x128xf32> to vector<16x128xf32>
    %22 = arith.addf %20, %21 : vector<16x128xf32>
    %c0_9 = arith.constant 0 : index
    %c0_10 = arith.constant 0 : index
    %23 = vector.load %arg6[%c0_9, %c0_10] : memref<16x128xf32, #tpu.memory_space<vmem>>, vector<16x128xf32>
    tpu.vector_store %arg6[%c0_9, %c0_10], %22 {strides = array<i32>} : memref<16x128xf32, #tpu.memory_space<vmem>>, vector<16x128xf32>,
    %24 = arith.truncf %22 : vector<16x128xf32> to vector<16x128xbf16>
    %c0_11 = arith.constant 0 : index
    %c0_12 = arith.constant 0 : index
    %25 = vector.load %arg4[%c0_11, %c0_12] : memref<128x512xbf16, #tpu.memory_space<vmem>>, vector<128x512xbf16>
    %cst_13 = arith.constant dense<0.000000e+00> : vector<16x512xf32>
    %26 = tpu.matmul %24, %25, %cst_13 {dimension_numbers = #tpu.dot_dimension_numbers<[1], [0], [0], [1], [0, 0, 1, 1], [], []>} : vector<16x128xbf16>, vector<128x512xbf16>, vector<16x512xf32> -> vector<16x512xf32>
    %c0_14 = arith.constant 0 : index
    %c0_15 = arith.constant 0 : index
    %27 = vector.load %arg7[%c0_14, %c0_15] : memref<16x512xf32, #tpu.memory_space<vmem>>, vector<16x512xf32>
    tpu.vector_store %arg7[%c0_14, %c0_15], %26 {strides = array<i32>} : memref<16x512xf32, #tpu.memory_space<vmem>>, vector<16x512xf32>,
    %c0_16 = arith.constant 0 : index
    %c0_17 = arith.constant 0 : index
    %28 = vector.load %arg5[%c0_16, %c0_17] : memref<16x1xi32, #tpu.memory_space<vmem>>, vector<16x1xi32>
    %cst_18 = arith.constant dense<0xFF800000> : vector<16xf32>
    %29 = vector.multi_reduction <maximumf>, %26, %cst_18 [1] : vector<16x512xf32> to vector<16xf32>
    %30 = vector.shape_cast %29 : vector<16xf32> to vector<16x1xf32>
    %31 = vector.broadcast %30 : vector<16x1xf32> to vector<16x512xf32>
    %32 = arith.subf %26, %31 : vector<16x512xf32>
    %33 = math.exp %32 : vector<16x512xf32>
    %cst_19 = arith.constant dense<0.000000e+00> : vector<16xf32>
    %34 = vector.multi_reduction <add>, %33, %cst_19 [1] : vector<16x512xf32> to vector<16xf32>
    %35 = vector.shape_cast %34 : vector<16xf32> to vector<16x1xf32>
    %36 = math.log %35 : vector<16x1xf32>
    %37 = arith.addf %36, %30 : vector<16x1xf32>
    %38 = tpu.iota {dimensions = array<i32: 1>} : vector<16x512xi32>
    %39 = vector.broadcast %28 : vector<16x1xi32> to vector<16x512xi32>
    %40 = arith.cmpi eq, %38, %39 : vector<16x512xi32>
    %41 = arith.extui %40 : vector<16x512xi1> to vector<16x512xi32>
    %42 = arith.sitofp %41 : vector<16x512xi32> to vector<16x512xf32>
    %43 = arith.mulf %42, %26 : vector<16x512xf32>
    %cst_20 = arith.constant dense<0.000000e+00> : vector<16xf32>
    %44 = vector.multi_reduction <add>, %43, %cst_20 [1] : vector<16x512xf32> to vector<16xf32>
    %45 = vector.shape_cast %44 : vector<16xf32> to vector<16x1xf32>
    %c-100_i32 = arith.constant -100 : i32
    %46 = vector.broadcast %c-100_i32 : i32 to vector<16x1xi32>
    %47 = arith.cmpi ne, %28, %46 : vector<16x1xi32>
    %48 = arith.extui %47 : vector<16x1xi1> to vector<16x1xi32>
    %49 = arith.sitofp %48 : vector<16x1xi32> to vector<16x1xf32>
    %50 = arith.subf %37, %45 : vector<16x1xf32>
    %51 = arith.mulf %50, %49 : vector<16x1xf32>
    %cst_21 = arith.constant dense<0.000000e+00> : vector<1xf32>
    %52 = vector.multi_reduction <add>, %51, %cst_21 [0] : vector<16x1xf32> to vector<1xf32>
    %53 = vector.shape_cast %52 : vector<1xf32> to vector<1x1xf32>
    %cst_22 = arith.constant dense<0.000000e+00> : vector<1xf32>
    %54 = vector.multi_reduction <add>, %49, %cst_22 [0] : vector<16x1xf32> to vector<1xf32>
    %55 = vector.shape_cast %54 : vector<1xf32> to vector<1x1xf32>
    %56 = arith.divf %53, %55 : vector<1x1xf32>
    %c0_23 = arith.constant 0 : index
    %c0_24 = arith.constant 0 : index
    %57 = vector.load %arg8[%c0_23, %c0_24] : memref<1x1xf32, #tpu.memory_space<vmem>>, vector<1x1xf32>
    tpu.vector_store %arg8[%c0_23, %c0_24], %56 {strides = array<i32>} : memref<1x1xf32, #tpu.memory_space<vmem>>, vector<1x1xf32>,
    return
  }
  func.func @transform_0(%arg0: i32) -> (i32, i32) {
    %c0_i32 = arith.constant 0 : i32
    %c0_i32_0 = arith.constant 0 : i32
    %c0_i32_1 = arith.constant 0 : i32
    return %c0_i32, %c0_i32_0 : i32, i32
  }
  func.func @transform_1(%arg0: i32) -> (i32, i32) {
    %c0_i32 = arith.constant 0 : i32
    %c0_i32_0 = arith.constant 0 : i32
    %c0_i32_1 = arith.constant 0 : i32
    return %c0_i32, %c0_i32_0 : i32, i32
  }
  func.func @transform_2(%arg0: i32) -> (i32, i32) {
    %c0_i32 = arith.constant 0 : i32
    %c0_i32_0 = arith.constant 0 : i32
    %c0_i32_1 = arith.constant 0 : i32
    return %c0_i32, %c0_i32_0 : i32, i32
  }
  func.func @transform_3(%arg0: i32) -> (i32, i32) {
    %c0_i32 = arith.constant 0 : i32
    %c0_i32_0 = arith.constant 0 : i32
    %c0_i32_1 = arith.constant 0 : i32
    return %c0_i32, %c0_i32_0 : i32, i32
  }
  func.func @transform_4(%arg0: i32) -> (i32, i32) {
    %c0_i32 = arith.constant 0 : i32
    %c0_i32_0 = arith.constant 0 : i32
    %c0_i32_1 = arith.constant 0 : i32
    return %c0_i32, %c0_i32_0 : i32, i32
  }
  func.func @transform_5(%arg0: i32) -> (i32, i32) {
    %c0_i32 = arith.constant 0 : i32
    %c0_i32_0 = arith.constant 0 : i32
    %c0_i32_1 = arith.constant 0 : i32
    return %c0_i32, %c0_i32_0 : i32, i32
  }
  func.func @transform_6(%arg0: i32) -> (i32, i32) {
    %c0_i32 = arith.constant 0 : i32
    %c0_i32_0 = arith.constant 0 : i32
    %c0_i32_1 = arith.constant 0 : i32
    return %c0_i32, %c0_i32_0 : i32, i32
  }
  func.func @transform_7(%arg0: i32) -> (i32, i32) {
    %c0_i32 = arith.constant 0 : i32
    %c0_i32_0 = arith.constant 0 : i32
    %c0_i32_1 = arith.constant 0 : i32
    return %c0_i32, %c0_i32_0 : i32, i32
  }
}

module attributes {stable_mosaic.version = 11 : i64} {
  func.func @_glm_layer_kernel(%arg0: i32, %arg1: memref<8x128xf32, #tpu.memory_space<vmem>>, %arg2: memref<8x128xf32, #tpu.memory_space<vmem>>, %arg3: memref<8x128xf32, #tpu.memory_space<vmem>>, %arg4: memref<1x128xf32, #tpu.memory_space<vmem>>, %arg5: memref<1x128xf32, #tpu.memory_space<vmem>>, %arg6: memref<128x384xbf16, #tpu.memory_space<vmem>>, %arg7: memref<1x384xf32, #tpu.memory_space<vmem>>, %arg8: memref<128x128xbf16, #tpu.memory_space<vmem>>, %arg9: memref<1x128xf32, #tpu.memory_space<vmem>>, %arg10: memref<1x128xf32, #tpu.memory_space<vmem>>, %arg11: memref<1x128xf32, #tpu.memory_space<vmem>>, %arg12: memref<128x512xbf16, #tpu.memory_space<vmem>>, %arg13: memref<1x512xf32, #tpu.memory_space<vmem>>, %arg14: memref<512x128xbf16, #tpu.memory_space<vmem>>, %arg15: memref<1x128xf32, #tpu.memory_space<vmem>>, %arg16: memref<8x128xf32, #tpu.memory_space<vmem>>) attributes {dimension_semantics = [#tpu.dimension_semantics<parallel>], iteration_bounds = array<i64: 2>, scalar_prefetch = 0 : i64, scratch_operands = 0 : i64, tpu.core_type = #tpu.core_type<tc>, window_params = [{transform_indices = @transform_0, window_bounds = array<i64: 8, 128>}, {pipeline_mode = #tpu.pipeline_mode<synchronous>, transform_indices = @transform_1, window_bounds = array<i64: 8, 128>}, {pipeline_mode = #tpu.pipeline_mode<synchronous>, transform_indices = @transform_2, window_bounds = array<i64: 8, 128>}, {pipeline_mode = #tpu.pipeline_mode<synchronous>, transform_indices = @transform_3, window_bounds = array<i64: 1, 128>}, {pipeline_mode = #tpu.pipeline_mode<synchronous>, transform_indices = @transform_4, window_bounds = array<i64: 1, 128>}, {pipeline_mode = #tpu.pipeline_mode<synchronous>, transform_indices = @transform_5, window_bounds = array<i64: 128, 384>}, {pipeline_mode = #tpu.pipeline_mode<synchronous>, transform_indices = @transform_6, window_bounds = array<i64: 1, 384>}, {pipeline_mode = #tpu.pipeline_mode<synchronous>, transform_indices = @transform_7, window_bounds = array<i64: 128, 128>}, {pipeline_mode = #tpu.pipeline_mode<synchronous>, transform_indices = @transform_8, window_bounds = array<i64: 1, 128>}, {pipeline_mode = #tpu.pipeline_mode<synchronous>, transform_indices = @transform_9, window_bounds = array<i64: 1, 128>}, {pipeline_mode = #tpu.pipeline_mode<synchronous>, transform_indices = @transform_10, window_bounds = array<i64: 1, 128>}, {pipeline_mode = #tpu.pipeline_mode<synchronous>, transform_indices = @transform_11, window_bounds = array<i64: 128, 512>}, {pipeline_mode = #tpu.pipeline_mode<synchronous>, transform_indices = @transform_12, window_bounds = array<i64: 1, 512>}, {pipeline_mode = #tpu.pipeline_mode<synchronous>, transform_indices = @transform_13, window_bounds = array<i64: 512, 128>}, {pipeline_mode = #tpu.pipeline_mode<synchronous>, transform_indices = @transform_14, window_bounds = array<i64: 1, 128>}, {transform_indices = @transform_15, window_bounds = array<i64: 8, 128>}]} {
    %c0 = arith.constant 0 : index
    %c0_0 = arith.constant 0 : index
    %0 = vector.load %arg1[%c0, %c0_0] : memref<8x128xf32, #tpu.memory_space<vmem>>, vector<8x128xf32>
    %c0_1 = arith.constant 0 : index
    %c0_2 = arith.constant 0 : index
    %1 = vector.load %arg4[%c0_1, %c0_2] : memref<1x128xf32, #tpu.memory_space<vmem>>, vector<1x128xf32>
    %c0_3 = arith.constant 0 : index
    %c0_4 = arith.constant 0 : index
    %2 = vector.load %arg5[%c0_3, %c0_4] : memref<1x128xf32, #tpu.memory_space<vmem>>, vector<1x128xf32>
    %cst = arith.constant dense<0.000000e+00> : vector<8xf32>
    %3 = vector.multi_reduction <add>, %0, %cst [1] : vector<8x128xf32> to vector<8xf32>
    %4 = vector.shape_cast %3 : vector<8xf32> to vector<8x1xf32>
    %cst_5 = arith.constant 1.280000e+02 : f32
    %5 = vector.broadcast %cst_5 : f32 to vector<8x1xf32>
    %6 = arith.divf %4, %5 : vector<8x1xf32>
    %7 = vector.broadcast %6 : vector<8x1xf32> to vector<8x128xf32>
    %8 = arith.subf %0, %7 : vector<8x128xf32>
    %9 = arith.mulf %8, %8 : vector<8x128xf32>
    %cst_6 = arith.constant dense<0.000000e+00> : vector<8xf32>
    %10 = vector.multi_reduction <add>, %9, %cst_6 [1] : vector<8x128xf32> to vector<8xf32>
    %11 = vector.shape_cast %10 : vector<8xf32> to vector<8x1xf32>
    %cst_7 = arith.constant 1.280000e+02 : f32
    %12 = vector.broadcast %cst_7 : f32 to vector<8x1xf32>
    %13 = arith.divf %11, %12 : vector<8x1xf32>
    %cst_8 = arith.constant 9.99999974E-6 : f32
    %14 = vector.broadcast %cst_8 : f32 to vector<8x1xf32>
    %15 = arith.addf %13, %14 : vector<8x1xf32>
    %16 = math.rsqrt %15 : vector<8x1xf32>
    %17 = vector.broadcast %16 : vector<8x1xf32> to vector<8x128xf32>
    %18 = arith.mulf %8, %17 : vector<8x128xf32>
    %19 = vector.broadcast %1 : vector<1x128xf32> to vector<8x128xf32>
    %20 = arith.mulf %18, %19 : vector<8x128xf32>
    %21 = vector.broadcast %2 : vector<1x128xf32> to vector<8x128xf32>
    %22 = arith.addf %20, %21 : vector<8x128xf32>
    %23 = arith.truncf %22 : vector<8x128xf32> to vector<8x128xbf16>
    %c0_9 = arith.constant 0 : index
    %c0_10 = arith.constant 0 : index
    %24 = vector.load %arg6[%c0_9, %c0_10] : memref<128x384xbf16, #tpu.memory_space<vmem>>, vector<128x384xbf16>
    %cst_11 = arith.constant dense<0.000000e+00> : vector<8x384xf32>
    %25 = tpu.matmul %23, %24, %cst_11 {dimension_numbers = #tpu.dot_dimension_numbers<[1], [0], [0], [1], [0, 0, 1, 1], [], []>} : vector<8x128xbf16>, vector<128x384xbf16>, vector<8x384xf32> -> vector<8x384xf32>
    %c0_12 = arith.constant 0 : index
    %c0_13 = arith.constant 0 : index
    %26 = vector.load %arg7[%c0_12, %c0_13] : memref<1x384xf32, #tpu.memory_space<vmem>>, vector<1x384xf32>
    %27 = vector.broadcast %26 : vector<1x384xf32> to vector<8x384xf32>
    %28 = arith.addf %25, %27 : vector<8x384xf32>
    %29 = vector.extract_strided_slice %28 {offsets = [0, 0], sizes = [8, 128], strides = [1, 1]} : vector<8x384xf32> to vector<8x128xf32>
    %30 = vector.extract_strided_slice %28 {offsets = [0, 128], sizes = [8, 128], strides = [1, 1]} : vector<8x384xf32> to vector<8x128xf32>
    %31 = vector.extract_strided_slice %28 {offsets = [0, 256], sizes = [8, 128], strides = [1, 1]} : vector<8x384xf32> to vector<8x128xf32>
    %c0_14 = arith.constant 0 : index
    %c0_15 = arith.constant 0 : index
    %32 = vector.load %arg2[%c0_14, %c0_15] : memref<8x128xf32, #tpu.memory_space<vmem>>, vector<8x128xf32>
    %c0_16 = arith.constant 0 : index
    %c0_17 = arith.constant 0 : index
    %33 = vector.load %arg3[%c0_16, %c0_17] : memref<8x128xf32, #tpu.memory_space<vmem>>, vector<8x128xf32>
    %34 = arith.mulf %29, %32 : vector<8x128xf32>
    %35 = vector.extract_strided_slice %29 {offsets = [0, 0], sizes = [8, 8], strides = [1, 1]} : vector<8x128xf32> to vector<8x8xf32>
    %36 = vector.extract_strided_slice %29 {offsets = [0, 8], sizes = [8, 8], strides = [1, 1]} : vector<8x128xf32> to vector<8x8xf32>
    %37 = vector.extract_strided_slice %29 {offsets = [0, 16], sizes = [8, 16], strides = [1, 1]} : vector<8x128xf32> to vector<8x16xf32>
    %cst_18 = arith.constant 0.000000e+00 : f32
    %38 = vector.broadcast %cst_18 : f32 to vector<8x8xf32>
    %39 = arith.subf %38, %36 : vector<8x8xf32>
    %40 = vector.extract_strided_slice %29 {offsets = [0, 32], sizes = [8, 8], strides = [1, 1]} : vector<8x128xf32> to vector<8x8xf32>
    %41 = vector.extract_strided_slice %29 {offsets = [0, 40], sizes = [8, 8], strides = [1, 1]} : vector<8x128xf32> to vector<8x8xf32>
    %42 = vector.extract_strided_slice %29 {offsets = [0, 48], sizes = [8, 16], strides = [1, 1]} : vector<8x128xf32> to vector<8x16xf32>
    %cst_19 = arith.constant 0.000000e+00 : f32
    %43 = vector.broadcast %cst_19 : f32 to vector<8x8xf32>
    %44 = arith.subf %43, %41 : vector<8x8xf32>
    %45 = vector.extract_strided_slice %29 {offsets = [0, 64], sizes = [8, 8], strides = [1, 1]} : vector<8x128xf32> to vector<8x8xf32>
    %46 = vector.extract_strided_slice %29 {offsets = [0, 72], sizes = [8, 8], strides = [1, 1]} : vector<8x128xf32> to vector<8x8xf32>
    %47 = vector.extract_strided_slice %29 {offsets = [0, 80], sizes = [8, 16], strides = [1, 1]} : vector<8x128xf32> to vector<8x16xf32>
    %cst_20 = arith.constant 0.000000e+00 : f32
    %48 = vector.broadcast %cst_20 : f32 to vector<8x8xf32>
    %49 = arith.subf %48, %46 : vector<8x8xf32>
    %50 = vector.extract_strided_slice %29 {offsets = [0, 96], sizes = [8, 8], strides = [1, 1]} : vector<8x128xf32> to vector<8x8xf32>
    %51 = vector.extract_strided_slice %29 {offsets = [0, 104], sizes = [8, 8], strides = [1, 1]} : vector<8x128xf32> to vector<8x8xf32>
    %52 = vector.extract_strided_slice %29 {offsets = [0, 112], sizes = [8, 16], strides = [1, 1]} : vector<8x128xf32> to vector<8x16xf32>
    %cst_21 = arith.constant 0.000000e+00 : f32
    %53 = vector.broadcast %cst_21 : f32 to vector<8x8xf32>
    %54 = arith.subf %53, %51 : vector<8x8xf32>
    %55 = tpu.concatenate %39, %35, %37, %44, %40, %42, %49, %45, %47, %54, %50, %52 in 1 : vector<8x8xf32>, vector<8x8xf32>, vector<8x16xf32>, vector<8x8xf32>, vector<8x8xf32>, vector<8x16xf32>, vector<8x8xf32>, vector<8x8xf32>, vector<8x16xf32>, vector<8x8xf32>, vector<8x8xf32>, vector<8x16xf32> -> vector<8x128xf32>
    %56 = arith.mulf %55, %33 : vector<8x128xf32>
    %57 = arith.addf %34, %56 : vector<8x128xf32>
    %58 = arith.mulf %30, %32 : vector<8x128xf32>
    %59 = vector.extract_strided_slice %30 {offsets = [0, 0], sizes = [8, 8], strides = [1, 1]} : vector<8x128xf32> to vector<8x8xf32>
    %60 = vector.extract_strided_slice %30 {offsets = [0, 8], sizes = [8, 8], strides = [1, 1]} : vector<8x128xf32> to vector<8x8xf32>
    %61 = vector.extract_strided_slice %30 {offsets = [0, 16], sizes = [8, 16], strides = [1, 1]} : vector<8x128xf32> to vector<8x16xf32>
    %cst_22 = arith.constant 0.000000e+00 : f32
    %62 = vector.broadcast %cst_22 : f32 to vector<8x8xf32>
    %63 = arith.subf %62, %60 : vector<8x8xf32>
    %64 = vector.extract_strided_slice %30 {offsets = [0, 32], sizes = [8, 8], strides = [1, 1]} : vector<8x128xf32> to vector<8x8xf32>
    %65 = vector.extract_strided_slice %30 {offsets = [0, 40], sizes = [8, 8], strides = [1, 1]} : vector<8x128xf32> to vector<8x8xf32>
    %66 = vector.extract_strided_slice %30 {offsets = [0, 48], sizes = [8, 16], strides = [1, 1]} : vector<8x128xf32> to vector<8x16xf32>
    %cst_23 = arith.constant 0.000000e+00 : f32
    %67 = vector.broadcast %cst_23 : f32 to vector<8x8xf32>
    %68 = arith.subf %67, %65 : vector<8x8xf32>
    %69 = vector.extract_strided_slice %30 {offsets = [0, 64], sizes = [8, 8], strides = [1, 1]} : vector<8x128xf32> to vector<8x8xf32>
    %70 = vector.extract_strided_slice %30 {offsets = [0, 72], sizes = [8, 8], strides = [1, 1]} : vector<8x128xf32> to vector<8x8xf32>
    %71 = vector.extract_strided_slice %30 {offsets = [0, 80], sizes = [8, 16], strides = [1, 1]} : vector<8x128xf32> to vector<8x16xf32>
    %cst_24 = arith.constant 0.000000e+00 : f32
    %72 = vector.broadcast %cst_24 : f32 to vector<8x8xf32>
    %73 = arith.subf %72, %70 : vector<8x8xf32>
    %74 = vector.extract_strided_slice %30 {offsets = [0, 96], sizes = [8, 8], strides = [1, 1]} : vector<8x128xf32> to vector<8x8xf32>
    %75 = vector.extract_strided_slice %30 {offsets = [0, 104], sizes = [8, 8], strides = [1, 1]} : vector<8x128xf32> to vector<8x8xf32>
    %76 = vector.extract_strided_slice %30 {offsets = [0, 112], sizes = [8, 16], strides = [1, 1]} : vector<8x128xf32> to vector<8x16xf32>
    %cst_25 = arith.constant 0.000000e+00 : f32
    %77 = vector.broadcast %cst_25 : f32 to vector<8x8xf32>
    %78 = arith.subf %77, %75 : vector<8x8xf32>
    %79 = tpu.concatenate %63, %59, %61, %68, %64, %66, %73, %69, %71, %78, %74, %76 in 1 : vector<8x8xf32>, vector<8x8xf32>, vector<8x16xf32>, vector<8x8xf32>, vector<8x8xf32>, vector<8x16xf32>, vector<8x8xf32>, vector<8x8xf32>, vector<8x16xf32>, vector<8x8xf32>, vector<8x8xf32>, vector<8x16xf32> -> vector<8x128xf32>
    %80 = arith.mulf %79, %33 : vector<8x128xf32>
    %81 = arith.addf %58, %80 : vector<8x128xf32>
    %82 = tpu.iota {dimensions = array<i32: 0>} : vector<8x8xi32>
    %83 = tpu.iota {dimensions = array<i32: 1>} : vector<8x8xi32>
    %84 = arith.cmpi sle, %83, %82 : vector<8x8xi32>
    %85 = vector.extract_strided_slice %57 {offsets = [0, 0], sizes = [8, 32], strides = [1, 1]} : vector<8x128xf32> to vector<8x32xf32>
    %cst_26 = arith.constant 0.0883883461 : f32
    %86 = vector.broadcast %cst_26 : f32 to vector<8x32xf32>
    %87 = arith.mulf %85, %86 : vector<8x32xf32>
    %88 = arith.truncf %87 : vector<8x32xf32> to vector<8x32xbf16>
    %89 = vector.extract_strided_slice %81 {offsets = [0, 0], sizes = [8, 32], strides = [1, 1]} : vector<8x128xf32> to vector<8x32xf32>
    %90 = arith.truncf %89 : vector<8x32xf32> to vector<8x32xbf16>
    %91 = vector.extract_strided_slice %31 {offsets = [0, 0], sizes = [8, 32], strides = [1, 1]} : vector<8x128xf32> to vector<8x32xf32>
    %92 = arith.truncf %91 : vector<8x32xf32> to vector<8x32xbf16>
    %cst_27 = arith.constant dense<0.000000e+00> : vector<8x8xf32>
    %93 = tpu.matmul %88, %90, %cst_27 {dimension_numbers = #tpu.dot_dimension_numbers<[1], [1], [0], [0], [0, 0, 1, 0], [], []>} : vector<8x32xbf16>, vector<8x32xbf16>, vector<8x8xf32> -> vector<8x8xf32>
    %cst_28 = arith.constant 2.000000e+00 : f32
    %94 = vector.broadcast %cst_28 : f32 to vector<8x8xf32>
    %95 = arith.mulf %93, %94 : vector<8x8xf32>
    %cst_29 = arith.constant -1.000000e+30 : f32
    %96 = vector.broadcast %cst_29 : f32 to vector<8x8xf32>
    %97 = arith.select %84, %95, %96 : vector<8x8xi1>, vector<8x8xf32>
    %cst_30 = arith.constant dense<0xFF800000> : vector<8xf32>
    %98 = vector.multi_reduction <maximumf>, %97, %cst_30 [1] : vector<8x8xf32> to vector<8xf32>
    %99 = vector.shape_cast %98 : vector<8xf32> to vector<8x1xf32>
    %100 = vector.broadcast %99 : vector<8x1xf32> to vector<8x8xf32>
    %101 = arith.subf %97, %100 : vector<8x8xf32>
    %102 = math.exp %101 : vector<8x8xf32>
    %cst_31 = arith.constant dense<0.000000e+00> : vector<8xf32>
    %103 = vector.multi_reduction <add>, %102, %cst_31 [1] : vector<8x8xf32> to vector<8xf32>
    %104 = vector.shape_cast %103 : vector<8xf32> to vector<8x1xf32>
    %105 = tpu.reciprocal %104 {approx = true} : vector<8x1xf32> -> vector<8x1xf32>
    %106 = vector.broadcast %105 : vector<8x1xf32> to vector<8x8xf32>
    %107 = arith.mulf %102, %106 : vector<8x8xf32>
    %108 = arith.truncf %107 : vector<8x8xf32> to vector<8x8xbf16>
    %cst_32 = arith.constant dense<0.000000e+00> : vector<8x32xf32>
    %109 = tpu.matmul %108, %92, %cst_32 {dimension_numbers = #tpu.dot_dimension_numbers<[1], [0], [0], [1], [0, 0, 1, 1], [], []>} : vector<8x8xbf16>, vector<8x32xbf16>, vector<8x32xf32> -> vector<8x32xf32>
    %110 = vector.extract_strided_slice %57 {offsets = [0, 32], sizes = [8, 32], strides = [1, 1]} : vector<8x128xf32> to vector<8x32xf32>
    %cst_33 = arith.constant 0.0883883461 : f32
    %111 = vector.broadcast %cst_33 : f32 to vector<8x32xf32>
    %112 = arith.mulf %110, %111 : vector<8x32xf32>
    %113 = arith.truncf %112 : vector<8x32xf32> to vector<8x32xbf16>
    %114 = vector.extract_strided_slice %81 {offsets = [0, 32], sizes = [8, 32], strides = [1, 1]} : vector<8x128xf32> to vector<8x32xf32>
    %115 = arith.truncf %114 : vector<8x32xf32> to vector<8x32xbf16>
    %116 = vector.extract_strided_slice %31 {offsets = [0, 32], sizes = [8, 32], strides = [1, 1]} : vector<8x128xf32> to vector<8x32xf32>
    %117 = arith.truncf %116 : vector<8x32xf32> to vector<8x32xbf16>
    %cst_34 = arith.constant dense<0.000000e+00> : vector<8x8xf32>
    %118 = tpu.matmul %113, %115, %cst_34 {dimension_numbers = #tpu.dot_dimension_numbers<[1], [1], [0], [0], [0, 0, 1, 0], [], []>} : vector<8x32xbf16>, vector<8x32xbf16>, vector<8x8xf32> -> vector<8x8xf32>
    %cst_35 = arith.constant 2.000000e+00 : f32
    %119 = vector.broadcast %cst_35 : f32 to vector<8x8xf32>
    %120 = arith.mulf %118, %119 : vector<8x8xf32>
    %cst_36 = arith.constant -1.000000e+30 : f32
    %121 = vector.broadcast %cst_36 : f32 to vector<8x8xf32>
    %122 = arith.select %84, %120, %121 : vector<8x8xi1>, vector<8x8xf32>
    %cst_37 = arith.constant dense<0xFF800000> : vector<8xf32>
    %123 = vector.multi_reduction <maximumf>, %122, %cst_37 [1] : vector<8x8xf32> to vector<8xf32>
    %124 = vector.shape_cast %123 : vector<8xf32> to vector<8x1xf32>
    %125 = vector.broadcast %124 : vector<8x1xf32> to vector<8x8xf32>
    %126 = arith.subf %122, %125 : vector<8x8xf32>
    %127 = math.exp %126 : vector<8x8xf32>
    %cst_38 = arith.constant dense<0.000000e+00> : vector<8xf32>
    %128 = vector.multi_reduction <add>, %127, %cst_38 [1] : vector<8x8xf32> to vector<8xf32>
    %129 = vector.shape_cast %128 : vector<8xf32> to vector<8x1xf32>
    %130 = tpu.reciprocal %129 {approx = true} : vector<8x1xf32> -> vector<8x1xf32>
    %131 = vector.broadcast %130 : vector<8x1xf32> to vector<8x8xf32>
    %132 = arith.mulf %127, %131 : vector<8x8xf32>
    %133 = arith.truncf %132 : vector<8x8xf32> to vector<8x8xbf16>
    %cst_39 = arith.constant dense<0.000000e+00> : vector<8x32xf32>
    %134 = tpu.matmul %133, %117, %cst_39 {dimension_numbers = #tpu.dot_dimension_numbers<[1], [0], [0], [1], [0, 0, 1, 1], [], []>} : vector<8x8xbf16>, vector<8x32xbf16>, vector<8x32xf32> -> vector<8x32xf32>
    %135 = vector.extract_strided_slice %57 {offsets = [0, 64], sizes = [8, 32], strides = [1, 1]} : vector<8x128xf32> to vector<8x32xf32>
    %cst_40 = arith.constant 0.0883883461 : f32
    %136 = vector.broadcast %cst_40 : f32 to vector<8x32xf32>
    %137 = arith.mulf %135, %136 : vector<8x32xf32>
    %138 = arith.truncf %137 : vector<8x32xf32> to vector<8x32xbf16>
    %139 = vector.extract_strided_slice %81 {offsets = [0, 64], sizes = [8, 32], strides = [1, 1]} : vector<8x128xf32> to vector<8x32xf32>
    %140 = arith.truncf %139 : vector<8x32xf32> to vector<8x32xbf16>
    %141 = vector.extract_strided_slice %31 {offsets = [0, 64], sizes = [8, 32], strides = [1, 1]} : vector<8x128xf32> to vector<8x32xf32>
    %142 = arith.truncf %141 : vector<8x32xf32> to vector<8x32xbf16>
    %cst_41 = arith.constant dense<0.000000e+00> : vector<8x8xf32>
    %143 = tpu.matmul %138, %140, %cst_41 {dimension_numbers = #tpu.dot_dimension_numbers<[1], [1], [0], [0], [0, 0, 1, 0], [], []>} : vector<8x32xbf16>, vector<8x32xbf16>, vector<8x8xf32> -> vector<8x8xf32>
    %cst_42 = arith.constant 2.000000e+00 : f32
    %144 = vector.broadcast %cst_42 : f32 to vector<8x8xf32>
    %145 = arith.mulf %143, %144 : vector<8x8xf32>
    %cst_43 = arith.constant -1.000000e+30 : f32
    %146 = vector.broadcast %cst_43 : f32 to vector<8x8xf32>
    %147 = arith.select %84, %145, %146 : vector<8x8xi1>, vector<8x8xf32>
    %cst_44 = arith.constant dense<0xFF800000> : vector<8xf32>
    %148 = vector.multi_reduction <maximumf>, %147, %cst_44 [1] : vector<8x8xf32> to vector<8xf32>
    %149 = vector.shape_cast %148 : vector<8xf32> to vector<8x1xf32>
    %150 = vector.broadcast %149 : vector<8x1xf32> to vector<8x8xf32>
    %151 = arith.subf %147, %150 : vector<8x8xf32>
    %152 = math.exp %151 : vector<8x8xf32>
    %cst_45 = arith.constant dense<0.000000e+00> : vector<8xf32>
    %153 = vector.multi_reduction <add>, %152, %cst_45 [1] : vector<8x8xf32> to vector<8xf32>
    %154 = vector.shape_cast %153 : vector<8xf32> to vector<8x1xf32>
    %155 = tpu.reciprocal %154 {approx = true} : vector<8x1xf32> -> vector<8x1xf32>
    %156 = vector.broadcast %155 : vector<8x1xf32> to vector<8x8xf32>
    %157 = arith.mulf %152, %156 : vector<8x8xf32>
    %158 = arith.truncf %157 : vector<8x8xf32> to vector<8x8xbf16>
    %cst_46 = arith.constant dense<0.000000e+00> : vector<8x32xf32>
    %159 = tpu.matmul %158, %142, %cst_46 {dimension_numbers = #tpu.dot_dimension_numbers<[1], [0], [0], [1], [0, 0, 1, 1], [], []>} : vector<8x8xbf16>, vector<8x32xbf16>, vector<8x32xf32> -> vector<8x32xf32>
    %160 = vector.extract_strided_slice %57 {offsets = [0, 96], sizes = [8, 32], strides = [1, 1]} : vector<8x128xf32> to vector<8x32xf32>
    %cst_47 = arith.constant 0.0883883461 : f32
    %161 = vector.broadcast %cst_47 : f32 to vector<8x32xf32>
    %162 = arith.mulf %160, %161 : vector<8x32xf32>
    %163 = arith.truncf %162 : vector<8x32xf32> to vector<8x32xbf16>
    %164 = vector.extract_strided_slice %81 {offsets = [0, 96], sizes = [8, 32], strides = [1, 1]} : vector<8x128xf32> to vector<8x32xf32>
    %165 = arith.truncf %164 : vector<8x32xf32> to vector<8x32xbf16>
    %166 = vector.extract_strided_slice %31 {offsets = [0, 96], sizes = [8, 32], strides = [1, 1]} : vector<8x128xf32> to vector<8x32xf32>
    %167 = arith.truncf %166 : vector<8x32xf32> to vector<8x32xbf16>
    %cst_48 = arith.constant dense<0.000000e+00> : vector<8x8xf32>
    %168 = tpu.matmul %163, %165, %cst_48 {dimension_numbers = #tpu.dot_dimension_numbers<[1], [1], [0], [0], [0, 0, 1, 0], [], []>} : vector<8x32xbf16>, vector<8x32xbf16>, vector<8x8xf32> -> vector<8x8xf32>
    %cst_49 = arith.constant 2.000000e+00 : f32
    %169 = vector.broadcast %cst_49 : f32 to vector<8x8xf32>
    %170 = arith.mulf %168, %169 : vector<8x8xf32>
    %cst_50 = arith.constant -1.000000e+30 : f32
    %171 = vector.broadcast %cst_50 : f32 to vector<8x8xf32>
    %172 = arith.select %84, %170, %171 : vector<8x8xi1>, vector<8x8xf32>
    %cst_51 = arith.constant dense<0xFF800000> : vector<8xf32>
    %173 = vector.multi_reduction <maximumf>, %172, %cst_51 [1] : vector<8x8xf32> to vector<8xf32>
    %174 = vector.shape_cast %173 : vector<8xf32> to vector<8x1xf32>
    %175 = vector.broadcast %174 : vector<8x1xf32> to vector<8x8xf32>
    %176 = arith.subf %172, %175 : vector<8x8xf32>
    %177 = math.exp %176 : vector<8x8xf32>
    %cst_52 = arith.constant dense<0.000000e+00> : vector<8xf32>
    %178 = vector.multi_reduction <add>, %177, %cst_52 [1] : vector<8x8xf32> to vector<8xf32>
    %179 = vector.shape_cast %178 : vector<8xf32> to vector<8x1xf32>
    %180 = tpu.reciprocal %179 {approx = true} : vector<8x1xf32> -> vector<8x1xf32>
    %181 = vector.broadcast %180 : vector<8x1xf32> to vector<8x8xf32>
    %182 = arith.mulf %177, %181 : vector<8x8xf32>
    %183 = arith.truncf %182 : vector<8x8xf32> to vector<8x8xbf16>
    %cst_53 = arith.constant dense<0.000000e+00> : vector<8x32xf32>
    %184 = tpu.matmul %183, %167, %cst_53 {dimension_numbers = #tpu.dot_dimension_numbers<[1], [0], [0], [1], [0, 0, 1, 1], [], []>} : vector<8x8xbf16>, vector<8x32xbf16>, vector<8x32xf32> -> vector<8x32xf32>
    %185 = tpu.concatenate %109, %134, %159, %184 in 1 : vector<8x32xf32>, vector<8x32xf32>, vector<8x32xf32>, vector<8x32xf32> -> vector<8x128xf32>
    %186 = arith.truncf %185 : vector<8x128xf32> to vector<8x128xbf16>
    %c0_54 = arith.constant 0 : index
    %c0_55 = arith.constant 0 : index
    %187 = vector.load %arg8[%c0_54, %c0_55] : memref<128x128xbf16, #tpu.memory_space<vmem>>, vector<128x128xbf16>
    %cst_56 = arith.constant dense<0.000000e+00> : vector<8x128xf32>
    %188 = tpu.matmul %186, %187, %cst_56 {dimension_numbers = #tpu.dot_dimension_numbers<[1], [0], [0], [1], [0, 0, 1, 1], [], []>} : vector<8x128xbf16>, vector<128x128xbf16>, vector<8x128xf32> -> vector<8x128xf32>
    %c0_57 = arith.constant 0 : index
    %c0_58 = arith.constant 0 : index
    %189 = vector.load %arg9[%c0_57, %c0_58] : memref<1x128xf32, #tpu.memory_space<vmem>>, vector<1x128xf32>
    %190 = vector.broadcast %189 : vector<1x128xf32> to vector<8x128xf32>
    %191 = arith.addf %188, %190 : vector<8x128xf32>
    %cst_59 = arith.constant 2.000000e+00 : f32
    %192 = vector.broadcast %cst_59 : f32 to vector<8x128xf32>
    %193 = arith.mulf %22, %192 : vector<8x128xf32>
    %194 = arith.addf %193, %191 : vector<8x128xf32>
    %c0_60 = arith.constant 0 : index
    %c0_61 = arith.constant 0 : index
    %195 = vector.load %arg10[%c0_60, %c0_61] : memref<1x128xf32, #tpu.memory_space<vmem>>, vector<1x128xf32>
    %c0_62 = arith.constant 0 : index
    %c0_63 = arith.constant 0 : index
    %196 = vector.load %arg11[%c0_62, %c0_63] : memref<1x128xf32, #tpu.memory_space<vmem>>, vector<1x128xf32>
    %cst_64 = arith.constant dense<0.000000e+00> : vector<8xf32>
    %197 = vector.multi_reduction <add>, %194, %cst_64 [1] : vector<8x128xf32> to vector<8xf32>
    %198 = vector.shape_cast %197 : vector<8xf32> to vector<8x1xf32>
    %cst_65 = arith.constant 1.280000e+02 : f32
    %199 = vector.broadcast %cst_65 : f32 to vector<8x1xf32>
    %200 = arith.divf %198, %199 : vector<8x1xf32>
    %201 = vector.broadcast %200 : vector<8x1xf32> to vector<8x128xf32>
    %202 = arith.subf %194, %201 : vector<8x128xf32>
    %203 = arith.mulf %202, %202 : vector<8x128xf32>
    %cst_66 = arith.constant dense<0.000000e+00> : vector<8xf32>
    %204 = vector.multi_reduction <add>, %203, %cst_66 [1] : vector<8x128xf32> to vector<8xf32>
    %205 = vector.shape_cast %204 : vector<8xf32> to vector<8x1xf32>
    %cst_67 = arith.constant 1.280000e+02 : f32
    %206 = vector.broadcast %cst_67 : f32 to vector<8x1xf32>
    %207 = arith.divf %205, %206 : vector<8x1xf32>
    %cst_68 = arith.constant 9.99999974E-6 : f32
    %208 = vector.broadcast %cst_68 : f32 to vector<8x1xf32>
    %209 = arith.addf %207, %208 : vector<8x1xf32>
    %210 = math.rsqrt %209 : vector<8x1xf32>
    %211 = vector.broadcast %210 : vector<8x1xf32> to vector<8x128xf32>
    %212 = arith.mulf %202, %211 : vector<8x128xf32>
    %213 = vector.broadcast %195 : vector<1x128xf32> to vector<8x128xf32>
    %214 = arith.mulf %212, %213 : vector<8x128xf32>
    %215 = vector.broadcast %196 : vector<1x128xf32> to vector<8x128xf32>
    %216 = arith.addf %214, %215 : vector<8x128xf32>
    %217 = arith.truncf %216 : vector<8x128xf32> to vector<8x128xbf16>
    %c0_69 = arith.constant 0 : index
    %c0_70 = arith.constant 0 : index
    %218 = vector.load %arg12[%c0_69, %c0_70] : memref<128x512xbf16, #tpu.memory_space<vmem>>, vector<128x512xbf16>
    %cst_71 = arith.constant dense<0.000000e+00> : vector<8x512xf32>
    %219 = tpu.matmul %217, %218, %cst_71 {dimension_numbers = #tpu.dot_dimension_numbers<[1], [0], [0], [1], [0, 0, 1, 1], [], []>} : vector<8x128xbf16>, vector<128x512xbf16>, vector<8x512xf32> -> vector<8x512xf32>
    %c0_72 = arith.constant 0 : index
    %c0_73 = arith.constant 0 : index
    %220 = vector.load %arg13[%c0_72, %c0_73] : memref<1x512xf32, #tpu.memory_space<vmem>>, vector<1x512xf32>
    %221 = vector.broadcast %220 : vector<1x512xf32> to vector<8x512xf32>
    %222 = arith.addf %219, %221 : vector<8x512xf32>
    %cst_74 = arith.constant 5.000000e-01 : f32
    %223 = vector.broadcast %cst_74 : f32 to vector<8x512xf32>
    %224 = arith.mulf %223, %222 : vector<8x512xf32>
    %cst_75 = arith.constant 0.797884583 : f32
    %225 = vector.broadcast %cst_75 : f32 to vector<8x512xf32>
    %226 = arith.mulf %225, %222 : vector<8x512xf32>
    %cst_76 = arith.constant 4.471500e-02 : f32
    %227 = vector.broadcast %cst_76 : f32 to vector<8x512xf32>
    %228 = arith.mulf %227, %222 : vector<8x512xf32>
    %229 = arith.mulf %228, %222 : vector<8x512xf32>
    %cst_77 = arith.constant 1.000000e+00 : f32
    %230 = vector.broadcast %cst_77 : f32 to vector<8x512xf32>
    %231 = arith.addf %230, %229 : vector<8x512xf32>
    %232 = arith.mulf %226, %231 : vector<8x512xf32>
    %233 = math.tanh %232 : vector<8x512xf32>
    %cst_78 = arith.constant 1.000000e+00 : f32
    %234 = vector.broadcast %cst_78 : f32 to vector<8x512xf32>
    %235 = arith.addf %234, %233 : vector<8x512xf32>
    %236 = arith.mulf %224, %235 : vector<8x512xf32>
    %237 = arith.truncf %236 : vector<8x512xf32> to vector<8x512xbf16>
    %c0_79 = arith.constant 0 : index
    %c0_80 = arith.constant 0 : index
    %238 = vector.load %arg14[%c0_79, %c0_80] : memref<512x128xbf16, #tpu.memory_space<vmem>>, vector<512x128xbf16>
    %cst_81 = arith.constant dense<0.000000e+00> : vector<8x128xf32>
    %239 = tpu.matmul %237, %238, %cst_81 {dimension_numbers = #tpu.dot_dimension_numbers<[1], [0], [0], [1], [0, 0, 1, 1], [], []>} : vector<8x512xbf16>, vector<512x128xbf16>, vector<8x128xf32> -> vector<8x128xf32>
    %c0_82 = arith.constant 0 : index
    %c0_83 = arith.constant 0 : index
    %240 = vector.load %arg15[%c0_82, %c0_83] : memref<1x128xf32, #tpu.memory_space<vmem>>, vector<1x128xf32>
    %241 = vector.broadcast %240 : vector<1x128xf32> to vector<8x128xf32>
    %242 = arith.addf %239, %241 : vector<8x128xf32>
    %cst_84 = arith.constant 2.000000e+00 : f32
    %243 = vector.broadcast %cst_84 : f32 to vector<8x128xf32>
    %244 = arith.mulf %216, %243 : vector<8x128xf32>
    %245 = arith.addf %244, %242 : vector<8x128xf32>
    %c0_85 = arith.constant 0 : index
    %c0_86 = arith.constant 0 : index
    %246 = vector.load %arg16[%c0_85, %c0_86] : memref<8x128xf32, #tpu.memory_space<vmem>>, vector<8x128xf32>
    tpu.vector_store %arg16[%c0_85, %c0_86], %245 {strides = array<i32>} : memref<8x128xf32, #tpu.memory_space<vmem>>, vector<8x128xf32>,
    return
  }
  func.func @transform_0(%arg0: i32) -> (i32, i32) {
    %c0_i32 = arith.constant 0 : i32
    %c0_i32_0 = arith.constant 0 : i32
    return %arg0, %c0_i32 : i32, i32
  }
  func.func @transform_1(%arg0: i32) -> (i32, i32) {
    %c0_i32 = arith.constant 0 : i32
    %c0_i32_0 = arith.constant 0 : i32
    %c0_i32_1 = arith.constant 0 : i32
    return %c0_i32, %c0_i32_0 : i32, i32
  }
  func.func @transform_2(%arg0: i32) -> (i32, i32) {
    %c0_i32 = arith.constant 0 : i32
    %c0_i32_0 = arith.constant 0 : i32
    %c0_i32_1 = arith.constant 0 : i32
    return %c0_i32, %c0_i32_0 : i32, i32
  }
  func.func @transform_3(%arg0: i32) -> (i32, i32) {
    %c0_i32 = arith.constant 0 : i32
    %c0_i32_0 = arith.constant 0 : i32
    %c0_i32_1 = arith.constant 0 : i32
    return %c0_i32, %c0_i32_0 : i32, i32
  }
  func.func @transform_4(%arg0: i32) -> (i32, i32) {
    %c0_i32 = arith.constant 0 : i32
    %c0_i32_0 = arith.constant 0 : i32
    %c0_i32_1 = arith.constant 0 : i32
    return %c0_i32, %c0_i32_0 : i32, i32
  }
  func.func @transform_5(%arg0: i32) -> (i32, i32) {
    %c0_i32 = arith.constant 0 : i32
    %c0_i32_0 = arith.constant 0 : i32
    %c0_i32_1 = arith.constant 0 : i32
    return %c0_i32, %c0_i32_0 : i32, i32
  }
  func.func @transform_6(%arg0: i32) -> (i32, i32) {
    %c0_i32 = arith.constant 0 : i32
    %c0_i32_0 = arith.constant 0 : i32
    %c0_i32_1 = arith.constant 0 : i32
    return %c0_i32, %c0_i32_0 : i32, i32
  }
  func.func @transform_7(%arg0: i32) -> (i32, i32) {
    %c0_i32 = arith.constant 0 : i32
    %c0_i32_0 = arith.constant 0 : i32
    %c0_i32_1 = arith.constant 0 : i32
    return %c0_i32, %c0_i32_0 : i32, i32
  }
  func.func @transform_8(%arg0: i32) -> (i32, i32) {
    %c0_i32 = arith.constant 0 : i32
    %c0_i32_0 = arith.constant 0 : i32
    %c0_i32_1 = arith.constant 0 : i32
    return %c0_i32, %c0_i32_0 : i32, i32
  }
  func.func @transform_9(%arg0: i32) -> (i32, i32) {
    %c0_i32 = arith.constant 0 : i32
    %c0_i32_0 = arith.constant 0 : i32
    %c0_i32_1 = arith.constant 0 : i32
    return %c0_i32, %c0_i32_0 : i32, i32
  }
  func.func @transform_10(%arg0: i32) -> (i32, i32) {
    %c0_i32 = arith.constant 0 : i32
    %c0_i32_0 = arith.constant 0 : i32
    %c0_i32_1 = arith.constant 0 : i32
    return %c0_i32, %c0_i32_0 : i32, i32
  }
  func.func @transform_11(%arg0: i32) -> (i32, i32) {
    %c0_i32 = arith.constant 0 : i32
    %c0_i32_0 = arith.constant 0 : i32
    %c0_i32_1 = arith.constant 0 : i32
    return %c0_i32, %c0_i32_0 : i32, i32
  }
  func.func @transform_12(%arg0: i32) -> (i32, i32) {
    %c0_i32 = arith.constant 0 : i32
    %c0_i32_0 = arith.constant 0 : i32
    %c0_i32_1 = arith.constant 0 : i32
    return %c0_i32, %c0_i32_0 : i32, i32
  }
  func.func @transform_13(%arg0: i32) -> (i32, i32) {
    %c0_i32 = arith.constant 0 : i32
    %c0_i32_0 = arith.constant 0 : i32
    %c0_i32_1 = arith.constant 0 : i32
    return %c0_i32, %c0_i32_0 : i32, i32
  }
  func.func @transform_14(%arg0: i32) -> (i32, i32) {
    %c0_i32 = arith.constant 0 : i32
    %c0_i32_0 = arith.constant 0 : i32
    %c0_i32_1 = arith.constant 0 : i32
    return %c0_i32, %c0_i32_0 : i32, i32
  }
  func.func @transform_15(%arg0: i32) -> (i32, i32) {
    %c0_i32 = arith.constant 0 : i32
    %c0_i32_0 = arith.constant 0 : i32
    return %arg0, %c0_i32 : i32, i32
  }
}

module attributes {stable_mosaic.version = 11 : i64} {
  func.func @_glm_layer_kernel(%arg0: i32, %arg1: memref<8x128xf32, #tpu.memory_space<vmem>>, %arg2: memref<8x128xf32, #tpu.memory_space<vmem>>, %arg3: memref<8x128xf32, #tpu.memory_space<vmem>>, %arg4: memref<1x128xf32, #tpu.memory_space<vmem>>, %arg5: memref<1x128xf32, #tpu.memory_space<vmem>>, %arg6: memref<128x384xbf16, #tpu.memory_space<vmem>>, %arg7: memref<1x384xf32, #tpu.memory_space<vmem>>, %arg8: memref<128x128xbf16, #tpu.memory_space<vmem>>, %arg9: memref<1x128xf32, #tpu.memory_space<vmem>>, %arg10: memref<1x128xf32, #tpu.memory_space<vmem>>, %arg11: memref<1x128xf32, #tpu.memory_space<vmem>>, %arg12: memref<128x512xbf16, #tpu.memory_space<vmem>>, %arg13: memref<1x512xf32, #tpu.memory_space<vmem>>, %arg14: memref<512x128xbf16, #tpu.memory_space<vmem>>, %arg15: memref<1x128xf32, #tpu.memory_space<vmem>>, %arg16: memref<8x128xf32, #tpu.memory_space<vmem>>) attributes {dimension_semantics = [#tpu.dimension_semantics<parallel>], iteration_bounds = array<i64: 2>, scalar_prefetch = 0 : i64, scratch_operands = 0 : i64, tpu.core_type = #tpu.core_type<tc>, window_params = [{transform_indices = @transform_0, window_bounds = array<i64: 8, 128>}, {pipeline_mode = #tpu.pipeline_mode<synchronous>, transform_indices = @transform_1, window_bounds = array<i64: 8, 128>}, {pipeline_mode = #tpu.pipeline_mode<synchronous>, transform_indices = @transform_2, window_bounds = array<i64: 8, 128>}, {pipeline_mode = #tpu.pipeline_mode<synchronous>, transform_indices = @transform_3, window_bounds = array<i64: 1, 128>}, {pipeline_mode = #tpu.pipeline_mode<synchronous>, transform_indices = @transform_4, window_bounds = array<i64: 1, 128>}, {pipeline_mode = #tpu.pipeline_mode<synchronous>, transform_indices = @transform_5, window_bounds = array<i64: 128, 384>}, {pipeline_mode = #tpu.pipeline_mode<synchronous>, transform_indices = @transform_6, window_bounds = array<i64: 1, 384>}, {pipeline_mode = #tpu.pipeline_mode<synchronous>, transform_indices = @transform_7, window_bounds = array<i64: 128, 128>}, {pipeline_mode = #tpu.pipeline_mode<synchronous>, transform_indices = @transform_8, window_bounds = array<i64: 1, 128>}, {pipeline_mode = #tpu.pipeline_mode<synchronous>, transform_indices = @transform_9, window_bounds = array<i64: 1, 128>}, {pipeline_mode = #tpu.pipeline_mode<synchronous>, transform_indices = @transform_10, window_bounds = array<i64: 1, 128>}, {pipeline_mode = #tpu.pipeline_mode<synchronous>, transform_indices = @transform_11, window_bounds = array<i64: 128, 512>}, {pipeline_mode = #tpu.pipeline_mode<synchronous>, transform_indices = @transform_12, window_bounds = array<i64: 1, 512>}, {pipeline_mode = #tpu.pipeline_mode<synchronous>, transform_indices = @transform_13, window_bounds = array<i64: 512, 128>}, {pipeline_mode = #tpu.pipeline_mode<synchronous>, transform_indices = @transform_14, window_bounds = array<i64: 1, 128>}, {transform_indices = @transform_15, window_bounds = array<i64: 8, 128>}]} {
    %c0 = arith.constant 0 : index
    %c0_0 = arith.constant 0 : index
    %0 = vector.load %arg1[%c0, %c0_0] : memref<8x128xf32, #tpu.memory_space<vmem>>, vector<8x128xf32>
    %c0_1 = arith.constant 0 : index
    %c0_2 = arith.constant 0 : index
    %1 = vector.load %arg4[%c0_1, %c0_2] : memref<1x128xf32, #tpu.memory_space<vmem>>, vector<1x128xf32>
    %c0_3 = arith.constant 0 : index
    %c0_4 = arith.constant 0 : index
    %2 = vector.load %arg5[%c0_3, %c0_4] : memref<1x128xf32, #tpu.memory_space<vmem>>, vector<1x128xf32>
    %cst = arith.constant dense<0.000000e+00> : vector<8xf32>
    %3 = vector.multi_reduction <add>, %0, %cst [1] : vector<8x128xf32> to vector<8xf32>
    %4 = vector.shape_cast %3 : vector<8xf32> to vector<8x1xf32>
    %cst_5 = arith.constant 1.280000e+02 : f32
    %5 = vector.broadcast %cst_5 : f32 to vector<8x1xf32>
    %6 = arith.divf %4, %5 : vector<8x1xf32>
    %7 = vector.broadcast %6 : vector<8x1xf32> to vector<8x128xf32>
    %8 = arith.subf %0, %7 : vector<8x128xf32>
    %9 = arith.mulf %8, %8 : vector<8x128xf32>
    %cst_6 = arith.constant dense<0.000000e+00> : vector<8xf32>
    %10 = vector.multi_reduction <add>, %9, %cst_6 [1] : vector<8x128xf32> to vector<8xf32>
    %11 = vector.shape_cast %10 : vector<8xf32> to vector<8x1xf32>
    %cst_7 = arith.constant 1.280000e+02 : f32
    %12 = vector.broadcast %cst_7 : f32 to vector<8x1xf32>
    %13 = arith.divf %11, %12 : vector<8x1xf32>
    %cst_8 = arith.constant 9.99999974E-6 : f32
    %14 = vector.broadcast %cst_8 : f32 to vector<8x1xf32>
    %15 = arith.addf %13, %14 : vector<8x1xf32>
    %16 = math.rsqrt %15 : vector<8x1xf32>
    %17 = vector.broadcast %16 : vector<8x1xf32> to vector<8x128xf32>
    %18 = arith.mulf %8, %17 : vector<8x128xf32>
    %19 = vector.broadcast %1 : vector<1x128xf32> to vector<8x128xf32>
    %20 = arith.mulf %18, %19 : vector<8x128xf32>
    %21 = vector.broadcast %2 : vector<1x128xf32> to vector<8x128xf32>
    %22 = arith.addf %20, %21 : vector<8x128xf32>
    %23 = arith.truncf %22 : vector<8x128xf32> to vector<8x128xbf16>
    %c0_9 = arith.constant 0 : index
    %c0_10 = arith.constant 0 : index
    %24 = vector.load %arg6[%c0_9, %c0_10] : memref<128x384xbf16, #tpu.memory_space<vmem>>, vector<128x384xbf16>
    %cst_11 = arith.constant dense<0.000000e+00> : vector<8x384xf32>
    %25 = tpu.matmul %23, %24, %cst_11 {dimension_numbers = #tpu.dot_dimension_numbers<[1], [0], [0], [1], [0, 0, 1, 1], [], []>} : vector<8x128xbf16>, vector<128x384xbf16>, vector<8x384xf32> -> vector<8x384xf32>
    %c0_12 = arith.constant 0 : index
    %c0_13 = arith.constant 0 : index
    %26 = vector.load %arg7[%c0_12, %c0_13] : memref<1x384xf32, #tpu.memory_space<vmem>>, vector<1x384xf32>
    %27 = vector.broadcast %26 : vector<1x384xf32> to vector<8x384xf32>
    %28 = arith.addf %25, %27 : vector<8x384xf32>
    %29 = vector.extract_strided_slice %28 {offsets = [0, 0], sizes = [8, 128], strides = [1, 1]} : vector<8x384xf32> to vector<8x128xf32>
    %30 = vector.extract_strided_slice %28 {offsets = [0, 128], sizes = [8, 128], strides = [1, 1]} : vector<8x384xf32> to vector<8x128xf32>
    %31 = vector.extract_strided_slice %28 {offsets = [0, 256], sizes = [8, 128], strides = [1, 1]} : vector<8x384xf32> to vector<8x128xf32>
    %c0_14 = arith.constant 0 : index
    %c0_15 = arith.constant 0 : index
    %32 = vector.load %arg2[%c0_14, %c0_15] : memref<8x128xf32, #tpu.memory_space<vmem>>, vector<8x128xf32>
    %c0_16 = arith.constant 0 : index
    %c0_17 = arith.constant 0 : index
    %33 = vector.load %arg3[%c0_16, %c0_17] : memref<8x128xf32, #tpu.memory_space<vmem>>, vector<8x128xf32>
    %34 = arith.mulf %29, %32 : vector<8x128xf32>
    %35 = vector.extract_strided_slice %29 {offsets = [0, 0], sizes = [8, 8], strides = [1, 1]} : vector<8x128xf32> to vector<8x8xf32>
    %36 = vector.extract_strided_slice %29 {offsets = [0, 8], sizes = [8, 8], strides = [1, 1]} : vector<8x128xf32> to vector<8x8xf32>
    %37 = vector.extract_strided_slice %29 {offsets = [0, 16], sizes = [8, 16], strides = [1, 1]} : vector<8x128xf32> to vector<8x16xf32>
    %cst_18 = arith.constant 0.000000e+00 : f32
    %38 = vector.broadcast %cst_18 : f32 to vector<8x8xf32>
    %39 = arith.subf %38, %36 : vector<8x8xf32>
    %40 = vector.extract_strided_slice %29 {offsets = [0, 32], sizes = [8, 8], strides = [1, 1]} : vector<8x128xf32> to vector<8x8xf32>
    %41 = vector.extract_strided_slice %29 {offsets = [0, 40], sizes = [8, 8], strides = [1, 1]} : vector<8x128xf32> to vector<8x8xf32>
    %42 = vector.extract_strided_slice %29 {offsets = [0, 48], sizes = [8, 16], strides = [1, 1]} : vector<8x128xf32> to vector<8x16xf32>
    %cst_19 = arith.constant 0.000000e+00 : f32
    %43 = vector.broadcast %cst_19 : f32 to vector<8x8xf32>
    %44 = arith.subf %43, %41 : vector<8x8xf32>
    %45 = vector.extract_strided_slice %29 {offsets = [0, 64], sizes = [8, 8], strides = [1, 1]} : vector<8x128xf32> to vector<8x8xf32>
    %46 = vector.extract_strided_slice %29 {offsets = [0, 72], sizes = [8, 8], strides = [1, 1]} : vector<8x128xf32> to vector<8x8xf32>
    %47 = vector.extract_strided_slice %29 {offsets = [0, 80], sizes = [8, 16], strides = [1, 1]} : vector<8x128xf32> to vector<8x16xf32>
    %cst_20 = arith.constant 0.000000e+00 : f32
    %48 = vector.broadcast %cst_20 : f32 to vector<8x8xf32>
    %49 = arith.subf %48, %46 : vector<8x8xf32>
    %50 = vector.extract_strided_slice %29 {offsets = [0, 96], sizes = [8, 8], strides = [1, 1]} : vector<8x128xf32> to vector<8x8xf32>
    %51 = vector.extract_strided_slice %29 {offsets = [0, 104], sizes = [8, 8], strides = [1, 1]} : vector<8x128xf32> to vector<8x8xf32>
    %52 = vector.extract_strided_slice %29 {offsets = [0, 112], sizes = [8, 16], strides = [1, 1]} : vector<8x128xf32> to vector<8x16xf32>
    %cst_21 = arith.constant 0.000000e+00 : f32
    %53 = vector.broadcast %cst_21 : f32 to vector<8x8xf32>
    %54 = arith.subf %53, %51 : vector<8x8xf32>
    %55 = tpu.concatenate %39, %35, %37, %44, %40, %42, %49, %45, %47, %54, %50, %52 in 1 : vector<8x8xf32>, vector<8x8xf32>, vector<8x16xf32>, vector<8x8xf32>, vector<8x8xf32>, vector<8x16xf32>, vector<8x8xf32>, vector<8x8xf32>, vector<8x16xf32>, vector<8x8xf32>, vector<8x8xf32>, vector<8x16xf32> -> vector<8x128xf32>
    %56 = arith.mulf %55, %33 : vector<8x128xf32>
    %57 = arith.addf %34, %56 : vector<8x128xf32>
    %58 = arith.mulf %30, %32 : vector<8x128xf32>
    %59 = vector.extract_strided_slice %30 {offsets = [0, 0], sizes = [8, 8], strides = [1, 1]} : vector<8x128xf32> to vector<8x8xf32>
    %60 = vector.extract_strided_slice %30 {offsets = [0, 8], sizes = [8, 8], strides = [1, 1]} : vector<8x128xf32> to vector<8x8xf32>
    %61 = vector.extract_strided_slice %30 {offsets = [0, 16], sizes = [8, 16], strides = [1, 1]} : vector<8x128xf32> to vector<8x16xf32>
    %cst_22 = arith.constant 0.000000e+00 : f32
    %62 = vector.broadcast %cst_22 : f32 to vector<8x8xf32>
    %63 = arith.subf %62, %60 : vector<8x8xf32>
    %64 = vector.extract_strided_slice %30 {offsets = [0, 32], sizes = [8, 8], strides = [1, 1]} : vector<8x128xf32> to vector<8x8xf32>
    %65 = vector.extract_strided_slice %30 {offsets = [0, 40], sizes = [8, 8], strides = [1, 1]} : vector<8x128xf32> to vector<8x8xf32>
    %66 = vector.extract_strided_slice %30 {offsets = [0, 48], sizes = [8, 16], strides = [1, 1]} : vector<8x128xf32> to vector<8x16xf32>
    %cst_23 = arith.constant 0.000000e+00 : f32
    %67 = vector.broadcast %cst_23 : f32 to vector<8x8xf32>
    %68 = arith.subf %67, %65 : vector<8x8xf32>
    %69 = vector.extract_strided_slice %30 {offsets = [0, 64], sizes = [8, 8], strides = [1, 1]} : vector<8x128xf32> to vector<8x8xf32>
    %70 = vector.extract_strided_slice %30 {offsets = [0, 72], sizes = [8, 8], strides = [1, 1]} : vector<8x128xf32> to vector<8x8xf32>
    %71 = vector.extract_strided_slice %30 {offsets = [0, 80], sizes = [8, 16], strides = [1, 1]} : vector<8x128xf32> to vector<8x16xf32>
    %cst_24 = arith.constant 0.000000e+00 : f32
    %72 = vector.broadcast %cst_24 : f32 to vector<8x8xf32>
    %73 = arith.subf %72, %70 : vector<8x8xf32>
    %74 = vector.extract_strided_slice %30 {offsets = [0, 96], sizes = [8, 8], strides = [1, 1]} : vector<8x128xf32> to vector<8x8xf32>
    %75 = vector.extract_strided_slice %30 {offsets = [0, 104], sizes = [8, 8], strides = [1, 1]} : vector<8x128xf32> to vector<8x8xf32>
    %76 = vector.extract_strided_slice %30 {offsets = [0, 112], sizes = [8, 16], strides = [1, 1]} : vector<8x128xf32> to vector<8x16xf32>
    %cst_25 = arith.constant 0.000000e+00 : f32
    %77 = vector.broadcast %cst_25 : f32 to vector<8x8xf32>
    %78 = arith.subf %77, %75 : vector<8x8xf32>
    %79 = tpu.concatenate %63, %59, %61, %68, %64, %66, %73, %69, %71, %78, %74, %76 in 1 : vector<8x8xf32>, vector<8x8xf32>, vector<8x16xf32>, vector<8x8xf32>, vector<8x8xf32>, vector<8x16xf32>, vector<8x8xf32>, vector<8x8xf32>, vector<8x16xf32>, vector<8x8xf32>, vector<8x8xf32>, vector<8x16xf32> -> vector<8x128xf32>
    %80 = arith.mulf %79, %33 : vector<8x128xf32>
    %81 = arith.addf %58, %80 : vector<8x128xf32>
    %82 = tpu.iota {dimensions = array<i32: 0>} : vector<8x8xi32>
    %83 = tpu.iota {dimensions = array<i32: 1>} : vector<8x8xi32>
    %84 = arith.cmpi sle, %83, %82 : vector<8x8xi32>
    %85 = vector.extract_strided_slice %57 {offsets = [0, 0], sizes = [8, 32], strides = [1, 1]} : vector<8x128xf32> to vector<8x32xf32>
    %cst_26 = arith.constant 0.176776692 : f32
    %86 = vector.broadcast %cst_26 : f32 to vector<8x32xf32>
    %87 = arith.mulf %85, %86 : vector<8x32xf32>
    %88 = arith.truncf %87 : vector<8x32xf32> to vector<8x32xbf16>
    %89 = vector.extract_strided_slice %81 {offsets = [0, 0], sizes = [8, 32], strides = [1, 1]} : vector<8x128xf32> to vector<8x32xf32>
    %90 = arith.truncf %89 : vector<8x32xf32> to vector<8x32xbf16>
    %91 = vector.extract_strided_slice %31 {offsets = [0, 0], sizes = [8, 32], strides = [1, 1]} : vector<8x128xf32> to vector<8x32xf32>
    %92 = arith.truncf %91 : vector<8x32xf32> to vector<8x32xbf16>
    %cst_27 = arith.constant dense<0.000000e+00> : vector<8x8xf32>
    %93 = tpu.matmul %88, %90, %cst_27 {dimension_numbers = #tpu.dot_dimension_numbers<[1], [1], [0], [0], [0, 0, 1, 0], [], []>} : vector<8x32xbf16>, vector<8x32xbf16>, vector<8x8xf32> -> vector<8x8xf32>
    %cst_28 = arith.constant 1.000000e+00 : f32
    %94 = vector.broadcast %cst_28 : f32 to vector<8x8xf32>
    %95 = arith.mulf %93, %94 : vector<8x8xf32>
    %cst_29 = arith.constant -1.000000e+30 : f32
    %96 = vector.broadcast %cst_29 : f32 to vector<8x8xf32>
    %97 = arith.select %84, %95, %96 : vector<8x8xi1>, vector<8x8xf32>
    %cst_30 = arith.constant dense<0xFF800000> : vector<8xf32>
    %98 = vector.multi_reduction <maximumf>, %97, %cst_30 [1] : vector<8x8xf32> to vector<8xf32>
    %99 = vector.shape_cast %98 : vector<8xf32> to vector<8x1xf32>
    %100 = vector.broadcast %99 : vector<8x1xf32> to vector<8x8xf32>
    %101 = arith.subf %97, %100 : vector<8x8xf32>
    %102 = math.exp %101 : vector<8x8xf32>
    %cst_31 = arith.constant dense<0.000000e+00> : vector<8xf32>
    %103 = vector.multi_reduction <add>, %102, %cst_31 [1] : vector<8x8xf32> to vector<8xf32>
    %104 = vector.shape_cast %103 : vector<8xf32> to vector<8x1xf32>
    %105 = tpu.reciprocal %104 {approx = true} : vector<8x1xf32> -> vector<8x1xf32>
    %106 = vector.broadcast %105 : vector<8x1xf32> to vector<8x8xf32>
    %107 = arith.mulf %102, %106 : vector<8x8xf32>
    %108 = arith.truncf %107 : vector<8x8xf32> to vector<8x8xbf16>
    %cst_32 = arith.constant dense<0.000000e+00> : vector<8x32xf32>
    %109 = tpu.matmul %108, %92, %cst_32 {dimension_numbers = #tpu.dot_dimension_numbers<[1], [0], [0], [1], [0, 0, 1, 1], [], []>} : vector<8x8xbf16>, vector<8x32xbf16>, vector<8x32xf32> -> vector<8x32xf32>
    %110 = vector.extract_strided_slice %57 {offsets = [0, 32], sizes = [8, 32], strides = [1, 1]} : vector<8x128xf32> to vector<8x32xf32>
    %cst_33 = arith.constant 0.176776692 : f32
    %111 = vector.broadcast %cst_33 : f32 to vector<8x32xf32>
    %112 = arith.mulf %110, %111 : vector<8x32xf32>
    %113 = arith.truncf %112 : vector<8x32xf32> to vector<8x32xbf16>
    %114 = vector.extract_strided_slice %81 {offsets = [0, 32], sizes = [8, 32], strides = [1, 1]} : vector<8x128xf32> to vector<8x32xf32>
    %115 = arith.truncf %114 : vector<8x32xf32> to vector<8x32xbf16>
    %116 = vector.extract_strided_slice %31 {offsets = [0, 32], sizes = [8, 32], strides = [1, 1]} : vector<8x128xf32> to vector<8x32xf32>
    %117 = arith.truncf %116 : vector<8x32xf32> to vector<8x32xbf16>
    %cst_34 = arith.constant dense<0.000000e+00> : vector<8x8xf32>
    %118 = tpu.matmul %113, %115, %cst_34 {dimension_numbers = #tpu.dot_dimension_numbers<[1], [1], [0], [0], [0, 0, 1, 0], [], []>} : vector<8x32xbf16>, vector<8x32xbf16>, vector<8x8xf32> -> vector<8x8xf32>
    %cst_35 = arith.constant 1.000000e+00 : f32
    %119 = vector.broadcast %cst_35 : f32 to vector<8x8xf32>
    %120 = arith.mulf %118, %119 : vector<8x8xf32>
    %cst_36 = arith.constant -1.000000e+30 : f32
    %121 = vector.broadcast %cst_36 : f32 to vector<8x8xf32>
    %122 = arith.select %84, %120, %121 : vector<8x8xi1>, vector<8x8xf32>
    %cst_37 = arith.constant dense<0xFF800000> : vector<8xf32>
    %123 = vector.multi_reduction <maximumf>, %122, %cst_37 [1] : vector<8x8xf32> to vector<8xf32>
    %124 = vector.shape_cast %123 : vector<8xf32> to vector<8x1xf32>
    %125 = vector.broadcast %124 : vector<8x1xf32> to vector<8x8xf32>
    %126 = arith.subf %122, %125 : vector<8x8xf32>
    %127 = math.exp %126 : vector<8x8xf32>
    %cst_38 = arith.constant dense<0.000000e+00> : vector<8xf32>
    %128 = vector.multi_reduction <add>, %127, %cst_38 [1] : vector<8x8xf32> to vector<8xf32>
    %129 = vector.shape_cast %128 : vector<8xf32> to vector<8x1xf32>
    %130 = tpu.reciprocal %129 {approx = true} : vector<8x1xf32> -> vector<8x1xf32>
    %131 = vector.broadcast %130 : vector<8x1xf32> to vector<8x8xf32>
    %132 = arith.mulf %127, %131 : vector<8x8xf32>
    %133 = arith.truncf %132 : vector<8x8xf32> to vector<8x8xbf16>
    %cst_39 = arith.constant dense<0.000000e+00> : vector<8x32xf32>
    %134 = tpu.matmul %133, %117, %cst_39 {dimension_numbers = #tpu.dot_dimension_numbers<[1], [0], [0], [1], [0, 0, 1, 1], [], []>} : vector<8x8xbf16>, vector<8x32xbf16>, vector<8x32xf32> -> vector<8x32xf32>
    %135 = vector.extract_strided_slice %57 {offsets = [0, 64], sizes = [8, 32], strides = [1, 1]} : vector<8x128xf32> to vector<8x32xf32>
    %cst_40 = arith.constant 0.176776692 : f32
    %136 = vector.broadcast %cst_40 : f32 to vector<8x32xf32>
    %137 = arith.mulf %135, %136 : vector<8x32xf32>
    %138 = arith.truncf %137 : vector<8x32xf32> to vector<8x32xbf16>
    %139 = vector.extract_strided_slice %81 {offsets = [0, 64], sizes = [8, 32], strides = [1, 1]} : vector<8x128xf32> to vector<8x32xf32>
    %140 = arith.truncf %139 : vector<8x32xf32> to vector<8x32xbf16>
    %141 = vector.extract_strided_slice %31 {offsets = [0, 64], sizes = [8, 32], strides = [1, 1]} : vector<8x128xf32> to vector<8x32xf32>
    %142 = arith.truncf %141 : vector<8x32xf32> to vector<8x32xbf16>
    %cst_41 = arith.constant dense<0.000000e+00> : vector<8x8xf32>
    %143 = tpu.matmul %138, %140, %cst_41 {dimension_numbers = #tpu.dot_dimension_numbers<[1], [1], [0], [0], [0, 0, 1, 0], [], []>} : vector<8x32xbf16>, vector<8x32xbf16>, vector<8x8xf32> -> vector<8x8xf32>
    %cst_42 = arith.constant 1.000000e+00 : f32
    %144 = vector.broadcast %cst_42 : f32 to vector<8x8xf32>
    %145 = arith.mulf %143, %144 : vector<8x8xf32>
    %cst_43 = arith.constant -1.000000e+30 : f32
    %146 = vector.broadcast %cst_43 : f32 to vector<8x8xf32>
    %147 = arith.select %84, %145, %146 : vector<8x8xi1>, vector<8x8xf32>
    %cst_44 = arith.constant dense<0xFF800000> : vector<8xf32>
    %148 = vector.multi_reduction <maximumf>, %147, %cst_44 [1] : vector<8x8xf32> to vector<8xf32>
    %149 = vector.shape_cast %148 : vector<8xf32> to vector<8x1xf32>
    %150 = vector.broadcast %149 : vector<8x1xf32> to vector<8x8xf32>
    %151 = arith.subf %147, %150 : vector<8x8xf32>
    %152 = math.exp %151 : vector<8x8xf32>
    %cst_45 = arith.constant dense<0.000000e+00> : vector<8xf32>
    %153 = vector.multi_reduction <add>, %152, %cst_45 [1] : vector<8x8xf32> to vector<8xf32>
    %154 = vector.shape_cast %153 : vector<8xf32> to vector<8x1xf32>
    %155 = tpu.reciprocal %154 {approx = true} : vector<8x1xf32> -> vector<8x1xf32>
    %156 = vector.broadcast %155 : vector<8x1xf32> to vector<8x8xf32>
    %157 = arith.mulf %152, %156 : vector<8x8xf32>
    %158 = arith.truncf %157 : vector<8x8xf32> to vector<8x8xbf16>
    %cst_46 = arith.constant dense<0.000000e+00> : vector<8x32xf32>
    %159 = tpu.matmul %158, %142, %cst_46 {dimension_numbers = #tpu.dot_dimension_numbers<[1], [0], [0], [1], [0, 0, 1, 1], [], []>} : vector<8x8xbf16>, vector<8x32xbf16>, vector<8x32xf32> -> vector<8x32xf32>
    %160 = vector.extract_strided_slice %57 {offsets = [0, 96], sizes = [8, 32], strides = [1, 1]} : vector<8x128xf32> to vector<8x32xf32>
    %cst_47 = arith.constant 0.176776692 : f32
    %161 = vector.broadcast %cst_47 : f32 to vector<8x32xf32>
    %162 = arith.mulf %160, %161 : vector<8x32xf32>
    %163 = arith.truncf %162 : vector<8x32xf32> to vector<8x32xbf16>
    %164 = vector.extract_strided_slice %81 {offsets = [0, 96], sizes = [8, 32], strides = [1, 1]} : vector<8x128xf32> to vector<8x32xf32>
    %165 = arith.truncf %164 : vector<8x32xf32> to vector<8x32xbf16>
    %166 = vector.extract_strided_slice %31 {offsets = [0, 96], sizes = [8, 32], strides = [1, 1]} : vector<8x128xf32> to vector<8x32xf32>
    %167 = arith.truncf %166 : vector<8x32xf32> to vector<8x32xbf16>
    %cst_48 = arith.constant dense<0.000000e+00> : vector<8x8xf32>
    %168 = tpu.matmul %163, %165, %cst_48 {dimension_numbers = #tpu.dot_dimension_numbers<[1], [1], [0], [0], [0, 0, 1, 0], [], []>} : vector<8x32xbf16>, vector<8x32xbf16>, vector<8x8xf32> -> vector<8x8xf32>
    %cst_49 = arith.constant 1.000000e+00 : f32
    %169 = vector.broadcast %cst_49 : f32 to vector<8x8xf32>
    %170 = arith.mulf %168, %169 : vector<8x8xf32>
    %cst_50 = arith.constant -1.000000e+30 : f32
    %171 = vector.broadcast %cst_50 : f32 to vector<8x8xf32>
    %172 = arith.select %84, %170, %171 : vector<8x8xi1>, vector<8x8xf32>
    %cst_51 = arith.constant dense<0xFF800000> : vector<8xf32>
    %173 = vector.multi_reduction <maximumf>, %172, %cst_51 [1] : vector<8x8xf32> to vector<8xf32>
    %174 = vector.shape_cast %173 : vector<8xf32> to vector<8x1xf32>
    %175 = vector.broadcast %174 : vector<8x1xf32> to vector<8x8xf32>
    %176 = arith.subf %172, %175 : vector<8x8xf32>
    %177 = math.exp %176 : vector<8x8xf32>
    %cst_52 = arith.constant dense<0.000000e+00> : vector<8xf32>
    %178 = vector.multi_reduction <add>, %177, %cst_52 [1] : vector<8x8xf32> to vector<8xf32>
    %179 = vector.shape_cast %178 : vector<8xf32> to vector<8x1xf32>
    %180 = tpu.reciprocal %179 {approx = true} : vector<8x1xf32> -> vector<8x1xf32>
    %181 = vector.broadcast %180 : vector<8x1xf32> to vector<8x8xf32>
    %182 = arith.mulf %177, %181 : vector<8x8xf32>
    %183 = arith.truncf %182 : vector<8x8xf32> to vector<8x8xbf16>
    %cst_53 = arith.constant dense<0.000000e+00> : vector<8x32xf32>
    %184 = tpu.matmul %183, %167, %cst_53 {dimension_numbers = #tpu.dot_dimension_numbers<[1], [0], [0], [1], [0, 0, 1, 1], [], []>} : vector<8x8xbf16>, vector<8x32xbf16>, vector<8x32xf32> -> vector<8x32xf32>
    %185 = tpu.concatenate %109, %134, %159, %184 in 1 : vector<8x32xf32>, vector<8x32xf32>, vector<8x32xf32>, vector<8x32xf32> -> vector<8x128xf32>
    %186 = arith.truncf %185 : vector<8x128xf32> to vector<8x128xbf16>
    %c0_54 = arith.constant 0 : index
    %c0_55 = arith.constant 0 : index
    %187 = vector.load %arg8[%c0_54, %c0_55] : memref<128x128xbf16, #tpu.memory_space<vmem>>, vector<128x128xbf16>
    %cst_56 = arith.constant dense<0.000000e+00> : vector<8x128xf32>
    %188 = tpu.matmul %186, %187, %cst_56 {dimension_numbers = #tpu.dot_dimension_numbers<[1], [0], [0], [1], [0, 0, 1, 1], [], []>} : vector<8x128xbf16>, vector<128x128xbf16>, vector<8x128xf32> -> vector<8x128xf32>
    %c0_57 = arith.constant 0 : index
    %c0_58 = arith.constant 0 : index
    %189 = vector.load %arg9[%c0_57, %c0_58] : memref<1x128xf32, #tpu.memory_space<vmem>>, vector<1x128xf32>
    %190 = vector.broadcast %189 : vector<1x128xf32> to vector<8x128xf32>
    %191 = arith.addf %188, %190 : vector<8x128xf32>
    %cst_59 = arith.constant 2.000000e+00 : f32
    %192 = vector.broadcast %cst_59 : f32 to vector<8x128xf32>
    %193 = arith.mulf %22, %192 : vector<8x128xf32>
    %194 = arith.addf %193, %191 : vector<8x128xf32>
    %c0_60 = arith.constant 0 : index
    %c0_61 = arith.constant 0 : index
    %195 = vector.load %arg10[%c0_60, %c0_61] : memref<1x128xf32, #tpu.memory_space<vmem>>, vector<1x128xf32>
    %c0_62 = arith.constant 0 : index
    %c0_63 = arith.constant 0 : index
    %196 = vector.load %arg11[%c0_62, %c0_63] : memref<1x128xf32, #tpu.memory_space<vmem>>, vector<1x128xf32>
    %cst_64 = arith.constant dense<0.000000e+00> : vector<8xf32>
    %197 = vector.multi_reduction <add>, %194, %cst_64 [1] : vector<8x128xf32> to vector<8xf32>
    %198 = vector.shape_cast %197 : vector<8xf32> to vector<8x1xf32>
    %cst_65 = arith.constant 1.280000e+02 : f32
    %199 = vector.broadcast %cst_65 : f32 to vector<8x1xf32>
    %200 = arith.divf %198, %199 : vector<8x1xf32>
    %201 = vector.broadcast %200 : vector<8x1xf32> to vector<8x128xf32>
    %202 = arith.subf %194, %201 : vector<8x128xf32>
    %203 = arith.mulf %202, %202 : vector<8x128xf32>
    %cst_66 = arith.constant dense<0.000000e+00> : vector<8xf32>
    %204 = vector.multi_reduction <add>, %203, %cst_66 [1] : vector<8x128xf32> to vector<8xf32>
    %205 = vector.shape_cast %204 : vector<8xf32> to vector<8x1xf32>
    %cst_67 = arith.constant 1.280000e+02 : f32
    %206 = vector.broadcast %cst_67 : f32 to vector<8x1xf32>
    %207 = arith.divf %205, %206 : vector<8x1xf32>
    %cst_68 = arith.constant 9.99999974E-6 : f32
    %208 = vector.broadcast %cst_68 : f32 to vector<8x1xf32>
    %209 = arith.addf %207, %208 : vector<8x1xf32>
    %210 = math.rsqrt %209 : vector<8x1xf32>
    %211 = vector.broadcast %210 : vector<8x1xf32> to vector<8x128xf32>
    %212 = arith.mulf %202, %211 : vector<8x128xf32>
    %213 = vector.broadcast %195 : vector<1x128xf32> to vector<8x128xf32>
    %214 = arith.mulf %212, %213 : vector<8x128xf32>
    %215 = vector.broadcast %196 : vector<1x128xf32> to vector<8x128xf32>
    %216 = arith.addf %214, %215 : vector<8x128xf32>
    %217 = arith.truncf %216 : vector<8x128xf32> to vector<8x128xbf16>
    %c0_69 = arith.constant 0 : index
    %c0_70 = arith.constant 0 : index
    %218 = vector.load %arg12[%c0_69, %c0_70] : memref<128x512xbf16, #tpu.memory_space<vmem>>, vector<128x512xbf16>
    %cst_71 = arith.constant dense<0.000000e+00> : vector<8x512xf32>
    %219 = tpu.matmul %217, %218, %cst_71 {dimension_numbers = #tpu.dot_dimension_numbers<[1], [0], [0], [1], [0, 0, 1, 1], [], []>} : vector<8x128xbf16>, vector<128x512xbf16>, vector<8x512xf32> -> vector<8x512xf32>
    %c0_72 = arith.constant 0 : index
    %c0_73 = arith.constant 0 : index
    %220 = vector.load %arg13[%c0_72, %c0_73] : memref<1x512xf32, #tpu.memory_space<vmem>>, vector<1x512xf32>
    %221 = vector.broadcast %220 : vector<1x512xf32> to vector<8x512xf32>
    %222 = arith.addf %219, %221 : vector<8x512xf32>
    %cst_74 = arith.constant 5.000000e-01 : f32
    %223 = vector.broadcast %cst_74 : f32 to vector<8x512xf32>
    %224 = arith.mulf %223, %222 : vector<8x512xf32>
    %cst_75 = arith.constant 0.797884583 : f32
    %225 = vector.broadcast %cst_75 : f32 to vector<8x512xf32>
    %226 = arith.mulf %225, %222 : vector<8x512xf32>
    %cst_76 = arith.constant 4.471500e-02 : f32
    %227 = vector.broadcast %cst_76 : f32 to vector<8x512xf32>
    %228 = arith.mulf %227, %222 : vector<8x512xf32>
    %229 = arith.mulf %228, %222 : vector<8x512xf32>
    %cst_77 = arith.constant 1.000000e+00 : f32
    %230 = vector.broadcast %cst_77 : f32 to vector<8x512xf32>
    %231 = arith.addf %230, %229 : vector<8x512xf32>
    %232 = arith.mulf %226, %231 : vector<8x512xf32>
    %233 = math.tanh %232 : vector<8x512xf32>
    %cst_78 = arith.constant 1.000000e+00 : f32
    %234 = vector.broadcast %cst_78 : f32 to vector<8x512xf32>
    %235 = arith.addf %234, %233 : vector<8x512xf32>
    %236 = arith.mulf %224, %235 : vector<8x512xf32>
    %237 = arith.truncf %236 : vector<8x512xf32> to vector<8x512xbf16>
    %c0_79 = arith.constant 0 : index
    %c0_80 = arith.constant 0 : index
    %238 = vector.load %arg14[%c0_79, %c0_80] : memref<512x128xbf16, #tpu.memory_space<vmem>>, vector<512x128xbf16>
    %cst_81 = arith.constant dense<0.000000e+00> : vector<8x128xf32>
    %239 = tpu.matmul %237, %238, %cst_81 {dimension_numbers = #tpu.dot_dimension_numbers<[1], [0], [0], [1], [0, 0, 1, 1], [], []>} : vector<8x512xbf16>, vector<512x128xbf16>, vector<8x128xf32> -> vector<8x128xf32>
    %c0_82 = arith.constant 0 : index
    %c0_83 = arith.constant 0 : index
    %240 = vector.load %arg15[%c0_82, %c0_83] : memref<1x128xf32, #tpu.memory_space<vmem>>, vector<1x128xf32>
    %241 = vector.broadcast %240 : vector<1x128xf32> to vector<8x128xf32>
    %242 = arith.addf %239, %241 : vector<8x128xf32>
    %cst_84 = arith.constant 2.000000e+00 : f32
    %243 = vector.broadcast %cst_84 : f32 to vector<8x128xf32>
    %244 = arith.mulf %216, %243 : vector<8x128xf32>
    %245 = arith.addf %244, %242 : vector<8x128xf32>
    %c0_85 = arith.constant 0 : index
    %c0_86 = arith.constant 0 : index
    %246 = vector.load %arg16[%c0_85, %c0_86] : memref<8x128xf32, #tpu.memory_space<vmem>>, vector<8x128xf32>
    tpu.vector_store %arg16[%c0_85, %c0_86], %245 {strides = array<i32>} : memref<8x128xf32, #tpu.memory_space<vmem>>, vector<8x128xf32>,
    return
  }
  func.func @transform_0(%arg0: i32) -> (i32, i32) {
    %c0_i32 = arith.constant 0 : i32
    %c0_i32_0 = arith.constant 0 : i32
    return %arg0, %c0_i32 : i32, i32
  }
  func.func @transform_1(%arg0: i32) -> (i32, i32) {
    %c0_i32 = arith.constant 0 : i32
    %c0_i32_0 = arith.constant 0 : i32
    %c0_i32_1 = arith.constant 0 : i32
    return %c0_i32, %c0_i32_0 : i32, i32
  }
  func.func @transform_2(%arg0: i32) -> (i32, i32) {
    %c0_i32 = arith.constant 0 : i32
    %c0_i32_0 = arith.constant 0 : i32
    %c0_i32_1 = arith.constant 0 : i32
    return %c0_i32, %c0_i32_0 : i32, i32
  }
  func.func @transform_3(%arg0: i32) -> (i32, i32) {
    %c0_i32 = arith.constant 0 : i32
    %c0_i32_0 = arith.constant 0 : i32
    %c0_i32_1 = arith.constant 0 : i32
    return %c0_i32, %c0_i32_0 : i32, i32
  }
  func.func @transform_4(%arg0: i32) -> (i32, i32) {
    %c0_i32 = arith.constant 0 : i32
    %c0_i32_0 = arith.constant 0 : i32
    %c0_i32_1 = arith.constant 0 : i32
    return %c0_i32, %c0_i32_0 : i32, i32
  }
  func.func @transform_5(%arg0: i32) -> (i32, i32) {
    %c0_i32 = arith.constant 0 : i32
    %c0_i32_0 = arith.constant 0 : i32
    %c0_i32_1 = arith.constant 0 : i32
    return %c0_i32, %c0_i32_0 : i32, i32
  }
  func.func @transform_6(%arg0: i32) -> (i32, i32) {
    %c0_i32 = arith.constant 0 : i32
    %c0_i32_0 = arith.constant 0 : i32
    %c0_i32_1 = arith.constant 0 : i32
    return %c0_i32, %c0_i32_0 : i32, i32
  }
  func.func @transform_7(%arg0: i32) -> (i32, i32) {
    %c0_i32 = arith.constant 0 : i32
    %c0_i32_0 = arith.constant 0 : i32
    %c0_i32_1 = arith.constant 0 : i32
    return %c0_i32, %c0_i32_0 : i32, i32
  }
  func.func @transform_8(%arg0: i32) -> (i32, i32) {
    %c0_i32 = arith.constant 0 : i32
    %c0_i32_0 = arith.constant 0 : i32
    %c0_i32_1 = arith.constant 0 : i32
    return %c0_i32, %c0_i32_0 : i32, i32
  }
  func.func @transform_9(%arg0: i32) -> (i32, i32) {
    %c0_i32 = arith.constant 0 : i32
    %c0_i32_0 = arith.constant 0 : i32
    %c0_i32_1 = arith.constant 0 : i32
    return %c0_i32, %c0_i32_0 : i32, i32
  }
  func.func @transform_10(%arg0: i32) -> (i32, i32) {
    %c0_i32 = arith.constant 0 : i32
    %c0_i32_0 = arith.constant 0 : i32
    %c0_i32_1 = arith.constant 0 : i32
    return %c0_i32, %c0_i32_0 : i32, i32
  }
  func.func @transform_11(%arg0: i32) -> (i32, i32) {
    %c0_i32 = arith.constant 0 : i32
    %c0_i32_0 = arith.constant 0 : i32
    %c0_i32_1 = arith.constant 0 : i32
    return %c0_i32, %c0_i32_0 : i32, i32
  }
  func.func @transform_12(%arg0: i32) -> (i32, i32) {
    %c0_i32 = arith.constant 0 : i32
    %c0_i32_0 = arith.constant 0 : i32
    %c0_i32_1 = arith.constant 0 : i32
    return %c0_i32, %c0_i32_0 : i32, i32
  }
  func.func @transform_13(%arg0: i32) -> (i32, i32) {
    %c0_i32 = arith.constant 0 : i32
    %c0_i32_0 = arith.constant 0 : i32
    %c0_i32_1 = arith.constant 0 : i32
    return %c0_i32, %c0_i32_0 : i32, i32
  }
  func.func @transform_14(%arg0: i32) -> (i32, i32) {
    %c0_i32 = arith.constant 0 : i32
    %c0_i32_0 = arith.constant 0 : i32
    %c0_i32_1 = arith.constant 0 : i32
    return %c0_i32, %c0_i32_0 : i32, i32
  }
  func.func @transform_15(%arg0: i32) -> (i32, i32) {
    %c0_i32 = arith.constant 0 : i32
    %c0_i32_0 = arith.constant 0 : i32
    return %arg0, %c0_i32 : i32, i32
  }
}

</mosaic_0001>

<llo_original>
// kernel: tile.14
$region0: #{tile.14}
  %s0 = inlined_call_operand.vmem [shape: f32[8,4,32], index: 0, kind: input, shape index: {}]
  %s1 = inlined_call_operand.vmem [shape: f32[8,128], index: 1, kind: output, shape index: {}]
  $region1: #{tile.14} parent=0
    #allocation0 [shape = 'u8[32768]{0}', space=vmem, size = 0x8000, scoped, tag = 'scoped mem for input reshape']
    %s3 = sshll.u32 1, 4
    %s4 = ssub.s32 %s3, 1
    %s5 = smul.addr 4, 7
    %s6 = scalar_lea.vmem %s0, %s5
    %v7 = vld [vmem:[%s6] sm:%s4]
    %s8 = scalar_lea.vmem [#allocation0], 56
    %9 = vst [vmem:[%s8] sm:%s4] %v7
    %s10 = smul.addr 4, 6
    %s11 = scalar_lea.vmem %s0, %s10
    %v12 = vld [vmem:[%s11] sm:%s4]
    %s13 = scalar_lea.vmem [#allocation0], 48
    %14 = vst [vmem:[%s13] sm:%s4] %v12
    %s15 = smul.addr 4, 5
    %s16 = scalar_lea.vmem %s0, %s15
    %v17 = vld [vmem:[%s16] sm:%s4]
    %s18 = scalar_lea.vmem [#allocation0], 40
    %19 = vst [vmem:[%s18] sm:%s4] %v17
    %s20 = smul.addr 4, 4
    %s21 = scalar_lea.vmem %s0, %s20
    %v22 = vld [vmem:[%s21] sm:%s4]
    %s23 = scalar_lea.vmem [#allocation0], 32
    %24 = vst [vmem:[%s23] sm:%s4] %v22
    %s25 = smul.addr 4, 3
    %s26 = scalar_lea.vmem %s0, %s25
    %v27 = vld [vmem:[%s26] sm:%s4]
    %s28 = scalar_lea.vmem [#allocation0], 24
    %29 = vst [vmem:[%s28] sm:%s4] %v27
    %s30 = smul.addr 4, 2
    %s31 = scalar_lea.vmem %s0, %s30
    %v32 = vld [vmem:[%s31] sm:%s4]
    %s33 = scalar_lea.vmem [#allocation0], 16
    %34 = vst [vmem:[%s33] sm:%s4] %v32
    %s35 = scalar_lea.vmem %s0, 4
    %v36 = vld [vmem:[%s35] sm:%s4]
    %s37 = scalar_lea.vmem [#allocation0], 8
    %38 = vst [vmem:[%s37] sm:%s4] %v36
    %v39 = vld [vmem:[%s0] sm:%s4]
    %40 = vst [vmem:[#allocation0] sm:%s4] %v39
    %v41 = vld [vmem:[#allocation0] ss:$8 sm:$0xf]
    %v42 = vld [vmem:[#allocation0] ss:$8 sm:$0xf0]
    %vm43 = vcmask 1047556
    %v44 = vsel %vm43, %v42, %v41
    %vm45 = vcmask 261120
    %46 = vst.msk [vmem:[%s1] sm:$0xff] %vm45, %v44
    %s47 = scalar_lea.vmem [#allocation0], 3
    %v48 = vld [vmem:[%s47] ss:$8 sm:$0xf]
    %s49 = scalar_lea.vmem [#allocation0], 3
    %v50 = vld [vmem:[%s49] ss:$8 sm:$0xf0]
    %vm51 = vcmask 1047556
    %v52 = vsel %vm51, %v50, %v48
    %53 = vrot.lane.b32.xlu0 %v52, 96
    %v54 = vpop.permute.xlu0 %53
    %vm55 = vcmask 1048320
    %56 = vst.msk [vmem:[%s1] sm:$0xff] %vm55, %v54
    %s57 = scalar_lea.vmem [#allocation0], 2
    %v58 = vld [vmem:[%s57] ss:$8 sm:$0xf]
    %s59 = scalar_lea.vmem [#allocation0], 2
    %v60 = vld [vmem:[%s59] ss:$8 sm:$0xf0]
    %vm61 = vcmask 1047556
    %v62 = vsel %vm61, %v60, %v58
    %63 = vrot.lane.b32.xlu0 %v62, 64
    %v64 = vpop.permute.xlu0 %63
    %vm65 = vcmask 785920
    %66 = vst.msk [vmem:[%s1] sm:$0xff] %vm65, %v64
    %s67 = scalar_lea.vmem [#allocation0], 1
    %v68 = vld [vmem:[%s67] ss:$8 sm:$0xf]
    %s69 = scalar_lea.vmem [#allocation0], 1
    %v70 = vld [vmem:[%s69] ss:$8 sm:$0xf0]
    %vm71 = vcmask 1047556
    %v72 = vsel %vm71, %v70, %v68
    %73 = vrot.lane.b32.xlu0 %v72, 32
    %v74 = vpop.permute.xlu0 %73
    %vm75 = vcmask 523520
    %76 = vst.msk [vmem:[%s1] sm:$0xff] %vm75, %v74

// kernel: xiaohua_forward.5
$region0: #{xiaohua_forward.5}
  #allocation0 [shape = 'u32[]', space=smem, size = 0x4, offset = 0x4, fixed_abs, tag = 'smem constant byte address 0x4 - core index']
  #allocation1 [shape = 'u32[144,128]{1,0:T(1,128)}', space=vmem, size = 0x12000, scoped, tag = 'internal scratch']
  %s0 = inlined_call_operand.vmem [shape: f32[16,128], index: 0, kind: input, shape index: {}]
  %s1 = inlined_call_operand.vmem [shape: f32[1,128], index: 1, kind: input, shape index: {}]
  %s2 = inlined_call_operand.vmem [shape: f32[1,128], index: 2, kind: input, shape index: {}]
  %s3 = inlined_call_operand.vmem [shape: bf16[128,512], index: 3, kind: input, shape index: {}]
  %s4 = inlined_call_operand.vmem [shape: s32[16,1], index: 4, kind: input, shape index: {}]
  %s5 = inlined_call_operand.hbm [shape: f32[16,128], index: 5, kind: output, shape index: {0}]
  %s6 = inlined_call_operand.hbm [shape: f32[16,512], index: 6, kind: output, shape index: {1}]
  %s7 = inlined_call_operand.hbm [shape: f32[1,1], index: 7, kind: output, shape index: {2}]
  %8 = xla_tuple %s5, %s6, %s7
  %s9 = sld [smem:[#allocation0]]
  $region46: #{xiaohua_forward.5} parent=0
    _
  %s11 = ssub.s32 1, %s9
  %s12 = scalar_select 0, %s11, %s9
  $region1: #{xiaohua_forward.5} parent=0
    #allocation2 [shape = 'u8[8192]{0}', space=vmem, size = 0x2000, scoped, tag = 'output window, operand 0, single buffered']
    #allocation3 [shape = 's32[1]{0}', space=sflag, size = 0x4, scoped, tag = 'scoped memory for xiaohua_forward.5']
    #allocation4 [shape = 'u8[32768]{0}', space=vmem, size = 0x8000, scoped, tag = 'output window, operand 1, single buffered']
    #allocation5 [shape = 's32[1]{0}', space=sflag, size = 0x4, scoped, tag = 'scoped memory for xiaohua_forward.5']
    #allocation6 [shape = 'u8[512]{0}', space=vmem, size = 0x400, scoped, tag = 'output window, operand 2, single buffered']
    %13 = vsyncpa [#allocation3], 0
    %14 = vsyncpa [#allocation5], 0
    // Predicated region
    $region2: #{xiaohua_forward.5} parent=1 // pred_check
      _
    $region3: #{xiaohua_forward.5} parent=1 // pred_check_branch
      %16 = sbr.rel (0) target = $region5
    $region4: #{xiaohua_forward.5} parent=1 // pred_region
      _
    $region5: #{xiaohua_forward.5} parent=1 // pred_fallthru
      _
    // Predicated region
    $region6: #{xiaohua_forward.5} parent=1 // pred_check
      _
    $region7: #{xiaohua_forward.5} parent=1 // pred_check_branch
      %18 = sbr.rel (0) target = $region9
    $region8: #{xiaohua_forward.5} parent=1 // pred_region
      _
    $region9: #{xiaohua_forward.5} parent=1 // pred_fallthru
      _
    // Predicated region
    $region10: #{xiaohua_forward.5} parent=1 // pred_check
      _
    $region11: #{xiaohua_forward.5} parent=1 // pred_check_branch
      %20 = sbr.rel (0) target = $region13
    $region12: #{xiaohua_forward.5} parent=1 // pred_region
      _
    $region13: #{xiaohua_forward.5} parent=1 // pred_fallthru
      _
    // Predicated region
    $region14: #{xiaohua_forward.5} parent=1 // pred_check
      _
    $region15: #{xiaohua_forward.5} parent=1 // pred_check_branch
      %22 = sbr.rel (0) target = $region17
    $region16: #{xiaohua_forward.5} parent=1 // pred_region
      _
    $region17: #{xiaohua_forward.5} parent=1 // pred_fallthru
      _
    // Predicated region
    $region18: #{xiaohua_forward.5} parent=1 // pred_check
      _
    $region19: #{xiaohua_forward.5} parent=1 // pred_check_branch
      %24 = sbr.rel (0) target = $region21
    $region20: #{xiaohua_forward.5} parent=1 // pred_region
      _
    $region21: #{xiaohua_forward.5} parent=1 // pred_fallthru
      _
    %v26 = vld [vmem:[%s0] sm:$0xff]
    %v27 = vld [vmem:[%s0 + $0x8] sm:$0xff]
    %v28 = vld [vmem:[%s1] sm:$0x1]
    %v29 = vld [vmem:[%s2] sm:$0x1]
    %30 = vadd.xlane.f32.xlu0 %v26
    %v31 = vpop.xlane.xlu0 %30
    %32 = vadd.xlane.f32.xlu0 %v27
    %v33 = vpop.xlane.xlu0 %32
    %v34 = vrcp.pop 128.0
    %v35 = vmul.f32 %v31, %v34
    %v36 = vmul.f32 %v33, %v34
    %v37 = vsub.f32 %v26, %v35
    %v38 = vsub.f32 %v27, %v36
    %v39 = vmul.f32 %v37, %v37
    %v40 = vmul.f32 %v38, %v38
    %41 = vadd.xlane.f32.xlu0 %v39
    %v42 = vpop.xlane.xlu0 %41
    %43 = vadd.xlane.f32.xlu0 %v40
    %v44 = vpop.xlane.xlu0 %43
    %v45 = vmul.f32 %v42, %v34
    %v46 = vmul.f32 %v44, %v34
    %v47 = vadd.f32 %v45, 1e-05
    %v48 = vadd.f32 %v46, 1e-05
    %v49 = vrsqrt.pop %v47
    %v50 = vrsqrt.pop %v48
    %v51 = vmul.f32 %v37, %v49
    %v52 = vmul.f32 %v38, %v50
    %v54 = vlaneseq
    %v55 = vshrl.u32 %v54, 7
    %v56 = vsub.s32 0, %v55
    %v57 = vrot.slane %v28, %v56
    %v59 = vmul.f32 %v51, %v57
    %v60 = vmul.f32 %v52, %v57
    %v62 = vlaneseq
    %v63 = vshrl.u32 %v62, 7
    %v64 = vsub.s32 0, %v63
    %v65 = vrot.slane %v29, %v64
    %v67 = vadd.f32 %v59, %v65
    %v68 = vadd.f32 %v60, %v65
    %69 = vst [vmem:[#allocation2] sm:$0xff] %v67
    %70 = vst [vmem:[#allocation2 + $0x8] sm:$0xff] %v68
    %v71 = vpack.c.bf16 %v68, %v67
    %v72 = vld [vmem:[%s3] sm:$0xff]
    %v73 = vld [vmem:[%s3 + $0x8] sm:$0xff]
    %v74 = vld [vmem:[%s3 + $0x10] sm:$0xff]
    %v75 = vld [vmem:[%s3 + $0x18] sm:$0xff]
    %v76 = vld [vmem:[%s3 + $0x20] sm:$0xff]
    %v77 = vld [vmem:[%s3 + $0x28] sm:$0xff]
    %v78 = vld [vmem:[%s3 + $0x30] sm:$0xff]
    %v79 = vld [vmem:[%s3 + $0x38] sm:$0xff]
    %v80 = vld [vmem:[%s3 + $0x40] sm:$0xff]
    %v81 = vld [vmem:[%s3 + $0x48] sm:$0xff]
    %v82 = vld [vmem:[%s3 + $0x50] sm:$0xff]
    %v83 = vld [vmem:[%s3 + $0x58] sm:$0xff]
    %v84 = vld [vmem:[%s3 + $0x60] sm:$0xff]
    %v85 = vld [vmem:[%s3 + $0x68] sm:$0xff]
    %v86 = vld [vmem:[%s3 + $0x70] sm:$0xff]
    %v87 = vld [vmem:[%s3 + $0x78] sm:$0xff]
    %v88 = vld [vmem:[%s3 + $0x80] sm:$0xff]
    %v89 = vld [vmem:[%s3 + $0x88] sm:$0xff]
    %v90 = vld [vmem:[%s3 + $0x90] sm:$0xff]
    %v91 = vld [vmem:[%s3 + $0x98] sm:$0xff]
    %v92 = vld [vmem:[%s3 + $0xa0] sm:$0xff]
    %v93 = vld [vmem:[%s3 + $0xa8] sm:$0xff]
    %v94 = vld [vmem:[%s3 + $0xb0] sm:$0xff]
    %v95 = vld [vmem:[%s3 + $0xb8] sm:$0xff]
    %v96 = vld [vmem:[%s3 + $0xc0] sm:$0xff]
    %v97 = vld [vmem:[%s3 + $0xc8] sm:$0xff]
    %v98 = vld [vmem:[%s3 + $0xd0] sm:$0xff]
    %v99 = vld [vmem:[%s3 + $0xd8] sm:$0xff]
    %v100 = vld [vmem:[%s3 + $0xe0] sm:$0xff]
    %v101 = vld [vmem:[%s3 + $0xe8] sm:$0xff]
    %v102 = vld [vmem:[%s3 + $0xf0] sm:$0xff]
    %v103 = vld [vmem:[%s3 + $0xf8] sm:$0xff]
    %v136 = vunpack.c.l.b16 %v72
    %v137 = vunpack.c.h.b16 %v72
    %v138 = vunpack.c.l.b16 %v73
    %v139 = vunpack.c.h.b16 %v73
    %v140 = vunpack.c.l.b16 %v74
    %v141 = vunpack.c.h.b16 %v74
    %v142 = vunpack.c.l.b16 %v75
    %v143 = vunpack.c.h.b16 %v75
    %v144 = vunpack.c.l.b16 %v76
    %v145 = vunpack.c.h.b16 %v76
    %v146 = vunpack.c.l.b16 %v77
    %v147 = vunpack.c.h.b16 %v77
    %v148 = vunpack.c.l.b16 %v78
    %v149 = vunpack.c.h.b16 %v78
    %v150 = vunpack.c.l.b16 %v79
    %v151 = vunpack.c.h.b16 %v79
    %v152 = vunpack.c.l.b16 %v80
    %v153 = vunpack.c.h.b16 %v80
    %v154 = vunpack.c.l.b16 %v81
    %v155 = vunpack.c.h.b16 %v81
    %v156 = vunpack.c.l.b16 %v82
    %v157 = vunpack.c.h.b16 %v82
    %v158 = vunpack.c.l.b16 %v83
    %v159 = vunpack.c.h.b16 %v83
    %v160 = vunpack.c.l.b16 %v84
    %v161 = vunpack.c.h.b16 %v84
    %v162 = vunpack.c.l.b16 %v85
    %v163 = vunpack.c.h.b16 %v85
    %v164 = vunpack.c.l.b16 %v86
    %v165 = vunpack.c.h.b16 %v86
    %v166 = vunpack.c.l.b16 %v87
    %v167 = vunpack.c.h.b16 %v87
    %v168 = vunpack.c.l.b16 %v88
    %v169 = vunpack.c.h.b16 %v88
    %v170 = vunpack.c.l.b16 %v89
    %v171 = vunpack.c.h.b16 %v89
    %v172 = vunpack.c.l.b16 %v90
    %v173 = vunpack.c.h.b16 %v90
    %v174 = vunpack.c.l.b16 %v91
    %v175 = vunpack.c.h.b16 %v91
    %v176 = vunpack.c.l.b16 %v92
    %v177 = vunpack.c.h.b16 %v92
    %v178 = vunpack.c.l.b16 %v93
    %v179 = vunpack.c.h.b16 %v93
    %v180 = vunpack.c.l.b16 %v94
    %v181 = vunpack.c.h.b16 %v94
    %v182 = vunpack.c.l.b16 %v95
    %v183 = vunpack.c.h.b16 %v95
    %v184 = vunpack.c.l.b16 %v96
    %v185 = vunpack.c.h.b16 %v96
    %v186 = vunpack.c.l.b16 %v97
    %v187 = vunpack.c.h.b16 %v97
    %v188 = vunpack.c.l.b16 %v98
    %v189 = vunpack.c.h.b16 %v98
    %v190 = vunpack.c.l.b16 %v99
    %v191 = vunpack.c.h.b16 %v99
    %v192 = vunpack.c.l.b16 %v100
    %v193 = vunpack.c.h.b16 %v100
    %v194 = vunpack.c.l.b16 %v101
    %v195 = vunpack.c.h.b16 %v101
    %v196 = vunpack.c.l.b16 %v102
    %v197 = vunpack.c.h.b16 %v102
    %v198 = vunpack.c.l.b16 %v103
    %v199 = vunpack.c.h.b16 %v103
    %v200 = vpack.c.b16 %v140, %v136
    %v201 = vpack.c.b16 %v141, %v137
    %v202 = vpack.c.b16 %v142, %v138
    %v203 = vpack.c.b16 %v143, %v139
    %v204 = vpack.c.b16 %v148, %v144
    %v205 = vpack.c.b16 %v149, %v145
    %v206 = vpack.c.b16 %v150, %v146
    %v207 = vpack.c.b16 %v151, %v147
    %v208 = vpack.c.b16 %v156, %v152
    %v209 = vpack.c.b16 %v157, %v153
    %v210 = vpack.c.b16 %v158, %v154
    %v211 = vpack.c.b16 %v159, %v155
    %v212 = vpack.c.b16 %v164, %v160
    %v213 = vpack.c.b16 %v165, %v161
    %v214 = vpack.c.b16 %v166, %v162
    %v215 = vpack.c.b16 %v167, %v163
    %v216 = vpack.c.b16 %v172, %v168
    %v217 = vpack.c.b16 %v173, %v169
    %v218 = vpack.c.b16 %v174, %v170
    %v219 = vpack.c.b16 %v175, %v171
    %v220 = vpack.c.b16 %v180, %v176
    %v221 = vpack.c.b16 %v181, %v177
    %v222 = vpack.c.b16 %v182, %v178
    %v223 = vpack.c.b16 %v183, %v179
    %v224 = vpack.c.b16 %v188, %v184
    %v225 = vpack.c.b16 %v189, %v185
    %v226 = vpack.c.b16 %v190, %v186
    %v227 = vpack.c.b16 %v191, %v187
    %v228 = vpack.c.b16 %v196, %v192
    %v229 = vpack.c.b16 %v197, %v193
    %v230 = vpack.c.b16 %v198, %v194
    %v231 = vpack.c.b16 %v199, %v195
    %264 = vmatprep.subr.bf16.mxu0 %v229
    %265 = vmatpush1.bf16.msra.mxu0 %v228
    %266 = vmatprep.subr.bf16.mxu0 %v225
    %267 = vmatpush1.bf16.msra.mxu0 %v224
    %268 = vmatprep.subr.bf16.mxu0 %v221
    %269 = vmatpush1.bf16.msra.mxu0 %v220
    %270 = vmatprep.subr.bf16.mxu0 %v217
    %271 = vmatpush1.bf16.msra.mxu0 %v216
    %272 = vmatprep.subr.bf16.mxu0 %v213
    %273 = vmatpush1.bf16.msra.mxu0 %v212
    %274 = vmatprep.subr.bf16.mxu0 %v209
    %275 = vmatpush1.bf16.msra.mxu0 %v208
    %276 = vmatprep.subr.bf16.mxu0 %v205
    %277 = vmatpush1.bf16.msra.mxu0 %v204
    %278 = vmatprep.subr.bf16.mxu0 %v201
    %279 = vmatpush1.bf16.msra.mxu0 %v200
    %280 = vmatprep.subr.bf16.mxu0 0
    %281 = vmatpush2.bf16.msra.mxu0 0
    %282 = vmatprep.subr.bf16.mxu0 0
    %283 = vmatpush2.bf16.msra.mxu0 0
    %284 = vmatprep.subr.bf16.mxu0 0
    %285 = vmatpush2.bf16.msra.mxu0 0
    %286 = vmatprep.subr.bf16.mxu0 0
    %287 = vmatpush2.bf16.msra.mxu0 0
    %288 = vmatprep.subr.bf16.mxu0 0
    %289 = vmatpush2.bf16.msra.mxu0 0
    %290 = vmatprep.subr.bf16.mxu0 0
    %291 = vmatpush2.bf16.msra.mxu0 0
    %292 = vmatprep.subr.bf16.mxu0 0
    %293 = vmatpush2.bf16.msra.mxu0 0
    %294 = vmatprep.subr.bf16.mxu0 0
    %295 = vmatpush2.bf16.msra.mxu0 0
    %296 = vmatprep.mubr.bf16.mxu0 0
    %297 = vmatmul.mubr.bf16.gmra.mxu0 %v71
    %v298 = vpop.f32.mrf.mxu0
    %v299 = vadd.f32 0.0, %v298
    %v300 = vpop.f32.mrf.mxu0
    %v301 = vadd.f32 0.0, %v300
    %v302 = vpop.f32.mrf.mxu0
    %v303 = vadd.f32 0.0, %v302
    %v304 = vpop.f32.mrf.mxu0
    %v305 = vadd.f32 0.0, %v304
    %306 = vdwg.mxu0
    %307 = vmatprep.subr.bf16.mxu0 %v231
    %308 = vmatpush1.bf16.msra.mxu0 %v230
    %309 = vmatprep.subr.bf16.mxu0 %v227
    %310 = vmatpush1.bf16.msra.mxu0 %v226
    %311 = vmatprep.subr.bf16.mxu0 %v223
    %312 = vmatpush1.bf16.msra.mxu0 %v222
    %313 = vmatprep.subr.bf16.mxu0 %v219
    %314 = vmatpush1.bf16.msra.mxu0 %v218
    %315 = vmatprep.subr.bf16.mxu0 %v215
    %316 = vmatpush1.bf16.msra.mxu0 %v214
    %317 = vmatprep.subr.bf16.mxu0 %v211
    %318 = vmatpush1.bf16.msra.mxu0 %v210
    %319 = vmatprep.subr.bf16.mxu0 %v207
    %320 = vmatpush1.bf16.msra.mxu0 %v206
    %321 = vmatprep.subr.bf16.mxu0 %v203
    %322 = vmatpush1.bf16.msra.mxu0 %v202
    %323 = vmatprep.subr.bf16.mxu0 0
    %324 = vmatpush2.bf16.msra.mxu0 0
    %325 = vmatprep.subr.bf16.mxu0 0
    %326 = vmatpush2.bf16.msra.mxu0 0
    %327 = vmatprep.subr.bf16.mxu0 0
    %328 = vmatpush2.bf16.msra.mxu0 0
    %329 = vmatprep.subr.bf16.mxu0 0
    %330 = vmatpush2.bf16.msra.mxu0 0
    %331 = vmatprep.subr.bf16.mxu0 0
    %332 = vmatpush2.bf16.msra.mxu0 0
    %333 = vmatprep.subr.bf16.mxu0 0
    %334 = vmatpush2.bf16.msra.mxu0 0
    %335 = vmatprep.subr.bf16.mxu0 0
    %336 = vmatpush2.bf16.msra.mxu0 0
    %337 = vmatprep.subr.bf16.mxu0 0
    %338 = vmatpush2.bf16.msra.mxu0 0
    %339 = vmatprep.mubr.bf16.mxu0 0
    %340 = vmatmul.mubr.bf16.gmra.mxu0 %v71
    %v341 = vpop.f32.mrf.mxu0
    %v342 = vadd.f32 0.0, %v341
    %v343 = vpop.f32.mrf.mxu0
    %v344 = vadd.f32 0.0, %v343
    %v345 = vpop.f32.mrf.mxu0
    %v346 = vadd.f32 0.0, %v345
    %v347 = vpop.f32.mrf.mxu0
    %v348 = vadd.f32 0.0, %v347
    %349 = vdwg.mxu0
    %350 = vst [vmem:[#allocation4] sm:$0xff] %v299
    %351 = vst [vmem:[#allocation4 + $0x8] sm:$0xff] %v301
    %352 = vst [vmem:[#allocation4 + $0x10] sm:$0xff] %v342
    %353 = vst [vmem:[#allocation4 + $0x18] sm:$0xff] %v344
    %354 = vst [vmem:[#allocation4 + $0x20] sm:$0xff] %v303
    %355 = vst [vmem:[#allocation4 + $0x28] sm:$0xff] %v305
    %356 = vst [vmem:[#allocation4 + $0x30] sm:$0xff] %v346
    %357 = vst [vmem:[#allocation4 + $0x38] sm:$0xff] %v348
    %v358 = vld [vmem:[%s4] sm:$0xff]
    %v359 = vld [vmem:[%s4 + $0x8] sm:$0xff]
    %v360 = vmax.f32 %v299, %v342
    %v361 = vmax.f32 %v301, %v344
    %v362 = vmax.f32 %v360, %v361
    %363 = vmax.xlane.f32.xlu0 %v362
    %v364 = vpop.xlane.xlu0 %363
    %v365 = vmax.f32 %v303, %v346
    %v366 = vmax.f32 %v305, %v348
    %v367 = vmax.f32 %v365, %v366
    %368 = vmax.xlane.f32.xlu0 %v367
    %v369 = vpop.xlane.xlu0 %368
    %v370 = vsub.f32 %v299, %v364
    %v371 = vsub.f32 %v301, %v364
    %v372 = vsub.f32 %v342, %v364
    %v373 = vsub.f32 %v344, %v364
    %v374 = vsub.f32 %v303, %v369
    %v375 = vsub.f32 %v305, %v369
    %v376 = vsub.f32 %v346, %v369
    %v377 = vsub.f32 %v348, %v369
    %v378 = vmul.f32 %v370, 1.442695
    %v379 = vpow.pop %v378
    %v380 = vmul.f32 %v371, 1.442695
    %v381 = vpow.pop %v380
    %v382 = vmul.f32 %v372, 1.442695
    %v383 = vpow.pop %v382
    %v384 = vmul.f32 %v373, 1.442695
    %v385 = vpow.pop %v384
    %v386 = vmul.f32 %v374, 1.442695
    %v387 = vpow.pop %v386
    %v388 = vmul.f32 %v375, 1.442695
    %v389 = vpow.pop %v388
    %v390 = vmul.f32 %v376, 1.442695
    %v391 = vpow.pop %v390
    %v392 = vmul.f32 %v377, 1.442695
    %v393 = vpow.pop %v392
    %v394 = vadd.f32 %v379, %v381
    %v395 = vadd.f32 %v394, %v383
    %v396 = vadd.f32 %v395, %v385
    %397 = vadd.xlane.f32.xlu0 %v396
    %v398 = vpop.xlane.xlu0 %397
    %v399 = vadd.f32 %v387, %v389
    %v400 = vadd.f32 %v399, %v391
    %v401 = vadd.f32 %v400, %v393
    %402 = vadd.xlane.f32.xlu0 %v401
    %v403 = vpop.xlane.xlu0 %402
    %v404 = vlog2.pop %v398
    %v405 = vmul.f32 %v404, 0.6931472
    %v406 = vlog2.pop %v403
    %v407 = vmul.f32 %v406, 0.6931472
    %v408 = vadd.f32 %v405, %v364
    %v409 = vadd.f32 %v407, %v369
    %v410 = vlaneseq
    %v411 = vand.u32 %v410, 127
    %v412 = vadd.s32 %v411, 128
    %v413 = vadd.s32 %v411, 256
    %v414 = vadd.s32 %v411, 384
    %415 = vset.pattern.permute.xlu0 0
    %416 = vperm.xlu0 %415, %v358
    %v417 = vpop.permute.xlu0 %416
    %418 = vset.pattern.permute.xlu0 0
    %419 = vperm.xlu0 %418, %v359
    %v420 = vpop.permute.xlu0 %419
    %vm421 = vcmp.eq.s32.totalorder %v411, %v417
    %vm422 = vcmp.eq.s32.totalorder %v412, %v417
    %vm423 = vcmp.eq.s32.totalorder %v413, %v417
    %vm424 = vcmp.eq.s32.totalorder %v414, %v417
    %vm425 = vcmp.eq.s32.totalorder %v411, %v420
    %vm426 = vcmp.eq.s32.totalorder %v412, %v420
    %vm427 = vcmp.eq.s32.totalorder %v413, %v420
    %vm428 = vcmp.eq.s32.totalorder %v414, %v420
    %v429 = vsel %vm421, 1, 0
    %v430 = vsel %vm422, 1, 0
    %v431 = vsel %vm423, 1, 0
    %v432 = vsel %vm424, 1, 0
    %v433 = vsel %vm425, 1, 0
    %v434 = vsel %vm426, 1, 0
    %v435 = vsel %vm427, 1, 0
    %v436 = vsel %vm428, 1, 0
    %v437 = vcvt.s32.f32 %v429
    %v438 = vcvt.s32.f32 %v430
    %v439 = vcvt.s32.f32 %v431
    %v440 = vcvt.s32.f32 %v432
    %v441 = vcvt.s32.f32 %v433
    %v442 = vcvt.s32.f32 %v434
    %v443 = vcvt.s32.f32 %v435
    %v444 = vcvt.s32.f32 %v436
    %v445 = vmul.f32 %v437, %v299
    %v446 = vmul.f32 %v438, %v301
    %v447 = vmul.f32 %v439, %v342
    %v448 = vmul.f32 %v440, %v344
    %v449 = vmul.f32 %v441, %v303
    %v450 = vmul.f32 %v442, %v305
    %v451 = vmul.f32 %v443, %v346
    %v452 = vmul.f32 %v444, %v348
    %v453 = vadd.f32 %v445, %v446
    %v454 = vadd.f32 %v453, %v447
    %v455 = vadd.f32 %v454, %v448
    %456 = vadd.xlane.f32.xlu0 %v455
    %v457 = vpop.xlane.xlu0 %456
    %v458 = vadd.f32 %v449, %v450
    %v459 = vadd.f32 %v458, %v451
    %v460 = vadd.f32 %v459, %v452
    %461 = vadd.xlane.f32.xlu0 %v460
    %v462 = vpop.xlane.xlu0 %461
    %vm463 = vcmp.ne.s32.totalorder %v358, 4294967196
    %vm464 = vcmp.ne.s32.totalorder %v359, 4294967196
    %v465 = vsel %vm463, 1, 0
    %v466 = vsel %vm464, 1, 0
    %v467 = vcvt.s32.f32 %v465
    %v468 = vcvt.s32.f32 %v466
    %v469 = vsub.f32 %v408, %v457
    %v470 = vsub.f32 %v409, %v462
    %v471 = vmul.f32 %v469, %v467
    %v472 = vmul.f32 %v470, %v468
    %vm473 = vcmask 7168
    %v474 = vsel %vm473, %v471, 0.0
    %v475 = vsel %vm473, %v472, 0.0
    %v476 = vadd.f32 %v474, %v475
    %v477 = vrot.slane %v476, 4
    %v478 = vadd.f32 %v476, %v477
    %v479 = vrot.slane %v478, 2
    %v480 = vadd.f32 %v478, %v479
    %v481 = vrot.slane %v480, 1
    %v482 = vadd.f32 %v480, %v481
    %v483 = vsel %vm473, %v467, 0.0
    %v484 = vsel %vm473, %v468, 0.0
    %v485 = vadd.f32 %v483, %v484
    %v486 = vrot.slane %v485, 4
    %v487 = vadd.f32 %v485, %v486
    %v488 = vrot.slane %v487, 2
    %v489 = vadd.f32 %v487, %v488
    %v490 = vrot.slane %v489, 1
    %v491 = vadd.f32 %v489, %v490
    %v492 = vrcp.pop %v491
    %v493 = vmul.f32 %v482, %v492
    %vm494 = vcmask 0
    %495 = vst.msk [vmem:[#allocation6] sm:$0x1] %vm494, %v493
    // Predicated region
    $region22: #{xiaohua_forward.5} parent=1 // pred_check
      _
    $region23: #{xiaohua_forward.5} parent=1 // pred_check_branch
      %497 = sbr.rel (0) target = $region25
    $region24: #{xiaohua_forward.5} parent=1 // pred_region
      %s499 = ssub.s32 256, 256
      %500 = vsyncadd [#allocation3], %s499
      %s501 = sshll.u32 [#allocation2], 4
      %s502 = int_to_ptr.vmem [resolvable:$true] %s501
      %507 = dma.vmem_to_hbm [thread:$0]  %s502, 256, %s5, [#allocation3], 128, 128, 8
    $region25: #{xiaohua_forward.5} parent=1 // pred_fallthru
      _
    // Predicated region
    $region26: #{xiaohua_forward.5} parent=1 // pred_check
      _
    $region27: #{xiaohua_forward.5} parent=1 // pred_check_branch
      %509 = sbr.rel (0) target = $region29
    $region28: #{xiaohua_forward.5} parent=1 // pred_region
      %s511 = ssub.s32 1024, 1024
      %512 = vsyncadd [#allocation5], %s511
      %s513 = sshll.u32 [#allocation4], 4
      %s514 = int_to_ptr.vmem [resolvable:$true] %s513
      %519 = dma.vmem_to_hbm [thread:$0]  %s514, 1024, %s6, [#allocation5], 512, 512, 32
    $region29: #{xiaohua_forward.5} parent=1 // pred_fallthru
      _
    // Predicated region
    $region30: #{xiaohua_forward.5} parent=1 // pred_check
      _
    $region31: #{xiaohua_forward.5} parent=1 // pred_check_branch
      %521 = sbr.rel (0) target = $region33
    $region32: #{xiaohua_forward.5} parent=1 // pred_region
      %s523 = ssub.s32 16, 16
      %524 = vsyncadd [#allocation5], %s523
      %s526 = sshll.u32 [#allocation6], 4
      %s527 = int_to_ptr.vmem [resolvable:$true] %s526
      %529 = dma.vmem_to_hbm [thread:$0]  %s527, 16, %s7, [#allocation5]
    $region33: #{xiaohua_forward.5} parent=1 // pred_fallthru
      _
    // Predicated region
    $region34: #{xiaohua_forward.5} parent=1 // pred_check
      _
    $region35: #{xiaohua_forward.5} parent=1 // pred_check_branch
      %531 = sbr.rel (0) target = $region37
    $region36: #{xiaohua_forward.5} parent=1 // pred_region
      %532 = dma.done [#allocation3], 256
    $region37: #{xiaohua_forward.5} parent=1 // pred_fallthru
      _
    // Predicated region
    $region38: #{xiaohua_forward.5} parent=1 // pred_check
      _
    $region39: #{xiaohua_forward.5} parent=1 // pred_check_branch
      %534 = sbr.rel (0) target = $region41
    $region40: #{xiaohua_forward.5} parent=1 // pred_region
      %535 = dma.done [#allocation5], 1024
    $region41: #{xiaohua_forward.5} parent=1 // pred_fallthru
      _
    // Predicated region
    $region42: #{xiaohua_forward.5} parent=1 // pred_check
      _
    $region43: #{xiaohua_forward.5} parent=1 // pred_check_branch
      %537 = sbr.rel (0) target = $region45
    $region44: #{xiaohua_forward.5} parent=1 // pred_region
      %538 = dma.done [#allocation5], 16
    $region45: #{xiaohua_forward.5} parent=1 // pred_fallthru
      _
    %539 = vsyncpa [#allocation3], 1
    %540 = vsyncpa [#allocation5], 1

// kernel: xiaohua_forward.4
$region0: #{xiaohua_forward.4}
  #allocation0 [shape = 'u32[]', space=smem, size = 0x4, offset = 0x4, fixed_abs, tag = 'smem constant byte address 0x4 - core index']
  #allocation1 [shape = 'u32[144,128]{1,0:T(1,128)}', space=vmem, size = 0x12000, scoped, tag = 'internal scratch']
  %s0 = inlined_call_operand.vmem [shape: f32[16,128], index: 0, kind: input, shape index: {}]
  %s1 = inlined_call_operand.vmem [shape: f32[8,128], index: 1, kind: input, shape index: {}]
  %s2 = inlined_call_operand.vmem [shape: f32[8,128], index: 2, kind: input, shape index: {}]
  %s3 = inlined_call_operand.vmem [shape: f32[1,128], index: 3, kind: input, shape index: {}]
  %s4 = inlined_call_operand.vmem [shape: f32[1,128], index: 4, kind: input, shape index: {}]
  %s5 = inlined_call_operand.vmem [shape: bf16[128,384], index: 5, kind: input, shape index: {}]
  %s6 = inlined_call_operand.vmem [shape: f32[1,384], index: 6, kind: input, shape index: {}]
  %s7 = inlined_call_operand.vmem [shape: bf16[128,128], index: 7, kind: input, shape index: {}]
  %s8 = inlined_call_operand.vmem [shape: f32[1,128], index: 8, kind: input, shape index: {}]
  %s9 = inlined_call_operand.vmem [shape: f32[1,128], index: 9, kind: input, shape index: {}]
  %s10 = inlined_call_operand.vmem [shape: f32[1,128], index: 10, kind: input, shape index: {}]
  %s11 = inlined_call_operand.vmem [shape: bf16[128,512], index: 11, kind: input, shape index: {}]
  %s12 = inlined_call_operand.vmem [shape: f32[1,512], index: 12, kind: input, shape index: {}]
  %s13 = inlined_call_operand.vmem [shape: bf16[512,128], index: 13, kind: input, shape index: {}]
  %s14 = inlined_call_operand.vmem [shape: f32[1,128], index: 14, kind: input, shape index: {}]
  %s15 = inlined_call_operand.vmem [shape: f32[16,128], index: 15, kind: output, shape index: {}]
  %s16 = sld [smem:[#allocation0]]
  $region93: #{xiaohua_forward.4} parent=0
    _
  %s18 = ssub.s32 1, %s16
  %s19 = scalar_select 0, %s18, %s16
  loop: start=0, step=1, limit=4
  $region2: #{xiaohua_forward.4} parent=0 // loop_pre_header
    _
  $region3: #{xiaohua_forward.4} parent=0 // loop_header
    %s21 = sphi 0, %s25
    %p22 = scmp.ge.s32.totalorder %s21, 4
    %s31 = sphi 0, %s33
    %s34 = sphi 0, %s31
    %s35 = sphi 0, %s34
    %s51 = sphi 0, %s35
    %s55 = sphi 0, %s55
    %s57 = sphi 0, %s55
    %s58 = sphi 0, %s57
    %s72 = sphi 0, %s58
    %s76 = sphi 0, %s76
    %s78 = sphi 0, %s76
    %s79 = sphi 0, %s78
    %s93 = sphi 0, %s79
    %s97 = sphi 0, %s97
    %s99 = sphi 0, %s97
    %s100 = sphi 0, %s99
    %s114 = sphi 0, %s100
    %s118 = sphi 0, %s118
    %s120 = sphi 0, %s118
    %s121 = sphi 0, %s120
    %s135 = sphi 0, %s121
    %s139 = sphi 0, %s139
    %s141 = sphi 0, %s139
    %s142 = sphi 0, %s141
    %s156 = sphi 0, %s142
    %s160 = sphi 0, %s160
    %s162 = sphi 0, %s160
    %s163 = sphi 0, %s162
    %s177 = sphi 0, %s163
    %s181 = sphi 0, %s181
    %s183 = sphi 0, %s181
    %s184 = sphi 0, %s183
    %s198 = sphi 0, %s184
    %s202 = sphi 0, %s202
    %s204 = sphi 0, %s202
    %s205 = sphi 0, %s204
    %s219 = sphi 0, %s205
    %s223 = sphi 0, %s223
    %s225 = sphi 0, %s223
    %s226 = sphi 0, %s225
    %s240 = sphi 0, %s226
    %s244 = sphi 0, %s244
    %s246 = sphi 0, %s244
    %s247 = sphi 0, %s246
    %s261 = sphi 0, %s247
    %s265 = sphi 0, %s265
    %s267 = sphi 0, %s265
    %s268 = sphi 0, %s267
    %s282 = sphi 0, %s268
    %s286 = sphi 0, %s286
    %s288 = sphi 0, %s286
    %s289 = sphi 0, %s288
    %s303 = sphi 0, %s289
    %s307 = sphi 0, %s307
    %s309 = sphi 0, %s307
    %s310 = sphi 0, %s309
    %s324 = sphi 0, %s310
    %s328 = sphi 0, %s328
    %s330 = sphi 0, %s328
    %s331 = sphi 0, %s330
    %s345 = sphi 0, %s331
    %s351 = sphi 0, %s353
    %s354 = sphi 0, %s351
    %s355 = sphi 0, %s354
    %s371 = sphi 0, %s355
  $region4: #{xiaohua_forward.4} parent=0 // loop_header_branch
    %24 = sbr.rel (%p22) target = $region8
  $region5: #{xiaohua_forward.4} parent=0 // loop_body
    %s26 = ssub.s32 %s21, 1
    %s27 = ssub.s32 %s21, 2
    %s28 = sadd.s32 %s21, 1
    %s29 = ssub.s32 %s21, %s28
    %p30 = scmp.eq.s32.totalorder %s29, 0
    %s32 = sadd.s32 %s31, 1
    %s33 = scalar_select %p30, %s31, %s32
    %p36 = pneg %p30
    %p37 = scmp.eq.s32.totalorder %s21, 1
    %p38 = por %p36, %p37
    %p39 = scmp.ne.s32.totalorder %s31, %s34
    %p40 = scmp.eq.s32.totalorder %s21, 0
    %p41 = por %p39, %p40
    %p42 = scmp.ne.s32.totalorder %s31, %s34
    %p43 = scmp.eq.s32.totalorder %s26, 1
    %p44 = por %p42, %p43
    %p45 = scmp.ne.s32.totalorder %s34, %s35
    %p46 = scmp.eq.s32.totalorder %s26, 0
    %p47 = por %p45, %p46
    %p48 = scmp.ne.s32.totalorder %s34, %s35
    %p49 = scmp.eq.s32.totalorder %s27, 1
    %p50 = por %p48, %p49
    %p52 = scmp.ne.s32.totalorder %s35, %s51
    %p53 = scmp.eq.s32.totalorder %s27, 0
    %p54 = por %p52, %p53
    %s56 = sadd.s32 %s55, 1
    %p59 = scmp.eq.s32.totalorder %s21, 1
    %p60 = scmp.ne.s32.totalorder %s55, %s57
    %p61 = scmp.eq.s32.totalorder %s21, 0
    %p62 = por %p60, %p61
    %p63 = scmp.ne.s32.totalorder %s55, %s57
    %p64 = scmp.eq.s32.totalorder %s26, 1
    %p65 = por %p63, %p64
    %p66 = scmp.ne.s32.totalorder %s57, %s58
    %p67 = scmp.eq.s32.totalorder %s26, 0
    %p68 = por %p66, %p67
    %p69 = scmp.ne.s32.totalorder %s57, %s58
    %p70 = scmp.eq.s32.totalorder %s27, 1
    %p71 = por %p69, %p70
    %p73 = scmp.ne.s32.totalorder %s58, %s72
    %p74 = scmp.eq.s32.totalorder %s27, 0
    %p75 = por %p73, %p74
    %s77 = sadd.s32 %s76, 1
    %p80 = scmp.eq.s32.totalorder %s21, 1
    %p81 = scmp.ne.s32.totalorder %s76, %s78
    %p82 = scmp.eq.s32.totalorder %s21, 0
    %p83 = por %p81, %p82
    %p84 = scmp.ne.s32.totalorder %s76, %s78
    %p85 = scmp.eq.s32.totalorder %s26, 1
    %p86 = por %p84, %p85
    %p87 = scmp.ne.s32.totalorder %s78, %s79
    %p88 = scmp.eq.s32.totalorder %s26, 0
    %p89 = por %p87, %p88
    %p90 = scmp.ne.s32.totalorder %s78, %s79
    %p91 = scmp.eq.s32.totalorder %s27, 1
    %p92 = por %p90, %p91
    %p94 = scmp.ne.s32.totalorder %s79, %s93
    %p95 = scmp.eq.s32.totalorder %s27, 0
    %p96 = por %p94, %p95
    %s98 = sadd.s32 %s97, 1
    %p101 = scmp.eq.s32.totalorder %s21, 1
    %p102 = scmp.ne.s32.totalorder %s97, %s99
    %p103 = scmp.eq.s32.totalorder %s21, 0
    %p104 = por %p102, %p103
    %p105 = scmp.ne.s32.totalorder %s97, %s99
    %p106 = scmp.eq.s32.totalorder %s26, 1
    %p107 = por %p105, %p106
    %p108 = scmp.ne.s32.totalorder %s99, %s100
    %p109 = scmp.eq.s32.totalorder %s26, 0
    %p110 = por %p108, %p109
    %p111 = scmp.ne.s32.totalorder %s99, %s100
    %p112 = scmp.eq.s32.totalorder %s27, 1
    %p113 = por %p111, %p112
    %p115 = scmp.ne.s32.totalorder %s100, %s114
    %p116 = scmp.eq.s32.totalorder %s27, 0
    %p117 = por %p115, %p116
    %s119 = sadd.s32 %s118, 1
    %p122 = scmp.eq.s32.totalorder %s21, 1
    %p123 = scmp.ne.s32.totalorder %s118, %s120
    %p124 = scmp.eq.s32.totalorder %s21, 0
    %p125 = por %p123, %p124
    %p126 = scmp.ne.s32.totalorder %s118, %s120
    %p127 = scmp.eq.s32.totalorder %s26, 1
    %p128 = por %p126, %p127
    %p129 = scmp.ne.s32.totalorder %s120, %s121
    %p130 = scmp.eq.s32.totalorder %s26, 0
    %p131 = por %p129, %p130
    %p132 = scmp.ne.s32.totalorder %s120, %s121
    %p133 = scmp.eq.s32.totalorder %s27, 1
    %p134 = por %p132, %p133
    %p136 = scmp.ne.s32.totalorder %s121, %s135
    %p137 = scmp.eq.s32.totalorder %s27, 0
    %p138 = por %p136, %p137
    %s140 = sadd.s32 %s139, 1
    %p143 = scmp.eq.s32.totalorder %s21, 1
    %p144 = scmp.ne.s32.totalorder %s139, %s141
    %p145 = scmp.eq.s32.totalorder %s21, 0
    %p146 = por %p144, %p145
    %p147 = scmp.ne.s32.totalorder %s139, %s141
    %p148 = scmp.eq.s32.totalorder %s26, 1
    %p149 = por %p147, %p148
    %p150 = scmp.ne.s32.totalorder %s141, %s142
    %p151 = scmp.eq.s32.totalorder %s26, 0
    %p152 = por %p150, %p151
    %p153 = scmp.ne.s32.totalorder %s141, %s142
    %p154 = scmp.eq.s32.totalorder %s27, 1
    %p155 = por %p153, %p154
    %p157 = scmp.ne.s32.totalorder %s142, %s156
    %p158 = scmp.eq.s32.totalorder %s27, 0
    %p159 = por %p157, %p158
    %s161 = sadd.s32 %s160, 1
    %p164 = scmp.eq.s32.totalorder %s21, 1
    %p165 = scmp.ne.s32.totalorder %s160, %s162
    %p166 = scmp.eq.s32.totalorder %s21, 0
    %p167 = por %p165, %p166
    %p168 = scmp.ne.s32.totalorder %s160, %s162
    %p169 = scmp.eq.s32.totalorder %s26, 1
    %p170 = por %p168, %p169
    %p171 = scmp.ne.s32.totalorder %s162, %s163
    %p172 = scmp.eq.s32.totalorder %s26, 0
    %p173 = por %p171, %p172
    %p174 = scmp.ne.s32.totalorder %s162, %s163
    %p175 = scmp.eq.s32.totalorder %s27, 1
    %p176 = por %p174, %p175
    %p178 = scmp.ne.s32.totalorder %s163, %s177
    %p179 = scmp.eq.s32.totalorder %s27, 0
    %p180 = por %p178, %p179
    %s182 = sadd.s32 %s181, 1
    %p185 = scmp.eq.s32.totalorder %s21, 1
    %p186 = scmp.ne.s32.totalorder %s181, %s183
    %p187 = scmp.eq.s32.totalorder %s21, 0
    %p188 = por %p186, %p187
    %p189 = scmp.ne.s32.totalorder %s181, %s183
    %p190 = scmp.eq.s32.totalorder %s26, 1
    %p191 = por %p189, %p190
    %p192 = scmp.ne.s32.totalorder %s183, %s184
    %p193 = scmp.eq.s32.totalorder %s26, 0
    %p194 = por %p192, %p193
    %p195 = scmp.ne.s32.totalorder %s183, %s184
    %p196 = scmp.eq.s32.totalorder %s27, 1
    %p197 = por %p195, %p196
    %p199 = scmp.ne.s32.totalorder %s184, %s198
    %p200 = scmp.eq.s32.totalorder %s27, 0
    %p201 = por %p199, %p200
    %s203 = sadd.s32 %s202, 1
    %p206 = scmp.eq.s32.totalorder %s21, 1
    %p207 = scmp.ne.s32.totalorder %s202, %s204
    %p208 = scmp.eq.s32.totalorder %s21, 0
    %p209 = por %p207, %p208
    %p210 = scmp.ne.s32.totalorder %s202, %s204
    %p211 = scmp.eq.s32.totalorder %s26, 1
    %p212 = por %p210, %p211
    %p213 = scmp.ne.s32.totalorder %s204, %s205
    %p214 = scmp.eq.s32.totalorder %s26, 0
    %p215 = por %p213, %p214
    %p216 = scmp.ne.s32.totalorder %s204, %s205
    %p217 = scmp.eq.s32.totalorder %s27, 1
    %p218 = por %p216, %p217
    %p220 = scmp.ne.s32.totalorder %s205, %s219
    %p221 = scmp.eq.s32.totalorder %s27, 0
    %p222 = por %p220, %p221
    %s224 = sadd.s32 %s223, 1
    %p227 = scmp.eq.s32.totalorder %s21, 1
    %p228 = scmp.ne.s32.totalorder %s223, %s225
    %p229 = scmp.eq.s32.totalorder %s21, 0
    %p230 = por %p228, %p229
    %p231 = scmp.ne.s32.totalorder %s223, %s225
    %p232 = scmp.eq.s32.totalorder %s26, 1
    %p233 = por %p231, %p232
    %p234 = scmp.ne.s32.totalorder %s225, %s226
    %p235 = scmp.eq.s32.totalorder %s26, 0
    %p236 = por %p234, %p235
    %p237 = scmp.ne.s32.totalorder %s225, %s226
    %p238 = scmp.eq.s32.totalorder %s27, 1
    %p239 = por %p237, %p238
    %p241 = scmp.ne.s32.totalorder %s226, %s240
    %p242 = scmp.eq.s32.totalorder %s27, 0
    %p243 = por %p241, %p242
    %s245 = sadd.s32 %s244, 1
    %p248 = scmp.eq.s32.totalorder %s21, 1
    %p249 = scmp.ne.s32.totalorder %s244, %s246
    %p250 = scmp.eq.s32.totalorder %s21, 0
    %p251 = por %p249, %p250
    %p252 = scmp.ne.s32.totalorder %s244, %s246
    %p253 = scmp.eq.s32.totalorder %s26, 1
    %p254 = por %p252, %p253
    %p255 = scmp.ne.s32.totalorder %s246, %s247
    %p256 = scmp.eq.s32.totalorder %s26, 0
    %p257 = por %p255, %p256
    %p258 = scmp.ne.s32.totalorder %s246, %s247
    %p259 = scmp.eq.s32.totalorder %s27, 1
    %p260 = por %p258, %p259
    %p262 = scmp.ne.s32.totalorder %s247, %s261
    %p263 = scmp.eq.s32.totalorder %s27, 0
    %p264 = por %p262, %p263
    %s266 = sadd.s32 %s265, 1
    %p269 = scmp.eq.s32.totalorder %s21, 1
    %p270 = scmp.ne.s32.totalorder %s265, %s267
    %p271 = scmp.eq.s32.totalorder %s21, 0
    %p272 = por %p270, %p271
    %p273 = scmp.ne.s32.totalorder %s265, %s267
    %p274 = scmp.eq.s32.totalorder %s26, 1
    %p275 = por %p273, %p274
    %p276 = scmp.ne.s32.totalorder %s267, %s268
    %p277 = scmp.eq.s32.totalorder %s26, 0
    %p278 = por %p276, %p277
    %p279 = scmp.ne.s32.totalorder %s267, %s268
    %p280 = scmp.eq.s32.totalorder %s27, 1
    %p281 = por %p279, %p280
    %p283 = scmp.ne.s32.totalorder %s268, %s282
    %p284 = scmp.eq.s32.totalorder %s27, 0
    %p285 = por %p283, %p284
    %s287 = sadd.s32 %s286, 1
    %p290 = scmp.eq.s32.totalorder %s21, 1
    %p291 = scmp.ne.s32.totalorder %s286, %s288
    %p292 = scmp.eq.s32.totalorder %s21, 0
    %p293 = por %p291, %p292
    %p294 = scmp.ne.s32.totalorder %s286, %s288
    %p295 = scmp.eq.s32.totalorder %s26, 1
    %p296 = por %p294, %p295
    %p297 = scmp.ne.s32.totalorder %s288, %s289
    %p298 = scmp.eq.s32.totalorder %s26, 0
    %p299 = por %p297, %p298
    %p300 = scmp.ne.s32.totalorder %s288, %s289
    %p301 = scmp.eq.s32.totalorder %s27, 1
    %p302 = por %p300, %p301
    %p304 = scmp.ne.s32.totalorder %s289, %s303
    %p305 = scmp.eq.s32.totalorder %s27, 0
    %p306 = por %p304, %p305
    %s308 = sadd.s32 %s307, 1
    %p311 = scmp.eq.s32.totalorder %s21, 1
    %p312 = scmp.ne.s32.totalorder %s307, %s309
    %p313 = scmp.eq.s32.totalorder %s21, 0
    %p314 = por %p312, %p313
    %p315 = scmp.ne.s32.totalorder %s307, %s309
    %p316 = scmp.eq.s32.totalorder %s26, 1
    %p317 = por %p315, %p316
    %p318 = scmp.ne.s32.totalorder %s309, %s310
    %p319 = scmp.eq.s32.totalorder %s26, 0
    %p320 = por %p318, %p319
    %p321 = scmp.ne.s32.totalorder %s309, %s310
    %p322 = scmp.eq.s32.totalorder %s27, 1
    %p323 = por %p321, %p322
    %p325 = scmp.ne.s32.totalorder %s310, %s324
    %p326 = scmp.eq.s32.totalorder %s27, 0
    %p327 = por %p325, %p326
    %s329 = sadd.s32 %s328, 1
    %p332 = scmp.eq.s32.totalorder %s21, 1
    %p333 = scmp.ne.s32.totalorder %s328, %s330
    %p334 = scmp.eq.s32.totalorder %s21, 0
    %p335 = por %p333, %p334
    %p336 = scmp.ne.s32.totalorder %s328, %s330
    %p337 = scmp.eq.s32.totalorder %s26, 1
    %p338 = por %p336, %p337
    %p339 = scmp.ne.s32.totalorder %s330, %s331
    %p340 = scmp.eq.s32.totalorder %s26, 0
    %p341 = por %p339, %p340
    %p342 = scmp.ne.s32.totalorder %s330, %s331
    %p343 = scmp.eq.s32.totalorder %s27, 1
    %p344 = por %p342, %p343
    %p346 = scmp.ne.s32.totalorder %s331, %s345
    %p347 = scmp.eq.s32.totalorder %s27, 0
    %p348 = por %p346, %p347
    %s349 = ssub.s32 %s21, %s28
    %p350 = scmp.eq.s32.totalorder %s349, 0
    %s352 = sadd.s32 %s351, 1
    %s353 = scalar_select %p350, %s351, %s352
    %p356 = pneg %p350
    %p357 = scmp.eq.s32.totalorder %s21, 1
    %p358 = por %p356, %p357
    %p359 = scmp.ne.s32.totalorder %s351, %s354
    %p360 = scmp.eq.s32.totalorder %s21, 0
    %p361 = por %p359, %p360
    %p362 = scmp.ne.s32.totalorder %s351, %s354
    %p363 = scmp.eq.s32.totalorder %s26, 1
    %p364 = por %p362, %p363
    %p365 = scmp.ne.s32.totalorder %s354, %s355
    %p366 = scmp.eq.s32.totalorder %s26, 0
    %p367 = por %p365, %p366
    %p368 = scmp.ne.s32.totalorder %s354, %s355
    %p369 = scmp.eq.s32.totalorder %s27, 1
    %p370 = por %p368, %p369
    %p372 = scmp.ne.s32.totalorder %s355, %s371
    %p373 = scmp.eq.s32.totalorder %s27, 0
    %p374 = por %p372, %p373
    %p375 = scmp.le.s32.totalorder 1, %s21
    %p376 = scmp.lt.s32.totalorder %s21, 3
    %p377 = pnand %p375, %p376
    %p378 = pneg %p377
    // Predicated region
    $region9: #{xiaohua_forward.4} parent=5 // pred_check
      _
    $region10: #{xiaohua_forward.4} parent=5 // pred_check_branch
      %380 = sbr.rel (%p377) target = $region12
    $region11: #{xiaohua_forward.4} parent=5 // pred_region
      %s381 = ssub.s32 %s21, 1
      // Predicated region
      $region13: #{xiaohua_forward.4} parent=11 // pred_check
        %p382 = pneg %p68
      $region14: #{xiaohua_forward.4} parent=11 // pred_check_branch
        %384 = sbr.rel (%p382) target = $region16
      $region15: #{xiaohua_forward.4} parent=11 // pred_region
        _
      $region16: #{xiaohua_forward.4} parent=11 // pred_fallthru
        _
      // Predicated region
      $region17: #{xiaohua_forward.4} parent=11 // pred_check
        %p385 = pneg %p89
      $region18: #{xiaohua_forward.4} parent=11 // pred_check_branch
        %387 = sbr.rel (%p385) target = $region20
      $region19: #{xiaohua_forward.4} parent=11 // pred_region
        _
      $region20: #{xiaohua_forward.4} parent=11 // pred_fallthru
        _
      // Predicated region
      $region21: #{xiaohua_forward.4} parent=11 // pred_check
        %p388 = pneg %p110
      $region22: #{xiaohua_forward.4} parent=11 // pred_check_branch
        %390 = sbr.rel (%p388) target = $region24
      $region23: #{xiaohua_forward.4} parent=11 // pred_region
        _
      $region24: #{xiaohua_forward.4} parent=11 // pred_fallthru
        _
      // Predicated region
      $region25: #{xiaohua_forward.4} parent=11 // pred_check
        %p391 = pneg %p131
      $region26: #{xiaohua_forward.4} parent=11 // pred_check_branch
        %393 = sbr.rel (%p391) target = $region28
      $region27: #{xiaohua_forward.4} parent=11 // pred_region
        _
      $region28: #{xiaohua_forward.4} parent=11 // pred_fallthru
        _
      // Predicated region
      $region29: #{xiaohua_forward.4} parent=11 // pred_check
        %p394 = pneg %p152
      $region30: #{xiaohua_forward.4} parent=11 // pred_check_branch
        %396 = sbr.rel (%p394) target = $region32
      $region31: #{xiaohua_forward.4} parent=11 // pred_region
        _
      $region32: #{xiaohua_forward.4} parent=11 // pred_fallthru
        _
      // Predicated region
      $region33: #{xiaohua_forward.4} parent=11 // pred_check
        %p397 = pneg %p173
      $region34: #{xiaohua_forward.4} parent=11 // pred_check_branch
        %399 = sbr.rel (%p397) target = $region36
      $region35: #{xiaohua_forward.4} parent=11 // pred_region
        _
      $region36: #{xiaohua_forward.4} parent=11 // pred_fallthru
        _
      // Predicated region
      $region37: #{xiaohua_forward.4} parent=11 // pred_check
        %p400 = pneg %p194
      $region38: #{xiaohua_forward.4} parent=11 // pred_check_branch
        %402 = sbr.rel (%p400) target = $region40
      $region39: #{xiaohua_forward.4} parent=11 // pred_region
        _
      $region40: #{xiaohua_forward.4} parent=11 // pred_fallthru
        _
      // Predicated region
      $region41: #{xiaohua_forward.4} parent=11 // pred_check
        %p403 = pneg %p215
      $region42: #{xiaohua_forward.4} parent=11 // pred_check_branch
        %405 = sbr.rel (%p403) target = $region44
      $region43: #{xiaohua_forward.4} parent=11 // pred_region
        _
      $region44: #{xiaohua_forward.4} parent=11 // pred_fallthru
        _
      // Predicated region
      $region45: #{xiaohua_forward.4} parent=11 // pred_check
        %p406 = pneg %p236
      $region46: #{xiaohua_forward.4} parent=11 // pred_check_branch
        %408 = sbr.rel (%p406) target = $region48
      $region47: #{xiaohua_forward.4} parent=11 // pred_region
        _
      $region48: #{xiaohua_forward.4} parent=11 // pred_fallthru
        _
      // Predicated region
      $region49: #{xiaohua_forward.4} parent=11 // pred_check
        %p409 = pneg %p257
      $region50: #{xiaohua_forward.4} parent=11 // pred_check_branch
        %411 = sbr.rel (%p409) target = $region52
      $region51: #{xiaohua_forward.4} parent=11 // pred_region
        _
      $region52: #{xiaohua_forward.4} parent=11 // pred_fallthru
        _
      // Predicated region
      $region53: #{xiaohua_forward.4} parent=11 // pred_check
        %p412 = pneg %p278
      $region54: #{xiaohua_forward.4} parent=11 // pred_check_branch
        %414 = sbr.rel (%p412) target = $region56
      $region55: #{xiaohua_forward.4} parent=11 // pred_region
        _
      $region56: #{xiaohua_forward.4} parent=11 // pred_fallthru
        _
      // Predicated region
      $region57: #{xiaohua_forward.4} parent=11 // pred_check
        %p415 = pneg %p299
      $region58: #{xiaohua_forward.4} parent=11 // pred_check_branch
        %417 = sbr.rel (%p415) target = $region60
      $region59: #{xiaohua_forward.4} parent=11 // pred_region
        _
      $region60: #{xiaohua_forward.4} parent=11 // pred_fallthru
        _
      // Predicated region
      $region61: #{xiaohua_forward.4} parent=11 // pred_check
        %p418 = pneg %p320
      $region62: #{xiaohua_forward.4} parent=11 // pred_check_branch
        %420 = sbr.rel (%p418) target = $region64
      $region63: #{xiaohua_forward.4} parent=11 // pred_region
        _
      $region64: #{xiaohua_forward.4} parent=11 // pred_fallthru
        _
      // Predicated region
      $region65: #{xiaohua_forward.4} parent=11 // pred_check
        %p421 = pneg %p341
      $region66: #{xiaohua_forward.4} parent=11 // pred_check_branch
        %423 = sbr.rel (%p421) target = $region68
      $region67: #{xiaohua_forward.4} parent=11 // pred_region
        _
      $region68: #{xiaohua_forward.4} parent=11 // pred_fallthru
        _
    $region12: #{xiaohua_forward.4} parent=5 // pred_fallthru
      _
    %p424 = scmp.lt.s32.totalorder %s21, 2
    // Predicated region
    $region69: #{xiaohua_forward.4} parent=5 // pred_check
      %p425 = pneg %p424
    $region70: #{xiaohua_forward.4} parent=5 // pred_check_branch
      %427 = sbr.rel (%p425) target = $region72
    $region71: #{xiaohua_forward.4} parent=5 // pred_region
      // Predicated region
      $region73: #{xiaohua_forward.4} parent=71 // pred_check
        %p428 = pneg %p41
      $region74: #{xiaohua_forward.4} parent=71 // pred_check_branch
        %430 = sbr.rel (%p428) target = $region76
      $region75: #{xiaohua_forward.4} parent=71 // pred_region
        %p431 = scmp.lt.s32.totalorder %s21, 1
        %s432 = scalar_select %p431, %s21, 1
        %s433 = smul.addr %s432, 8
        %s434 = scalar_lea.vmem %s0, %s433
      $region76: #{xiaohua_forward.4} parent=71 // pred_fallthru
        _
    $region72: #{xiaohua_forward.4} parent=5 // pred_fallthru
      _
    %p435 = scmp.le.s32.totalorder 1, %s21
    %p436 = scmp.lt.s32.totalorder %s21, 3
    %p437 = pnand %p435, %p436
    %p438 = pneg %p437
    // Predicated region
    $region77: #{xiaohua_forward.4} parent=5 // pred_check
      _
    $region78: #{xiaohua_forward.4} parent=5 // pred_check_branch
      %440 = sbr.rel (%p437) target = $region80
    $region79: #{xiaohua_forward.4} parent=5 // pred_region
      %s441 = ssub.s32 %s21, 1
      %p442 = scmp.lt.s32.totalorder %s26, 1
      %s443 = scalar_select %p442, %s26, 1
      %s444 = smul.addr %s443, 8
      %s445 = scalar_lea.vmem %s0, %s444
      %p446 = pneg %p47
      %p447 = pneg %p44
      %p448 = pneg %p68
      %p449 = pneg %p65
      %p450 = pneg %p89
      %p451 = pneg %p86
      %p452 = pneg %p110
      %p453 = pneg %p107
      %p454 = pneg %p131
      %p455 = pneg %p128
      %p456 = pneg %p152
      %p457 = pneg %p149
      %p458 = pneg %p173
      %p459 = pneg %p170
      %p460 = pneg %p194
      %p461 = pneg %p191
      %p462 = pneg %p215
      %p463 = pneg %p212
      %p464 = pneg %p236
      %p465 = pneg %p233
      %p466 = pneg %p257
      %p467 = pneg %p254
      %p468 = pneg %p278
      %p469 = pneg %p275
      %p470 = pneg %p299
      %p471 = pneg %p296
      %p472 = pneg %p320
      %p473 = pneg %p317
      %p474 = pneg %p341
      %p475 = pneg %p338
      %p476 = pneg %p367
      %p477 = pneg %p364
      %p478 = scmp.lt.s32.totalorder %s26, 1
      %s479 = scalar_select %p478, %s26, 1
      %s480 = smul.addr %s479, 8
      %s481 = scalar_lea.vmem %s15, %s480
      %p482 = scmp.lt.s32.totalorder %s26, 1
      %s483 = scalar_select %p482, %s26, 1
      %s484 = smul.addr %s483, 8
      %s485 = scalar_lea.vmem %s0, %s484
      %p486 = scmp.lt.s32.totalorder %s26, 1
      %s487 = scalar_select %p486, %s26, 1
      %s488 = smul.addr %s487, 8
      %s489 = scalar_lea.vmem %s15, %s488
      %v491 = vld [vmem:[%s485] sm:$0xff]
      %v492 = vld [vmem:[%s3] sm:$0x1]
      %v493 = vld [vmem:[%s4] sm:$0x1]
      %494 = vadd.xlane.f32.xlu0 %v491
      %v495 = vpop.xlane.xlu0 %494
      %v496 = vrcp.pop 128.0
      %v497 = vmul.f32 %v495, %v496
      %v498 = vsub.f32 %v491, %v497
      %v499 = vmul.f32 %v498, %v498
      %500 = vadd.xlane.f32.xlu0 %v499
      %v501 = vpop.xlane.xlu0 %500
      %v502 = vmul.f32 %v501, %v496
      %v503 = vadd.f32 %v502, 1e-05
      %v504 = vrsqrt.pop %v503
      %v505 = vmul.f32 %v498, %v504
      %v507 = vlaneseq
      %v508 = vshrl.u32 %v507, 7
      %v509 = vsub.s32 0, %v508
      %v510 = vrot.slane %v492, %v509
      %v512 = vmul.f32 %v505, %v510
      %v514 = vlaneseq
      %v515 = vshrl.u32 %v514, 7
      %v516 = vsub.s32 0, %v515
      %v517 = vrot.slane %v493, %v516
      %v519 = vadd.f32 %v512, %v517
      %v520 = vpack.c.bf16 %v519, %v519
      %v521 = vld [vmem:[%s5] sm:$0xff]
      %v522 = vld [vmem:[%s5 + $0x8] sm:$0xf]
      %v523 = vld [vmem:[%s5 + $0xc] sm:$0xff]
      %v524 = vld [vmem:[%s5 + $0x14] sm:$0xf]
      %v525 = vld [vmem:[%s5 + $0x18] sm:$0xff]
      %v526 = vld [vmem:[%s5 + $0x20] sm:$0xf]
      %v527 = vld [vmem:[%s5 + $0x24] sm:$0xff]
      %v528 = vld [vmem:[%s5 + $0x2c] sm:$0xf]
      %v529 = vld [vmem:[%s5 + $0x30] sm:$0xff]
      %v530 = vld [vmem:[%s5 + $0x38] sm:$0xf]
      %v531 = vld [vmem:[%s5 + $0x3c] sm:$0xff]
      %v532 = vld [vmem:[%s5 + $0x44] sm:$0xf]
      %v533 = vld [vmem:[%s5 + $0x48] sm:$0xff]
      %v534 = vld [vmem:[%s5 + $0x50] sm:$0xf]
      %v535 = vld [vmem:[%s5 + $0x54] sm:$0xff]
      %v536 = vld [vmem:[%s5 + $0x5c] sm:$0xf]
      %v537 = vld [vmem:[%s5 + $0x60] sm:$0xff]
      %v538 = vld [vmem:[%s5 + $0x68] sm:$0xf]
      %v539 = vld [vmem:[%s5 + $0x6c] sm:$0xff]
      %v540 = vld [vmem:[%s5 + $0x74] sm:$0xf]
      %v541 = vld [vmem:[%s5 + $0x78] sm:$0xff]
      %v542 = vld [vmem:[%s5 + $0x80] sm:$0xf]
      %v543 = vld [vmem:[%s5 + $0x84] sm:$0xff]
      %v544 = vld [vmem:[%s5 + $0x8c] sm:$0xf]
      %v545 = vld [vmem:[%s5 + $0x90] sm:$0xff]
      %v546 = vld [vmem:[%s5 + $0x98] sm:$0xf]
      %v547 = vld [vmem:[%s5 + $0x9c] sm:$0xff]
      %v548 = vld [vmem:[%s5 + $0xa4] sm:$0xf]
      %v549 = vld [vmem:[%s5 + $0xa8] sm:$0xff]
      %v550 = vld [vmem:[%s5 + $0xb0] sm:$0xf]
      %v551 = vld [vmem:[%s5 + $0xb4] sm:$0xff]
      %v552 = vld [vmem:[%s5 + $0xbc] sm:$0xf]
      %v553 = vld [vmem:[%s6] sm:$0x7]
      %v555 = vlaneseq
      %v556 = vshrl.u32 %v555, 7
      %v557 = vsub.s32 0, %v556
      %v558 = vrot.slane %v553, %v557
      %v559 = vlaneseq
      %v560 = vshrl.u32 %v559, 7
      %v561 = vsub.s32 1, %v560
      %v562 = vrot.slane %v553, %v561
      %v563 = vlaneseq
      %v564 = vshrl.u32 %v563, 7
      %v565 = vsub.s32 2, %v564
      %v566 = vrot.slane %v553, %v565
      %v602 = vunpack.c.l.b16 %v521
      %v603 = vunpack.c.h.b16 %v521
      %v604 = vunpack.c.l.b16 %v522
      %v605 = vunpack.c.l.b16 %v523
      %v606 = vunpack.c.h.b16 %v523
      %v607 = vunpack.c.l.b16 %v524
      %v608 = vunpack.c.l.b16 %v525
      %v609 = vunpack.c.h.b16 %v525
      %v610 = vunpack.c.l.b16 %v526
      %v611 = vunpack.c.l.b16 %v527
      %v612 = vunpack.c.h.b16 %v527
      %v613 = vunpack.c.l.b16 %v528
      %v614 = vunpack.c.l.b16 %v529
      %v615 = vunpack.c.h.b16 %v529
      %v616 = vunpack.c.l.b16 %v530
      %v617 = vunpack.c.l.b16 %v531
      %v618 = vunpack.c.h.b16 %v531
      %v619 = vunpack.c.l.b16 %v532
      %v620 = vunpack.c.l.b16 %v533
      %v621 = vunpack.c.h.b16 %v533
      %v622 = vunpack.c.l.b16 %v534
      %v623 = vunpack.c.l.b16 %v535
      %v624 = vunpack.c.h.b16 %v535
      %v625 = vunpack.c.l.b16 %v536
      %v626 = vunpack.c.l.b16 %v537
      %v627 = vunpack.c.h.b16 %v537
      %v628 = vunpack.c.l.b16 %v538
      %v629 = vunpack.c.l.b16 %v539
      %v630 = vunpack.c.h.b16 %v539
      %v631 = vunpack.c.l.b16 %v540
      %v632 = vunpack.c.l.b16 %v541
      %v633 = vunpack.c.h.b16 %v541
      %v634 = vunpack.c.l.b16 %v542
      %v635 = vunpack.c.l.b16 %v543
      %v636 = vunpack.c.h.b16 %v543
      %v637 = vunpack.c.l.b16 %v544
      %v638 = vunpack.c.l.b16 %v545
      %v639 = vunpack.c.h.b16 %v545
      %v640 = vunpack.c.l.b16 %v546
      %v641 = vunpack.c.l.b16 %v547
      %v642 = vunpack.c.h.b16 %v547
      %v643 = vunpack.c.l.b16 %v548
      %v644 = vunpack.c.l.b16 %v549
      %v645 = vunpack.c.h.b16 %v549
      %v646 = vunpack.c.l.b16 %v550
      %v647 = vunpack.c.l.b16 %v551
      %v648 = vunpack.c.h.b16 %v551
      %v649 = vunpack.c.l.b16 %v552
      %v650 = vpack.c.b16 %v605, %v602
      %v651 = vpack.c.b16 %v606, %v603
      %v652 = vpack.c.b16 %v607, %v604
      %v653 = vpack.c.b16 %v611, %v608
      %v654 = vpack.c.b16 %v612, %v609
      %v655 = vpack.c.b16 %v613, %v610
      %v656 = vpack.c.b16 %v617, %v614
      %v657 = vpack.c.b16 %v618, %v615
      %v658 = vpack.c.b16 %v619, %v616
      %v659 = vpack.c.b16 %v623, %v620
      %v660 = vpack.c.b16 %v624, %v621
      %v661 = vpack.c.b16 %v625, %v622
      %v662 = vpack.c.b16 %v629, %v626
      %v663 = vpack.c.b16 %v630, %v627
      %v664 = vpack.c.b16 %v631, %v628
      %v665 = vpack.c.b16 %v635, %v632
      %v666 = vpack.c.b16 %v636, %v633
      %v667 = vpack.c.b16 %v637, %v634
      %v668 = vpack.c.b16 %v641, %v638
      %v669 = vpack.c.b16 %v642, %v639
      %v670 = vpack.c.b16 %v643, %v640
      %v671 = vpack.c.b16 %v647, %v644
      %v672 = vpack.c.b16 %v648, %v645
      %v673 = vpack.c.b16 %v649, %v646
      %698 = vmatprep.subr.bf16.mxu0 %v672
      %699 = vmatpush1.bf16.msra.mxu0 %v671
      %700 = vmatprep.subr.bf16.mxu0 %v669
      %701 = vmatpush1.bf16.msra.mxu0 %v668
      %702 = vmatprep.subr.bf16.mxu0 %v666
      %703 = vmatpush1.bf16.msra.mxu0 %v665
      %704 = vmatprep.subr.bf16.mxu0 %v663
      %705 = vmatpush1.bf16.msra.mxu0 %v662
      %706 = vmatprep.subr.bf16.mxu0 %v660
      %707 = vmatpush1.bf16.msra.mxu0 %v659
      %708 = vmatprep.subr.bf16.mxu0 %v657
      %709 = vmatpush1.bf16.msra.mxu0 %v656
      %710 = vmatprep.subr.bf16.mxu0 %v654
      %711 = vmatpush1.bf16.msra.mxu0 %v653
      %712 = vmatprep.subr.bf16.mxu0 %v651
      %713 = vmatpush1.bf16.msra.mxu0 %v650
      %714 = vmatprep.subr.bf16.mxu0 0
      %715 = vmatpush2.bf16.msra.mxu0 0
      %716 = vmatprep.subr.bf16.mxu0 0
      %717 = vmatpush2.bf16.msra.mxu0 0
      %718 = vmatprep.subr.bf16.mxu0 0
      %719 = vmatpush2.bf16.msra.mxu0 0
      %720 = vmatprep.subr.bf16.mxu0 0
      %721 = vmatpush2.bf16.msra.mxu0 0
      %722 = vmatprep.subr.bf16.mxu0 0
      %723 = vmatpush2.bf16.msra.mxu0 0
      %724 = vmatprep.subr.bf16.mxu0 0
      %725 = vmatpush2.bf16.msra.mxu0 0
      %726 = vmatprep.subr.bf16.mxu0 0
      %727 = vmatpush2.bf16.msra.mxu0 0
      %728 = vmatprep.subr.bf16.mxu0 0
      %729 = vmatpush2.bf16.msra.mxu0 0
      %730 = vmatprep.mubr.bf16.mxu0 0
      %731 = vmatmul.mubr.bf16.gmra.mxu0 %v520
      %v732 = vpop.f32.mrf.mxu0
      %v733 = vadd.f32 %v558, %v732
      %v734 = vpop.f32.mrf.mxu0
      %v735 = vadd.f32 %v562, %v734
      %v736 = vpop.f32.mrf.mxu0
      %v737 = vpop.f32.mrf.mxu0
      %738 = vdwg.mxu0
      %739 = vmatprep.subr.bf16.mxu0 0
      %740 = vmatpush1.bf16.msra.mxu0 %v673
      %741 = vmatprep.subr.bf16.mxu0 0
      %742 = vmatpush1.bf16.msra.mxu0 %v670
      %743 = vmatprep.subr.bf16.mxu0 0
      %744 = vmatpush1.bf16.msra.mxu0 %v667
      %745 = vmatprep.subr.bf16.mxu0 0
      %746 = vmatpush1.bf16.msra.mxu0 %v664
      %747 = vmatprep.subr.bf16.mxu0 0
      %748 = vmatpush1.bf16.msra.mxu0 %v661
      %749 = vmatprep.subr.bf16.mxu0 0
      %750 = vmatpush1.bf16.msra.mxu0 %v658
      %751 = vmatprep.subr.bf16.mxu0 0
      %752 = vmatpush1.bf16.msra.mxu0 %v655
      %753 = vmatprep.subr.bf16.mxu0 0
      %754 = vmatpush1.bf16.msra.mxu0 %v652
      %755 = vmatprep.subr.bf16.mxu0 0
      %756 = vmatpush2.bf16.msra.mxu0 0
      %757 = vmatprep.subr.bf16.mxu0 0
      %758 = vmatpush2.bf16.msra.mxu0 0
      %759 = vmatprep.subr.bf16.mxu0 0
      %760 = vmatpush2.bf16.msra.mxu0 0
      %761 = vmatprep.subr.bf16.mxu0 0
      %762 = vmatpush2.bf16.msra.mxu0 0
      %763 = vmatprep.subr.bf16.mxu0 0
      %764 = vmatpush2.bf16.msra.mxu0 0
      %765 = vmatprep.subr.bf16.mxu0 0
      %766 = vmatpush2.bf16.msra.mxu0 0
      %767 = vmatprep.subr.bf16.mxu0 0
      %768 = vmatpush2.bf16.msra.mxu0 0
      %769 = vmatprep.subr.bf16.mxu0 0
      %770 = vmatpush2.bf16.msra.mxu0 0
      %771 = vmatprep.mubr.bf16.mxu0 0
      %772 = vmatmul.mubr.bf16.gmra.mxu0 %v520
      %v773 = vpop.f32.mrf.mxu0
      %v774 = vadd.f32 %v566, %v773
      %v775 = vpop.f32.mrf.mxu0
      %v776 = vpop.f32.mrf.mxu0
      %v777 = vpop.f32.mrf.mxu0
      %778 = vdwg.mxu0
      %v779 = vld [vmem:[%s1] sm:$0xff]
      %v780 = vld [vmem:[%s2] sm:$0xff]
      %v781 = vmul.f32 %v733, %v779
      %v782 = vsub.f32 0.0, %v733
      %784 = vrot.lane.b32.xlu0 %v782, 120
      %v785 = vpop.permute.xlu0 %784
      %788 = vrot.lane.b32.xlu0 %v733, 8
      %v789 = vpop.permute.xlu0 %788
      %vm791 = vcmask 64512
      %v792 = vsel %vm791, %v785, %v789
      %vm793 = vcmask 130048
      %v794 = vsel %vm793, %v792, %v733
      %vm795 = vcmask 261120
      %v796 = vsel %vm795, %v794, %v785
      %vm797 = vcmask 326656
      %v798 = vsel %vm797, %v796, %v789
      %vm799 = vcmask 392192
      %v800 = vsel %vm799, %v798, %v733
      %vm801 = vcmask 523264
      %v802 = vsel %vm801, %v800, %v785
      %vm803 = vcmask 588800
      %v804 = vsel %vm803, %v802, %v789
      %vm805 = vcmask 654336
      %v806 = vsel %vm805, %v804, %v733
      %vm807 = vcmask 785408
      %v808 = vsel %vm807, %v806, %v785
      %vm809 = vcmask 850944
      %v810 = vsel %vm809, %v808, %v789
      %vm811 = vcmask 916480
      %v812 = vsel %vm811, %v810, %v733
      %v813 = vmul.f32 %v812, %v780
      %v814 = vadd.f32 %v781, %v813
      %v815 = vmul.f32 %v735, %v779
      %v816 = vsub.f32 0.0, %v735
      %818 = vrot.lane.b32.xlu0 %v816, 120
      %v819 = vpop.permute.xlu0 %818
      %822 = vrot.lane.b32.xlu0 %v735, 8
      %v823 = vpop.permute.xlu0 %822
      %v825 = vsel %vm791, %v819, %v823
      %v826 = vsel %vm793, %v825, %v735
      %v827 = vsel %vm795, %v826, %v819
      %v828 = vsel %vm797, %v827, %v823
      %v829 = vsel %vm799, %v828, %v735
      %v830 = vsel %vm801, %v829, %v819
      %v831 = vsel %vm803, %v830, %v823
      %v832 = vsel %vm805, %v831, %v735
      %v833 = vsel %vm807, %v832, %v819
      %v834 = vsel %vm809, %v833, %v823
      %v835 = vsel %vm811, %v834, %v735
      %v836 = vmul.f32 %v835, %v780
      %v837 = vadd.f32 %v815, %v836
      %v838 = vlaneseq
      %v839 = vshrl.u32 %v838, 7
      %v840 = vlaneseq
      %v841 = vand.u32 %v840, 127
      %vm842 = vcmp.le.s32.totalorder %v841, %v839
      %v843 = vmul.f32 %v814, 0.088388346
      %v844 = vpack.c.bf16 %v843, %v843
      %v845 = vpack.c.bf16 %v837, %v837
      %v846 = vpack.c.bf16 %v774, %v774
      %v848 = vsel %vm795, %v844, 0
      %v851 = vsel %vm795, %v845, 0
      %853 = vmatprep.subr.bf16.mxu0 0
      %854 = vmatpush1.bf16.xpose.msra.mxu0 0
      %855 = vmatprep.subr.bf16.mxu0 0
      %856 = vmatpush1.bf16.xpose.msra.mxu0 0
      %857 = vmatprep.subr.bf16.mxu0 0
      %858 = vmatpush1.bf16.xpose.msra.mxu0 0
      %859 = vmatprep.subr.bf16.mxu0 0
      %860 = vmatpush1.bf16.xpose.msra.mxu0 0
      %861 = vmatprep.subr.bf16.mxu0 0
      %862 = vmatpush1.bf16.xpose.msra.mxu0 0
      %863 = vmatprep.subr.bf16.mxu0 0
      %864 = vmatpush1.bf16.xpose.msra.mxu0 0
      %865 = vmatprep.subr.bf16.mxu0 0
      %866 = vmatpush1.bf16.xpose.msra.mxu0 0
      %867 = vmatprep.subr.bf16.mxu0 0
      %868 = vmatpush1.bf16.xpose.msra.mxu0 %v851
      %869 = vmatprep.subr.bf16.mxu0 0
      %870 = vmatpush2.bf16.xpose.msra.mxu0 0
      %871 = vmatprep.subr.bf16.mxu0 0
      %872 = vmatpush2.bf16.xpose.msra.mxu0 0
      %873 = vmatprep.subr.bf16.mxu0 0
      %874 = vmatpush2.bf16.xpose.msra.mxu0 0
      %875 = vmatprep.subr.bf16.mxu0 0
      %876 = vmatpush2.bf16.xpose.msra.mxu0 0
      %877 = vmatprep.subr.bf16.mxu0 0
      %878 = vmatpush2.bf16.xpose.msra.mxu0 0
      %879 = vmatprep.subr.bf16.mxu0 0
      %880 = vmatpush2.bf16.xpose.msra.mxu0 0
      %881 = vmatprep.subr.bf16.mxu0 0
      %882 = vmatpush2.bf16.xpose.msra.mxu0 0
      %883 = vmatprep.subr.bf16.mxu0 0
      %884 = vmatpush2.bf16.xpose.msra.mxu0 0
      %885 = vmatprep.mubr.bf16.mxu0 0
      %886 = vmatmul.mubr.bf16.gmra.mxu0 %v848
      %v887 = vpop.f32.mrf.mxu0
      %v888 = vadd.f32 0.0, %v887
      %v889 = vpop.f32.mrf.mxu0
      %v890 = vpop.f32.mrf.mxu0
      %v891 = vpop.f32.mrf.mxu0
      %892 = vdwg.mxu0
      %v893 = vmul.f32 %v888, 2.0
      %v894 = vsel %vm842, %v893, -1e+30
      %v895 = vsel %vm791, %v894, -inf
      %896 = vmax.xlane.f32.xlu0 %v895
      %v897 = vpop.xlane.xlu0 %896
      %v898 = vsub.f32 %v894, %v897
      %v899 = vmul.f32 %v898, 1.442695
      %v900 = vpow.pop %v899
      %v901 = vsel %vm791, %v900, 0.0
      %902 = vadd.xlane.f32.xlu0 %v901
      %v903 = vpop.xlane.xlu0 %902
      %v904 = vrcp.pop %v903
      %v905 = vmul.f32 %v900, %v904
      %v906 = vpack.c.bf16 %v905, %v905
      %v908 = vsel %vm791, %v906, 0
      %vm910 = vcmask 1043456
      %v912 = vsel %vm910, %v846, 0
      %914 = vmatprep.subr.bf16.mxu0 0
      %915 = vmatpush1.bf16.msra.mxu0 0
      %916 = vmatprep.subr.bf16.mxu0 0
      %917 = vmatpush1.bf16.msra.mxu0 0
      %918 = vmatprep.subr.bf16.mxu0 0
      %919 = vmatpush1.bf16.msra.mxu0 0
      %920 = vmatprep.subr.bf16.mxu0 0
      %921 = vmatpush1.bf16.msra.mxu0 0
      %922 = vmatprep.subr.bf16.mxu0 0
      %923 = vmatpush1.bf16.msra.mxu0 0
      %924 = vmatprep.subr.bf16.mxu0 0
      %925 = vmatpush1.bf16.msra.mxu0 0
      %926 = vmatprep.subr.bf16.mxu0 0
      %927 = vmatpush1.bf16.msra.mxu0 0
      %928 = vmatprep.subr.bf16.mxu0 0
      %929 = vmatpush1.bf16.msra.mxu0 %v912
      %930 = vmatprep.subr.bf16.mxu0 0
      %931 = vmatpush2.bf16.msra.mxu0 0
      %932 = vmatprep.subr.bf16.mxu0 0
      %933 = vmatpush2.bf16.msra.mxu0 0
      %934 = vmatprep.subr.bf16.mxu0 0
      %935 = vmatpush2.bf16.msra.mxu0 0
      %936 = vmatprep.subr.bf16.mxu0 0
      %937 = vmatpush2.bf16.msra.mxu0 0
      %938 = vmatprep.subr.bf16.mxu0 0
      %939 = vmatpush2.bf16.msra.mxu0 0
      %940 = vmatprep.subr.bf16.mxu0 0
      %941 = vmatpush2.bf16.msra.mxu0 0
      %942 = vmatprep.subr.bf16.mxu0 0
      %943 = vmatpush2.bf16.msra.mxu0 0
      %944 = vmatprep.subr.bf16.mxu0 0
      %945 = vmatpush2.bf16.msra.mxu0 0
      %946 = vmatprep.mubr.bf16.mxu0 0
      %947 = vmatmul.mubr.bf16.gmra.mxu0 %v908
      %v948 = vpop.f32.mrf.mxu0
      %v949 = vadd.f32 0.0, %v948
      %v950 = vpop.f32.mrf.mxu0
      %v951 = vpop.f32.mrf.mxu0
      %v952 = vpop.f32.mrf.mxu0
      %953 = vdwg.mxu0
      %955 = vrot.lane.b32.xlu0 %v844, 96
      %v956 = vpop.permute.xlu0 %955
      %958 = vrot.lane.b32.xlu0 %v845, 96
      %v959 = vpop.permute.xlu0 %958
      %v961 = vsel %vm795, %v956, 0
      %v964 = vsel %vm795, %v959, 0
      %966 = vmatprep.subr.bf16.mxu0 0
      %967 = vmatpush1.bf16.xpose.msra.mxu0 0
      %968 = vmatprep.subr.bf16.mxu0 0
      %969 = vmatpush1.bf16.xpose.msra.mxu0 0
      %970 = vmatprep.subr.bf16.mxu0 0
      %971 = vmatpush1.bf16.xpose.msra.mxu0 0
      %972 = vmatprep.subr.bf16.mxu0 0
      %973 = vmatpush1.bf16.xpose.msra.mxu0 0
      %974 = vmatprep.subr.bf16.mxu0 0
      %975 = vmatpush1.bf16.xpose.msra.mxu0 0
      %976 = vmatprep.subr.bf16.mxu0 0
      %977 = vmatpush1.bf16.xpose.msra.mxu0 0
      %978 = vmatprep.subr.bf16.mxu0 0
      %979 = vmatpush1.bf16.xpose.msra.mxu0 0
      %980 = vmatprep.subr.bf16.mxu0 0
      %981 = vmatpush1.bf16.xpose.msra.mxu0 %v964
      %982 = vmatprep.subr.bf16.mxu0 0
      %983 = vmatpush2.bf16.xpose.msra.mxu0 0
      %984 = vmatprep.subr.bf16.mxu0 0
      %985 = vmatpush2.bf16.xpose.msra.mxu0 0
      %986 = vmatprep.subr.bf16.mxu0 0
      %987 = vmatpush2.bf16.xpose.msra.mxu0 0
      %988 = vmatprep.subr.bf16.mxu0 0
      %989 = vmatpush2.bf16.xpose.msra.mxu0 0
      %990 = vmatprep.subr.bf16.mxu0 0
      %991 = vmatpush2.bf16.xpose.msra.mxu0 0
      %992 = vmatprep.subr.bf16.mxu0 0
      %993 = vmatpush2.bf16.xpose.msra.mxu0 0
      %994 = vmatprep.subr.bf16.mxu0 0
      %995 = vmatpush2.bf16.xpose.msra.mxu0 0
      %996 = vmatprep.subr.bf16.mxu0 0
      %997 = vmatpush2.bf16.xpose.msra.mxu0 0
      %998 = vmatprep.mubr.bf16.mxu0 0
      %999 = vmatmul.mubr.bf16.gmra.mxu0 %v961
      %v1000 = vpop.f32.mrf.mxu0
      %v1001 = vadd.f32 0.0, %v1000
      %v1002 = vpop.f32.mrf.mxu0
      %v1003 = vpop.f32.mrf.mxu0
      %v1004 = vpop.f32.mrf.mxu0
      %1005 = vdwg.mxu0
      %v1006 = vmul.f32 %v1001, 2.0
      %v1007 = vsel %vm842, %v1006, -1e+30
      %v1008 = vsel %vm791, %v1007, -inf
      %1009 = vmax.xlane.f32.xlu0 %v1008
      %v1010 = vpop.xlane.xlu0 %1009
      %v1011 = vsub.f32 %v1007, %v1010
      %v1012 = vmul.f32 %v1011, 1.442695
      %v1013 = vpow.pop %v1012
      %v1014 = vsel %vm791, %v1013, 0.0
      %1015 = vadd.xlane.f32.xlu0 %v1014
      %v1016 = vpop.xlane.xlu0 %1015
      %v1017 = vrcp.pop %v1016
      %v1018 = vmul.f32 %v1013, %v1017
      %v1019 = vpack.c.bf16 %v1018, %v1018
      %1021 = vrot.lane.b32.xlu0 %v846, 96
      %v1022 = vpop.permute.xlu0 %1021
      %v1024 = vsel %vm791, %v1019, 0
      %v1027 = vsel %vm910, %v1022, 0
      %1029 = vmatprep.subr.bf16.mxu0 0
      %1030 = vmatpush1.bf16.msra.mxu0 0
      %1031 = vmatprep.subr.bf16.mxu0 0
      %1032 = vmatpush1.bf16.msra.mxu0 0
      %1033 = vmatprep.subr.bf16.mxu0 0
      %1034 = vmatpush1.bf16.msra.mxu0 0
      %1035 = vmatprep.subr.bf16.mxu0 0
      %1036 = vmatpush1.bf16.msra.mxu0 0
      %1037 = vmatprep.subr.bf16.mxu0 0
      %1038 = vmatpush1.bf16.msra.mxu0 0
      %1039 = vmatprep.subr.bf16.mxu0 0
      %1040 = vmatpush1.bf16.msra.mxu0 0
      %1041 = vmatprep.subr.bf16.mxu0 0
      %1042 = vmatpush1.bf16.msra.mxu0 0
      %1043 = vmatprep.subr.bf16.mxu0 0
      %1044 = vmatpush1.bf16.msra.mxu0 %v1027
      %1045 = vmatprep.subr.bf16.mxu0 0
      %1046 = vmatpush2.bf16.msra.mxu0 0
      %1047 = vmatprep.subr.bf16.mxu0 0
      %1048 = vmatpush2.bf16.msra.mxu0 0
      %1049 = vmatprep.subr.bf16.mxu0 0
      %1050 = vmatpush2.bf16.msra.mxu0 0
      %1051 = vmatprep.subr.bf16.mxu0 0
      %1052 = vmatpush2.bf16.msra.mxu0 0
      %1053 = vmatprep.subr.bf16.mxu0 0
      %1054 = vmatpush2.bf16.msra.mxu0 0
      %1055 = vmatprep.subr.bf16.mxu0 0
      %1056 = vmatpush2.bf16.msra.mxu0 0
      %1057 = vmatprep.subr.bf16.mxu0 0
      %1058 = vmatpush2.bf16.msra.mxu0 0
      %1059 = vmatprep.subr.bf16.mxu0 0
      %1060 = vmatpush2.bf16.msra.mxu0 0
      %1061 = vmatprep.mubr.bf16.mxu0 0
      %1062 = vmatmul.mubr.bf16.gmra.mxu0 %v1024
      %v1063 = vpop.f32.mrf.mxu0
      %v1064 = vadd.f32 0.0, %v1063
      %v1065 = vpop.f32.mrf.mxu0
      %v1066 = vpop.f32.mrf.mxu0
      %v1067 = vpop.f32.mrf.mxu0
      %1068 = vdwg.mxu0
      %1069 = vrot.lane.b32.xlu0 %v844, 64
      %v1070 = vpop.permute.xlu0 %1069
      %1071 = vrot.lane.b32.xlu0 %v845, 64
      %v1072 = vpop.permute.xlu0 %1071
      %v1074 = vsel %vm795, %v1070, 0
      %v1077 = vsel %vm795, %v1072, 0
      %1079 = vmatprep.subr.bf16.mxu0 0
      %1080 = vmatpush1.bf16.xpose.msra.mxu0 0
      %1081 = vmatprep.subr.bf16.mxu0 0
      %1082 = vmatpush1.bf16.xpose.msra.mxu0 0
      %1083 = vmatprep.subr.bf16.mxu0 0
      %1084 = vmatpush1.bf16.xpose.msra.mxu0 0
      %1085 = vmatprep.subr.bf16.mxu0 0
      %1086 = vmatpush1.bf16.xpose.msra.mxu0 0
      %1087 = vmatprep.subr.bf16.mxu0 0
      %1088 = vmatpush1.bf16.xpose.msra.mxu0 0
      %1089 = vmatprep.subr.bf16.mxu0 0
      %1090 = vmatpush1.bf16.xpose.msra.mxu0 0
      %1091 = vmatprep.subr.bf16.mxu0 0
      %1092 = vmatpush1.bf16.xpose.msra.mxu0 0
      %1093 = vmatprep.subr.bf16.mxu0 0
      %1094 = vmatpush1.bf16.xpose.msra.mxu0 %v1077
      %1095 = vmatprep.subr.bf16.mxu0 0
      %1096 = vmatpush2.bf16.xpose.msra.mxu0 0
      %1097 = vmatprep.subr.bf16.mxu0 0
      %1098 = vmatpush2.bf16.xpose.msra.mxu0 0
      %1099 = vmatprep.subr.bf16.mxu0 0
      %1100 = vmatpush2.bf16.xpose.msra.mxu0 0
      %1101 = vmatprep.subr.bf16.mxu0 0
      %1102 = vmatpush2.bf16.xpose.msra.mxu0 0
      %1103 = vmatprep.subr.bf16.mxu0 0
      %1104 = vmatpush2.bf16.xpose.msra.mxu0 0
      %1105 = vmatprep.subr.bf16.mxu0 0
      %1106 = vmatpush2.bf16.xpose.msra.mxu0 0
      %1107 = vmatprep.subr.bf16.mxu0 0
      %1108 = vmatpush2.bf16.xpose.msra.mxu0 0
      %1109 = vmatprep.subr.bf16.mxu0 0
      %1110 = vmatpush2.bf16.xpose.msra.mxu0 0
      %1111 = vmatprep.mubr.bf16.mxu0 0
      %1112 = vmatmul.mubr.bf16.gmra.mxu0 %v1074
      %v1113 = vpop.f32.mrf.mxu0
      %v1114 = vadd.f32 0.0, %v1113
      %v1115 = vpop.f32.mrf.mxu0
      %v1116 = vpop.f32.mrf.mxu0
      %v1117 = vpop.f32.mrf.mxu0
      %1118 = vdwg.mxu0
      %v1119 = vmul.f32 %v1114, 2.0
      %v1120 = vsel %vm842, %v1119, -1e+30
      %v1121 = vsel %vm791, %v1120, -inf
      %1122 = vmax.xlane.f32.xlu0 %v1121
      %v1123 = vpop.xlane.xlu0 %1122
      %v1124 = vsub.f32 %v1120, %v1123
      %v1125 = vmul.f32 %v1124, 1.442695
      %v1126 = vpow.pop %v1125
      %v1127 = vsel %vm791, %v1126, 0.0
      %1128 = vadd.xlane.f32.xlu0 %v1127
      %v1129 = vpop.xlane.xlu0 %1128
      %v1130 = vrcp.pop %v1129
      %v1131 = vmul.f32 %v1126, %v1130
      %v1132 = vpack.c.bf16 %v1131, %v1131
      %1133 = vrot.lane.b32.xlu0 %v846, 64
      %v1134 = vpop.permute.xlu0 %1133
      %v1136 = vsel %vm791, %v1132, 0
      %v1139 = vsel %vm910, %v1134, 0
      %1141 = vmatprep.subr.bf16.mxu0 0
      %1142 = vmatpush1.bf16.msra.mxu0 0
      %1143 = vmatprep.subr.bf16.mxu0 0
      %1144 = vmatpush1.bf16.msra.mxu0 0
      %1145 = vmatprep.subr.bf16.mxu0 0
      %1146 = vmatpush1.bf16.msra.mxu0 0
      %1147 = vmatprep.subr.bf16.mxu0 0
      %1148 = vmatpush1.bf16.msra.mxu0 0
      %1149 = vmatprep.subr.bf16.mxu0 0
      %1150 = vmatpush1.bf16.msra.mxu0 0
      %1151 = vmatprep.subr.bf16.mxu0 0
      %1152 = vmatpush1.bf16.msra.mxu0 0
      %1153 = vmatprep.subr.bf16.mxu0 0
      %1154 = vmatpush1.bf16.msra.mxu0 0
      %1155 = vmatprep.subr.bf16.mxu0 0
      %1156 = vmatpush1.bf16.msra.mxu0 %v1139
      %1157 = vmatprep.subr.bf16.mxu0 0
      %1158 = vmatpush2.bf16.msra.mxu0 0
      %1159 = vmatprep.subr.bf16.mxu0 0
      %1160 = vmatpush2.bf16.msra.mxu0 0
      %1161 = vmatprep.subr.bf16.mxu0 0
      %1162 = vmatpush2.bf16.msra.mxu0 0
      %1163 = vmatprep.subr.bf16.mxu0 0
      %1164 = vmatpush2.bf16.msra.mxu0 0
      %1165 = vmatprep.subr.bf16.mxu0 0
      %1166 = vmatpush2.bf16.msra.mxu0 0
      %1167 = vmatprep.subr.bf16.mxu0 0
      %1168 = vmatpush2.bf16.msra.mxu0 0
      %1169 = vmatprep.subr.bf16.mxu0 0
      %1170 = vmatpush2.bf16.msra.mxu0 0
      %1171 = vmatprep.subr.bf16.mxu0 0
      %1172 = vmatpush2.bf16.msra.mxu0 0
      %1173 = vmatprep.mubr.bf16.mxu0 0
      %1174 = vmatmul.mubr.bf16.gmra.mxu0 %v1136
      %v1175 = vpop.f32.mrf.mxu0
      %v1176 = vadd.f32 0.0, %v1175
      %v1177 = vpop.f32.mrf.mxu0
      %v1178 = vpop.f32.mrf.mxu0
      %v1179 = vpop.f32.mrf.mxu0
      %1180 = vdwg.mxu0
      %1181 = vrot.lane.b32.xlu0 %v844, 32
      %v1182 = vpop.permute.xlu0 %1181
      %1183 = vrot.lane.b32.xlu0 %v845, 32
      %v1184 = vpop.permute.xlu0 %1183
      %v1186 = vsel %vm795, %v1182, 0
      %v1189 = vsel %vm795, %v1184, 0
      %1191 = vmatprep.subr.bf16.mxu0 0
      %1192 = vmatpush1.bf16.xpose.msra.mxu0 0
      %1193 = vmatprep.subr.bf16.mxu0 0
      %1194 = vmatpush1.bf16.xpose.msra.mxu0 0
      %1195 = vmatprep.subr.bf16.mxu0 0
      %1196 = vmatpush1.bf16.xpose.msra.mxu0 0
      %1197 = vmatprep.subr.bf16.mxu0 0
      %1198 = vmatpush1.bf16.xpose.msra.mxu0 0
      %1199 = vmatprep.subr.bf16.mxu0 0
      %1200 = vmatpush1.bf16.xpose.msra.mxu0 0
      %1201 = vmatprep.subr.bf16.mxu0 0
      %1202 = vmatpush1.bf16.xpose.msra.mxu0 0
      %1203 = vmatprep.subr.bf16.mxu0 0
      %1204 = vmatpush1.bf16.xpose.msra.mxu0 0
      %1205 = vmatprep.subr.bf16.mxu0 0
      %1206 = vmatpush1.bf16.xpose.msra.mxu0 %v1189
      %1207 = vmatprep.subr.bf16.mxu0 0
      %1208 = vmatpush2.bf16.xpose.msra.mxu0 0
      %1209 = vmatprep.subr.bf16.mxu0 0
      %1210 = vmatpush2.bf16.xpose.msra.mxu0 0
      %1211 = vmatprep.subr.bf16.mxu0 0
      %1212 = vmatpush2.bf16.xpose.msra.mxu0 0
      %1213 = vmatprep.subr.bf16.mxu0 0
      %1214 = vmatpush2.bf16.xpose.msra.mxu0 0
      %1215 = vmatprep.subr.bf16.mxu0 0
      %1216 = vmatpush2.bf16.xpose.msra.mxu0 0
      %1217 = vmatprep.subr.bf16.mxu0 0
      %1218 = vmatpush2.bf16.xpose.msra.mxu0 0
      %1219 = vmatprep.subr.bf16.mxu0 0
      %1220 = vmatpush2.bf16.xpose.msra.mxu0 0
      %1221 = vmatprep.subr.bf16.mxu0 0
      %1222 = vmatpush2.bf16.xpose.msra.mxu0 0
      %1223 = vmatprep.mubr.bf16.mxu0 0
      %1224 = vmatmul.mubr.bf16.gmra.mxu0 %v1186
      %v1225 = vpop.f32.mrf.mxu0
      %v1226 = vadd.f32 0.0, %v1225
      %v1227 = vpop.f32.mrf.mxu0
      %v1228 = vpop.f32.mrf.mxu0
      %v1229 = vpop.f32.mrf.mxu0
      %1230 = vdwg.mxu0
      %v1231 = vmul.f32 %v1226, 2.0
      %v1232 = vsel %vm842, %v1231, -1e+30
      %v1233 = vsel %vm791, %v1232, -inf
      %1234 = vmax.xlane.f32.xlu0 %v1233
      %v1235 = vpop.xlane.xlu0 %1234
      %v1236 = vsub.f32 %v1232, %v1235
      %v1237 = vmul.f32 %v1236, 1.442695
      %v1238 = vpow.pop %v1237
      %v1239 = vsel %vm791, %v1238, 0.0
      %1240 = vadd.xlane.f32.xlu0 %v1239
      %v1241 = vpop.xlane.xlu0 %1240
      %v1242 = vrcp.pop %v1241
      %v1243 = vmul.f32 %v1238, %v1242
      %v1244 = vpack.c.bf16 %v1243, %v1243
      %1245 = vrot.lane.b32.xlu0 %v846, 32
      %v1246 = vpop.permute.xlu0 %1245
      %v1248 = vsel %vm791, %v1244, 0
      %v1251 = vsel %vm910, %v1246, 0
      %1253 = vmatprep.subr.bf16.mxu0 0
      %1254 = vmatpush1.bf16.msra.mxu0 0
      %1255 = vmatprep.subr.bf16.mxu0 0
      %1256 = vmatpush1.bf16.msra.mxu0 0
      %1257 = vmatprep.subr.bf16.mxu0 0
      %1258 = vmatpush1.bf16.msra.mxu0 0
      %1259 = vmatprep.subr.bf16.mxu0 0
      %1260 = vmatpush1.bf16.msra.mxu0 0
      %1261 = vmatprep.subr.bf16.mxu0 0
      %1262 = vmatpush1.bf16.msra.mxu0 0
      %1263 = vmatprep.subr.bf16.mxu0 0
      %1264 = vmatpush1.bf16.msra.mxu0 0
      %1265 = vmatprep.subr.bf16.mxu0 0
      %1266 = vmatpush1.bf16.msra.mxu0 0
      %1267 = vmatprep.subr.bf16.mxu0 0
      %1268 = vmatpush1.bf16.msra.mxu0 %v1251
      %1269 = vmatprep.subr.bf16.mxu0 0
      %1270 = vmatpush2.bf16.msra.mxu0 0
      %1271 = vmatprep.subr.bf16.mxu0 0
      %1272 = vmatpush2.bf16.msra.mxu0 0
      %1273 = vmatprep.subr.bf16.mxu0 0
      %1274 = vmatpush2.bf16.msra.mxu0 0
      %1275 = vmatprep.subr.bf16.mxu0 0
      %1276 = vmatpush2.bf16.msra.mxu0 0
      %1277 = vmatprep.subr.bf16.mxu0 0
      %1278 = vmatpush2.bf16.msra.mxu0 0
      %1279 = vmatprep.subr.bf16.mxu0 0
      %1280 = vmatpush2.bf16.msra.mxu0 0
      %1281 = vmatprep.subr.bf16.mxu0 0
      %1282 = vmatpush2.bf16.msra.mxu0 0
      %1283 = vmatprep.subr.bf16.mxu0 0
      %1284 = vmatpush2.bf16.msra.mxu0 0
      %1285 = vmatprep.mubr.bf16.mxu0 0
      %1286 = vmatmul.mubr.bf16.gmra.mxu0 %v1248
      %v1287 = vpop.f32.mrf.mxu0
      %v1288 = vadd.f32 0.0, %v1287
      %v1289 = vpop.f32.mrf.mxu0
      %v1290 = vpop.f32.mrf.mxu0
      %v1291 = vpop.f32.mrf.mxu0
      %1292 = vdwg.mxu0
      %1294 = vrot.lane.b32.xlu0 %v1064, 32
      %v1295 = vpop.permute.xlu0 %1294
      %1298 = vrot.lane.b32.xlu0 %v1176, 64
      %v1299 = vpop.permute.xlu0 %1298
      %1302 = vrot.lane.b32.xlu0 %v1288, 96
      %v1303 = vpop.permute.xlu0 %1302
      %v1305 = vsel %vm795, %v949, %v1295
      %v1306 = vsel %vm801, %v1305, %v1299
      %v1307 = vsel %vm807, %v1306, %v1303
      %v1308 = vpack.c.bf16 %v1307, %v1307
      %v1309 = vld [vmem:[%s7] sm:$0xf]
      %v1310 = vld [vmem:[%s7 + $0x4] sm:$0xf]
      %v1311 = vld [vmem:[%s7 + $0x8] sm:$0xf]
      %v1312 = vld [vmem:[%s7 + $0xc] sm:$0xf]
      %v1313 = vld [vmem:[%s7 + $0x10] sm:$0xf]
      %v1314 = vld [vmem:[%s7 + $0x14] sm:$0xf]
      %v1315 = vld [vmem:[%s7 + $0x18] sm:$0xf]
      %v1316 = vld [vmem:[%s7 + $0x1c] sm:$0xf]
      %v1317 = vld [vmem:[%s7 + $0x20] sm:$0xf]
      %v1318 = vld [vmem:[%s7 + $0x24] sm:$0xf]
      %v1319 = vld [vmem:[%s7 + $0x28] sm:$0xf]
      %v1320 = vld [vmem:[%s7 + $0x2c] sm:$0xf]
      %v1321 = vld [vmem:[%s7 + $0x30] sm:$0xf]
      %v1322 = vld [vmem:[%s7 + $0x34] sm:$0xf]
      %v1323 = vld [vmem:[%s7 + $0x38] sm:$0xf]
      %v1324 = vld [vmem:[%s7 + $0x3c] sm:$0xf]
      %v1325 = vld [vmem:[%s8] sm:$0x1]
      %v1327 = vlaneseq
      %v1328 = vshrl.u32 %v1327, 7
      %v1329 = vsub.s32 0, %v1328
      %v1330 = vrot.slane %v1325, %v1329
      %v1348 = vunpack.c.l.b16 %v1309
      %v1349 = vunpack.c.l.b16 %v1310
      %v1350 = vunpack.c.l.b16 %v1311
      %v1351 = vunpack.c.l.b16 %v1312
      %v1352 = vunpack.c.l.b16 %v1313
      %v1353 = vunpack.c.l.b16 %v1314
      %v1354 = vunpack.c.l.b16 %v1315
      %v1355 = vunpack.c.l.b16 %v1316
      %v1356 = vunpack.c.l.b16 %v1317
      %v1357 = vunpack.c.l.b16 %v1318
      %v1358 = vunpack.c.l.b16 %v1319
      %v1359 = vunpack.c.l.b16 %v1320
      %v1360 = vunpack.c.l.b16 %v1321
      %v1361 = vunpack.c.l.b16 %v1322
      %v1362 = vunpack.c.l.b16 %v1323
      %v1363 = vunpack.c.l.b16 %v1324
      %v1364 = vpack.c.b16 %v1349, %v1348
      %v1365 = vpack.c.b16 %v1351, %v1350
      %v1366 = vpack.c.b16 %v1353, %v1352
      %v1367 = vpack.c.b16 %v1355, %v1354
      %v1368 = vpack.c.b16 %v1357, %v1356
      %v1369 = vpack.c.b16 %v1359, %v1358
      %v1370 = vpack.c.b16 %v1361, %v1360
      %v1371 = vpack.c.b16 %v1363, %v1362
      %1380 = vmatprep.subr.bf16.mxu0 0
      %1381 = vmatpush1.bf16.msra.mxu0 %v1371
      %1382 = vmatprep.subr.bf16.mxu0 0
      %1383 = vmatpush1.bf16.msra.mxu0 %v1370
      %1384 = vmatprep.subr.bf16.mxu0 0
      %1385 = vmatpush1.bf16.msra.mxu0 %v1369
      %1386 = vmatprep.subr.bf16.mxu0 0
      %1387 = vmatpush1.bf16.msra.mxu0 %v1368
      %1388 = vmatprep.subr.bf16.mxu0 0
      %1389 = vmatpush1.bf16.msra.mxu0 %v1367
      %1390 = vmatprep.subr.bf16.mxu0 0
      %1391 = vmatpush1.bf16.msra.mxu0 %v1366
      %1392 = vmatprep.subr.bf16.mxu0 0
      %1393 = vmatpush1.bf16.msra.mxu0 %v1365
      %1394 = vmatprep.subr.bf16.mxu0 0
      %1395 = vmatpush1.bf16.msra.mxu0 %v1364
      %1396 = vmatprep.subr.bf16.mxu0 0
      %1397 = vmatpush2.bf16.msra.mxu0 0
      %1398 = vmatprep.subr.bf16.mxu0 0
      %1399 = vmatpush2.bf16.msra.mxu0 0
      %1400 = vmatprep.subr.bf16.mxu0 0
      %1401 = vmatpush2.bf16.msra.mxu0 0
      %1402 = vmatprep.subr.bf16.mxu0 0
      %1403 = vmatpush2.bf16.msra.mxu0 0
      %1404 = vmatprep.subr.bf16.mxu0 0
      %1405 = vmatpush2.bf16.msra.mxu0 0
      %1406 = vmatprep.subr.bf16.mxu0 0
      %1407 = vmatpush2.bf16.msra.mxu0 0
      %1408 = vmatprep.subr.bf16.mxu0 0
      %1409 = vmatpush2.bf16.msra.mxu0 0
      %1410 = vmatprep.subr.bf16.mxu0 0
      %1411 = vmatpush2.bf16.msra.mxu0 0
      %1412 = vmatprep.mubr.bf16.mxu0 0
      %1413 = vmatmul.mubr.bf16.gmra.mxu0 %v1308
      %v1414 = vpop.f32.mrf.mxu0
      %v1415 = vadd.f32 %v1330, %v1414
      %v1416 = vpop.f32.mrf.mxu0
      %v1417 = vpop.f32.mrf.mxu0
      %v1418 = vpop.f32.mrf.mxu0
      %1419 = vdwg.mxu0
      %v1420 = vmul.f32 %v519, 2.0
      %v1421 = vadd.f32 %v1420, %v1415
      %v1422 = vld [vmem:[%s9] sm:$0x1]
      %v1423 = vld [vmem:[%s10] sm:$0x1]
      %1424 = vadd.xlane.f32.xlu0 %v1421
      %v1425 = vpop.xlane.xlu0 %1424
      %v1426 = vmul.f32 %v1425, %v496
      %v1427 = vsub.f32 %v1421, %v1426
      %v1428 = vmul.f32 %v1427, %v1427
      %1429 = vadd.xlane.f32.xlu0 %v1428
      %v1430 = vpop.xlane.xlu0 %1429
      %v1431 = vmul.f32 %v1430, %v496
      %v1432 = vadd.f32 %v1431, 1e-05
      %v1433 = vrsqrt.pop %v1432
      %v1434 = vmul.f32 %v1427, %v1433
      %v1436 = vlaneseq
      %v1437 = vshrl.u32 %v1436, 7
      %v1438 = vsub.s32 0, %v1437
      %v1439 = vrot.slane %v1422, %v1438
      %v1441 = vmul.f32 %v1434, %v1439
      %v1443 = vlaneseq
      %v1444 = vshrl.u32 %v1443, 7
      %v1445 = vsub.s32 0, %v1444
      %v1446 = vrot.slane %v1423, %v1445
      %v1448 = vadd.f32 %v1441, %v1446
      %v1449 = vpack.c.bf16 %v1448, %v1448
      %v1450 = vld [vmem:[%s11] sm:$0xff]
      %v1451 = vld [vmem:[%s11 + $0x8] sm:$0xff]
      %v1452 = vld [vmem:[%s11 + $0x10] sm:$0xff]
      %v1453 = vld [vmem:[%s11 + $0x18] sm:$0xff]
      %v1454 = vld [vmem:[%s11 + $0x20] sm:$0xff]
      %v1455 = vld [vmem:[%s11 + $0x28] sm:$0xff]
      %v1456 = vld [vmem:[%s11 + $0x30] sm:$0xff]
      %v1457 = vld [vmem:[%s11 + $0x38] sm:$0xff]
      %v1458 = vld [vmem:[%s11 + $0x40] sm:$0xff]
      %v1459 = vld [vmem:[%s11 + $0x48] sm:$0xff]
      %v1460 = vld [vmem:[%s11 + $0x50] sm:$0xff]
      %v1461 = vld [vmem:[%s11 + $0x58] sm:$0xff]
      %v1462 = vld [vmem:[%s11 + $0x60] sm:$0xff]
      %v1463 = vld [vmem:[%s11 + $0x68] sm:$0xff]
      %v1464 = vld [vmem:[%s11 + $0x70] sm:$0xff]
      %v1465 = vld [vmem:[%s11 + $0x78] sm:$0xff]
      %v1466 = vld [vmem:[%s11 + $0x80] sm:$0xff]
      %v1467 = vld [vmem:[%s11 + $0x88] sm:$0xff]
      %v1468 = vld [vmem:[%s11 + $0x90] sm:$0xff]
      %v1469 = vld [vmem:[%s11 + $0x98] sm:$0xff]
      %v1470 = vld [vmem:[%s11 + $0xa0] sm:$0xff]
      %v1471 = vld [vmem:[%s11 + $0xa8] sm:$0xff]
      %v1472 = vld [vmem:[%s11 + $0xb0] sm:$0xff]
      %v1473 = vld [vmem:[%s11 + $0xb8] sm:$0xff]
      %v1474 = vld [vmem:[%s11 + $0xc0] sm:$0xff]
      %v1475 = vld [vmem:[%s11 + $0xc8] sm:$0xff]
      %v1476 = vld [vmem:[%s11 + $0xd0] sm:$0xff]
      %v1477 = vld [vmem:[%s11 + $0xd8] sm:$0xff]
      %v1478 = vld [vmem:[%s11 + $0xe0] sm:$0xff]
      %v1479 = vld [vmem:[%s11 + $0xe8] sm:$0xff]
      %v1480 = vld [vmem:[%s11 + $0xf0] sm:$0xff]
      %v1481 = vld [vmem:[%s11 + $0xf8] sm:$0xff]
      %v1482 = vld [vmem:[%s12] sm:$0xf]
      %v1484 = vlaneseq
      %v1485 = vshrl.u32 %v1484, 7
      %v1486 = vsub.s32 0, %v1485
      %v1487 = vrot.slane %v1482, %v1486
      %v1488 = vlaneseq
      %v1489 = vshrl.u32 %v1488, 7
      %v1490 = vsub.s32 1, %v1489
      %v1491 = vrot.slane %v1482, %v1490
      %v1492 = vlaneseq
      %v1493 = vshrl.u32 %v1492, 7
      %v1494 = vsub.s32 2, %v1493
      %v1495 = vrot.slane %v1482, %v1494
      %v1496 = vlaneseq
      %v1497 = vshrl.u32 %v1496, 7
      %v1498 = vsub.s32 3, %v1497
      %v1499 = vrot.slane %v1482, %v1498
      %v1536 = vunpack.c.l.b16 %v1450
      %v1537 = vunpack.c.h.b16 %v1450
      %v1538 = vunpack.c.l.b16 %v1451
      %v1539 = vunpack.c.h.b16 %v1451
      %v1540 = vunpack.c.l.b16 %v1452
      %v1541 = vunpack.c.h.b16 %v1452
      %v1542 = vunpack.c.l.b16 %v1453
      %v1543 = vunpack.c.h.b16 %v1453
      %v1544 = vunpack.c.l.b16 %v1454
      %v1545 = vunpack.c.h.b16 %v1454
      %v1546 = vunpack.c.l.b16 %v1455
      %v1547 = vunpack.c.h.b16 %v1455
      %v1548 = vunpack.c.l.b16 %v1456
      %v1549 = vunpack.c.h.b16 %v1456
      %v1550 = vunpack.c.l.b16 %v1457
      %v1551 = vunpack.c.h.b16 %v1457
      %v1552 = vunpack.c.l.b16 %v1458
      %v1553 = vunpack.c.h.b16 %v1458
      %v1554 = vunpack.c.l.b16 %v1459
      %v1555 = vunpack.c.h.b16 %v1459
      %v1556 = vunpack.c.l.b16 %v1460
      %v1557 = vunpack.c.h.b16 %v1460
      %v1558 = vunpack.c.l.b16 %v1461
      %v1559 = vunpack.c.h.b16 %v1461
      %v1560 = vunpack.c.l.b16 %v1462
      %v1561 = vunpack.c.h.b16 %v1462
      %v1562 = vunpack.c.l.b16 %v1463
      %v1563 = vunpack.c.h.b16 %v1463
      %v1564 = vunpack.c.l.b16 %v1464
      %v1565 = vunpack.c.h.b16 %v1464
      %v1566 = vunpack.c.l.b16 %v1465
      %v1567 = vunpack.c.h.b16 %v1465
      %v1568 = vunpack.c.l.b16 %v1466
      %v1569 = vunpack.c.h.b16 %v1466
      %v1570 = vunpack.c.l.b16 %v1467
      %v1571 = vunpack.c.h.b16 %v1467
      %v1572 = vunpack.c.l.b16 %v1468
      %v1573 = vunpack.c.h.b16 %v1468
      %v1574 = vunpack.c.l.b16 %v1469
      %v1575 = vunpack.c.h.b16 %v1469
      %v1576 = vunpack.c.l.b16 %v1470
      %v1577 = vunpack.c.h.b16 %v1470
      %v1578 = vunpack.c.l.b16 %v1471
      %v1579 = vunpack.c.h.b16 %v1471
      %v1580 = vunpack.c.l.b16 %v1472
      %v1581 = vunpack.c.h.b16 %v1472
      %v1582 = vunpack.c.l.b16 %v1473
      %v1583 = vunpack.c.h.b16 %v1473
      %v1584 = vunpack.c.l.b16 %v1474
      %v1585 = vunpack.c.h.b16 %v1474
      %v1586 = vunpack.c.l.b16 %v1475
      %v1587 = vunpack.c.h.b16 %v1475
      %v1588 = vunpack.c.l.b16 %v1476
      %v1589 = vunpack.c.h.b16 %v1476
      %v1590 = vunpack.c.l.b16 %v1477
      %v1591 = vunpack.c.h.b16 %v1477
      %v1592 = vunpack.c.l.b16 %v1478
      %v1593 = vunpack.c.h.b16 %v1478
      %v1594 = vunpack.c.l.b16 %v1479
      %v1595 = vunpack.c.h.b16 %v1479
      %v1596 = vunpack.c.l.b16 %v1480
      %v1597 = vunpack.c.h.b16 %v1480
      %v1598 = vunpack.c.l.b16 %v1481
      %v1599 = vunpack.c.h.b16 %v1481
      %v1600 = vpack.c.b16 %v1540, %v1536
      %v1601 = vpack.c.b16 %v1541, %v1537
      %v1602 = vpack.c.b16 %v1542, %v1538
      %v1603 = vpack.c.b16 %v1543, %v1539
      %v1604 = vpack.c.b16 %v1548, %v1544
      %v1605 = vpack.c.b16 %v1549, %v1545
      %v1606 = vpack.c.b16 %v1550, %v1546
      %v1607 = vpack.c.b16 %v1551, %v1547
      %v1608 = vpack.c.b16 %v1556, %v1552
      %v1609 = vpack.c.b16 %v1557, %v1553
      %v1610 = vpack.c.b16 %v1558, %v1554
      %v1611 = vpack.c.b16 %v1559, %v1555
      %v1612 = vpack.c.b16 %v1564, %v1560
      %v1613 = vpack.c.b16 %v1565, %v1561
      %v1614 = vpack.c.b16 %v1566, %v1562
      %v1615 = vpack.c.b16 %v1567, %v1563
      %v1616 = vpack.c.b16 %v1572, %v1568
      %v1617 = vpack.c.b16 %v1573, %v1569
      %v1618 = vpack.c.b16 %v1574, %v1570
      %v1619 = vpack.c.b16 %v1575, %v1571
      %v1620 = vpack.c.b16 %v1580, %v1576
      %v1621 = vpack.c.b16 %v1581, %v1577
      %v1622 = vpack.c.b16 %v1582, %v1578
      %v1623 = vpack.c.b16 %v1583, %v1579
      %v1624 = vpack.c.b16 %v1588, %v1584
      %v1625 = vpack.c.b16 %v1589, %v1585
      %v1626 = vpack.c.b16 %v1590, %v1586
      %v1627 = vpack.c.b16 %v1591, %v1587
      %v1628 = vpack.c.b16 %v1596, %v1592
      %v1629 = vpack.c.b16 %v1597, %v1593
      %v1630 = vpack.c.b16 %v1598, %v1594
      %v1631 = vpack.c.b16 %v1599, %v1595
      %1664 = vmatprep.subr.bf16.mxu0 %v1629
      %1665 = vmatpush1.bf16.msra.mxu0 %v1628
      %1666 = vmatprep.subr.bf16.mxu0 %v1625
      %1667 = vmatpush1.bf16.msra.mxu0 %v1624
      %1668 = vmatprep.subr.bf16.mxu0 %v1621
      %1669 = vmatpush1.bf16.msra.mxu0 %v1620
      %1670 = vmatprep.subr.bf16.mxu0 %v1617
      %1671 = vmatpush1.bf16.msra.mxu0 %v1616
      %1672 = vmatprep.subr.bf16.mxu0 %v1613
      %1673 = vmatpush1.bf16.msra.mxu0 %v1612
      %1674 = vmatprep.subr.bf16.mxu0 %v1609
      %1675 = vmatpush1.bf16.msra.mxu0 %v1608
      %1676 = vmatprep.subr.bf16.mxu0 %v1605
      %1677 = vmatpush1.bf16.msra.mxu0 %v1604
      %1678 = vmatprep.subr.bf16.mxu0 %v1601
      %1679 = vmatpush1.bf16.msra.mxu0 %v1600
      %1680 = vmatprep.subr.bf16.mxu0 0
      %1681 = vmatpush2.bf16.msra.mxu0 0
      %1682 = vmatprep.subr.bf16.mxu0 0
      %1683 = vmatpush2.bf16.msra.mxu0 0
      %1684 = vmatprep.subr.bf16.mxu0 0
      %1685 = vmatpush2.bf16.msra.mxu0 0
      %1686 = vmatprep.subr.bf16.mxu0 0
      %1687 = vmatpush2.bf16.msra.mxu0 0
      %1688 = vmatprep.subr.bf16.mxu0 0
      %1689 = vmatpush2.bf16.msra.mxu0 0
      %1690 = vmatprep.subr.bf16.mxu0 0
      %1691 = vmatpush2.bf16.msra.mxu0 0
      %1692 = vmatprep.subr.bf16.mxu0 0
      %1693 = vmatpush2.bf16.msra.mxu0 0
      %1694 = vmatprep.subr.bf16.mxu0 0
      %1695 = vmatpush2.bf16.msra.mxu0 0
      %1696 = vmatprep.mubr.bf16.mxu0 0
      %1697 = vmatmul.mubr.bf16.gmra.mxu0 %v1449
      %v1698 = vpop.f32.mrf.mxu0
      %v1699 = vadd.f32 %v1487, %v1698
      %v1700 = vpop.f32.mrf.mxu0
      %v1701 = vadd.f32 %v1491, %v1700
      %v1702 = vpop.f32.mrf.mxu0
      %v1703 = vpop.f32.mrf.mxu0
      %1704 = vdwg.mxu0
      %1705 = vmatprep.subr.bf16.mxu0 %v1631
      %1706 = vmatpush1.bf16.msra.mxu0 %v1630
      %1707 = vmatprep.subr.bf16.mxu0 %v1627
      %1708 = vmatpush1.bf16.msra.mxu0 %v1626
      %1709 = vmatprep.subr.bf16.mxu0 %v1623
      %1710 = vmatpush1.bf16.msra.mxu0 %v1622
      %1711 = vmatprep.subr.bf16.mxu0 %v1619
      %1712 = vmatpush1.bf16.msra.mxu0 %v1618
      %1713 = vmatprep.subr.bf16.mxu0 %v1615
      %1714 = vmatpush1.bf16.msra.mxu0 %v1614
      %1715 = vmatprep.subr.bf16.mxu0 %v1611
      %1716 = vmatpush1.bf16.msra.mxu0 %v1610
      %1717 = vmatprep.subr.bf16.mxu0 %v1607
      %1718 = vmatpush1.bf16.msra.mxu0 %v1606
      %1719 = vmatprep.subr.bf16.mxu0 %v1603
      %1720 = vmatpush1.bf16.msra.mxu0 %v1602
      %1721 = vmatprep.subr.bf16.mxu0 0
      %1722 = vmatpush2.bf16.msra.mxu0 0
      %1723 = vmatprep.subr.bf16.mxu0 0
      %1724 = vmatpush2.bf16.msra.mxu0 0
      %1725 = vmatprep.subr.bf16.mxu0 0
      %1726 = vmatpush2.bf16.msra.mxu0 0
      %1727 = vmatprep.subr.bf16.mxu0 0
      %1728 = vmatpush2.bf16.msra.mxu0 0
      %1729 = vmatprep.subr.bf16.mxu0 0
      %1730 = vmatpush2.bf16.msra.mxu0 0
      %1731 = vmatprep.subr.bf16.mxu0 0
      %1732 = vmatpush2.bf16.msra.mxu0 0
      %1733 = vmatprep.subr.bf16.mxu0 0
      %1734 = vmatpush2.bf16.msra.mxu0 0
      %1735 = vmatprep.subr.bf16.mxu0 0
      %1736 = vmatpush2.bf16.msra.mxu0 0
      %1737 = vmatprep.mubr.bf16.mxu0 0
      %1738 = vmatmul.mubr.bf16.gmra.mxu0 %v1449
      %v1739 = vpop.f32.mrf.mxu0
      %v1740 = vadd.f32 %v1495, %v1739
      %v1741 = vpop.f32.mrf.mxu0
      %v1742 = vadd.f32 %v1499, %v1741
      %v1743 = vpop.f32.mrf.mxu0
      %v1744 = vpop.f32.mrf.mxu0
      %1745 = vdwg.mxu0
      %v1746 = vmul.f32 %v1699, 0.5
      %v1747 = vmul.f32 %v1701, 0.5
      %v1748 = vmul.f32 %v1740, 0.5
      %v1749 = vmul.f32 %v1742, 0.5
      %v1750 = vmul.f32 %v1699, 0.7978846
      %v1751 = vmul.f32 %v1701, 0.7978846
      %v1752 = vmul.f32 %v1740, 0.7978846
      %v1753 = vmul.f32 %v1742, 0.7978846
      %v1754 = vmul.f32 %v1699, 0.044715
      %v1755 = vmul.f32 %v1701, 0.044715
      %v1756 = vmul.f32 %v1740, 0.044715
      %v1757 = vmul.f32 %v1742, 0.044715
      %v1758 = vmul.f32 %v1754, %v1699
      %v1759 = vmul.f32 %v1755, %v1701
      %v1760 = vmul.f32 %v1756, %v1740
      %v1761 = vmul.f32 %v1757, %v1742
      %v1762 = vadd.f32 %v1758, 1.0
      %v1763 = vadd.f32 %v1759, 1.0
      %v1764 = vadd.f32 %v1760, 1.0
      %v1765 = vadd.f32 %v1761, 1.0
      %v1766 = vmul.f32 %v1750, %v1762
      %v1767 = vmul.f32 %v1751, %v1763
      %v1768 = vmul.f32 %v1752, %v1764
      %v1769 = vmul.f32 %v1753, %v1765
      %v1770 = vtanh.pop %v1766
      %v1771 = vtanh.pop %v1767
      %v1772 = vtanh.pop %v1768
      %v1773 = vtanh.pop %v1769
      %v1774 = vadd.f32 %v1770, 1.0
      %v1775 = vadd.f32 %v1771, 1.0
      %v1776 = vadd.f32 %v1772, 1.0
      %v1777 = vadd.f32 %v1773, 1.0
      %v1778 = vmul.f32 %v1746, %v1774
      %v1779 = vmul.f32 %v1747, %v1775
      %v1780 = vmul.f32 %v1748, %v1776
      %v1781 = vmul.f32 %v1749, %v1777
      %v1782 = vpack.c.bf16 %v1778, %v1778
      %v1783 = vpack.c.bf16 %v1779, %v1779
      %v1784 = vpack.c.bf16 %v1780, %v1780
      %v1785 = vpack.c.bf16 %v1781, %v1781
      %v1786 = vld [vmem:[%s13] sm:$0xf]
      %v1787 = vld [vmem:[%s13 + $0x4] sm:$0xf]
      %v1788 = vld [vmem:[%s13 + $0x8] sm:$0xf]
      %v1789 = vld [vmem:[%s13 + $0xc] sm:$0xf]
      %v1790 = vld [vmem:[%s13 + $0x10] sm:$0xf]
      %v1791 = vld [vmem:[%s13 + $0x14] sm:$0xf]
      %v1792 = vld [vmem:[%s13 + $0x18] sm:$0xf]
      %v1793 = vld [vmem:[%s13 + $0x1c] sm:$0xf]
      %v1794 = vld [vmem:[%s13 + $0x20] sm:$0xf]
      %v1795 = vld [vmem:[%s13 + $0x24] sm:$0xf]
      %v1796 = vld [vmem:[%s13 + $0x28] sm:$0xf]
      %v1797 = vld [vmem:[%s13 + $0x2c] sm:$0xf]
      %v1798 = vld [vmem:[%s13 + $0x30] sm:$0xf]
      %v1799 = vld [vmem:[%s13 + $0x34] sm:$0xf]
      %v1800 = vld [vmem:[%s13 + $0x38] sm:$0xf]
      %v1801 = vld [vmem:[%s13 + $0x3c] sm:$0xf]
      %v1802 = vld [vmem:[%s13 + $0x40] sm:$0xf]
      %v1803 = vld [vmem:[%s13 + $0x44] sm:$0xf]
      %v1804 = vld [vmem:[%s13 + $0x48] sm:$0xf]
      %v1805 = vld [vmem:[%s13 + $0x4c] sm:$0xf]
      %v1806 = vld [vmem:[%s13 + $0x50] sm:$0xf]
      %v1807 = vld [vmem:[%s13 + $0x54] sm:$0xf]
      %v1808 = vld [vmem:[%s13 + $0x58] sm:$0xf]
      %v1809 = vld [vmem:[%s13 + $0x5c] sm:$0xf]
      %v1810 = vld [vmem:[%s13 + $0x60] sm:$0xf]
      %v1811 = vld [vmem:[%s13 + $0x64] sm:$0xf]
      %v1812 = vld [vmem:[%s13 + $0x68] sm:$0xf]
      %v1813 = vld [vmem:[%s13 + $0x6c] sm:$0xf]
      %v1814 = vld [vmem:[%s13 + $0x70] sm:$0xf]
      %v1815 = vld [vmem:[%s13 + $0x74] sm:$0xf]
      %v1816 = vld [vmem:[%s13 + $0x78] sm:$0xf]
      %v1817 = vld [vmem:[%s13 + $0x7c] sm:$0xf]
      %v1818 = vld [vmem:[%s13 + $0x80] sm:$0xf]
      %v1819 = vld [vmem:[%s13 + $0x84] sm:$0xf]
      %v1820 = vld [vmem:[%s13 + $0x88] sm:$0xf]
      %v1821 = vld [vmem:[%s13 + $0x8c] sm:$0xf]
      %v1822 = vld [vmem:[%s13 + $0x90] sm:$0xf]
      %v1823 = vld [vmem:[%s13 + $0x94] sm:$0xf]
      %v1824 = vld [vmem:[%s13 + $0x98] sm:$0xf]
      %v1825 = vld [vmem:[%s13 + $0x9c] sm:$0xf]
      %v1826 = vld [vmem:[%s13 + $0xa0] sm:$0xf]
      %v1827 = vld [vmem:[%s13 + $0xa4] sm:$0xf]
      %v1828 = vld [vmem:[%s13 + $0xa8] sm:$0xf]
      %v1829 = vld [vmem:[%s13 + $0xac] sm:$0xf]
      %v1830 = vld [vmem:[%s13 + $0xb0] sm:$0xf]
      %v1831 = vld [vmem:[%s13 + $0xb4] sm:$0xf]
      %v1832 = vld [vmem:[%s13 + $0xb8] sm:$0xf]
      %v1833 = vld [vmem:[%s13 + $0xbc] sm:$0xf]
      %v1834 = vld [vmem:[%s13 + $0xc0] sm:$0xf]
      %v1835 = vld [vmem:[%s13 + $0xc4] sm:$0xf]
      %v1836 = vld [vmem:[%s13 + $0xc8] sm:$0xf]
      %v1837 = vld [vmem:[%s13 + $0xcc] sm:$0xf]
      %v1838 = vld [vmem:[%s13 + $0xd0] sm:$0xf]
      %v1839 = vld [vmem:[%s13 + $0xd4] sm:$0xf]
      %v1840 = vld [vmem:[%s13 + $0xd8] sm:$0xf]
      %v1841 = vld [vmem:[%s13 + $0xdc] sm:$0xf]
      %v1842 = vld [vmem:[%s13 + $0xe0] sm:$0xf]
      %v1843 = vld [vmem:[%s13 + $0xe4] sm:$0xf]
      %v1844 = vld [vmem:[%s13 + $0xe8] sm:$0xf]
      %v1845 = vld [vmem:[%s13 + $0xec] sm:$0xf]
      %v1846 = vld [vmem:[%s13 + $0xf0] sm:$0xf]
      %v1847 = vld [vmem:[%s13 + $0xf4] sm:$0xf]
      %v1848 = vld [vmem:[%s13 + $0xf8] sm:$0xf]
      %v1849 = vld [vmem:[%s13 + $0xfc] sm:$0xf]
      %v1850 = vld [vmem:[%s14] sm:$0x1]
      %v1852 = vlaneseq
      %v1853 = vshrl.u32 %v1852, 7
      %v1854 = vsub.s32 0, %v1853
      %v1855 = vrot.slane %v1850, %v1854
      %v1921 = vunpack.c.l.b16 %v1786
      %v1922 = vunpack.c.l.b16 %v1787
      %v1923 = vunpack.c.l.b16 %v1788
      %v1924 = vunpack.c.l.b16 %v1789
      %v1925 = vunpack.c.l.b16 %v1790
      %v1926 = vunpack.c.l.b16 %v1791
      %v1927 = vunpack.c.l.b16 %v1792
      %v1928 = vunpack.c.l.b16 %v1793
      %v1929 = vunpack.c.l.b16 %v1794
      %v1930 = vunpack.c.l.b16 %v1795
      %v1931 = vunpack.c.l.b16 %v1796
      %v1932 = vunpack.c.l.b16 %v1797
      %v1933 = vunpack.c.l.b16 %v1798
      %v1934 = vunpack.c.l.b16 %v1799
      %v1935 = vunpack.c.l.b16 %v1800
      %v1936 = vunpack.c.l.b16 %v1801
      %v1937 = vunpack.c.l.b16 %v1802
      %v1938 = vunpack.c.l.b16 %v1803
      %v1939 = vunpack.c.l.b16 %v1804
      %v1940 = vunpack.c.l.b16 %v1805
      %v1941 = vunpack.c.l.b16 %v1806
      %v1942 = vunpack.c.l.b16 %v1807
      %v1943 = vunpack.c.l.b16 %v1808
      %v1944 = vunpack.c.l.b16 %v1809
      %v1945 = vunpack.c.l.b16 %v1810
      %v1946 = vunpack.c.l.b16 %v1811
      %v1947 = vunpack.c.l.b16 %v1812
      %v1948 = vunpack.c.l.b16 %v1813
      %v1949 = vunpack.c.l.b16 %v1814
      %v1950 = vunpack.c.l.b16 %v1815
      %v1951 = vunpack.c.l.b16 %v1816
      %v1952 = vunpack.c.l.b16 %v1817
      %v1953 = vunpack.c.l.b16 %v1818
      %v1954 = vunpack.c.l.b16 %v1819
      %v1955 = vunpack.c.l.b16 %v1820
      %v1956 = vunpack.c.l.b16 %v1821
      %v1957 = vunpack.c.l.b16 %v1822
      %v1958 = vunpack.c.l.b16 %v1823
      %v1959 = vunpack.c.l.b16 %v1824
      %v1960 = vunpack.c.l.b16 %v1825
      %v1961 = vunpack.c.l.b16 %v1826
      %v1962 = vunpack.c.l.b16 %v1827
      %v1963 = vunpack.c.l.b16 %v1828
      %v1964 = vunpack.c.l.b16 %v1829
      %v1965 = vunpack.c.l.b16 %v1830
      %v1966 = vunpack.c.l.b16 %v1831
      %v1967 = vunpack.c.l.b16 %v1832
      %v1968 = vunpack.c.l.b16 %v1833
      %v1969 = vunpack.c.l.b16 %v1834
      %v1970 = vunpack.c.l.b16 %v1835
      %v1971 = vunpack.c.l.b16 %v1836
      %v1972 = vunpack.c.l.b16 %v1837
      %v1973 = vunpack.c.l.b16 %v1838
      %v1974 = vunpack.c.l.b16 %v1839
      %v1975 = vunpack.c.l.b16 %v1840
      %v1976 = vunpack.c.l.b16 %v1841
      %v1977 = vunpack.c.l.b16 %v1842
      %v1978 = vunpack.c.l.b16 %v1843
      %v1979 = vunpack.c.l.b16 %v1844
      %v1980 = vunpack.c.l.b16 %v1845
      %v1981 = vunpack.c.l.b16 %v1846
      %v1982 = vunpack.c.l.b16 %v1847
      %v1983 = vunpack.c.l.b16 %v1848
      %v1984 = vunpack.c.l.b16 %v1849
      %v1985 = vpack.c.b16 %v1922, %v1921
      %v1986 = vpack.c.b16 %v1924, %v1923
      %v1987 = vpack.c.b16 %v1926, %v1925
      %v1988 = vpack.c.b16 %v1928, %v1927
      %v1989 = vpack.c.b16 %v1930, %v1929
      %v1990 = vpack.c.b16 %v1932, %v1931
      %v1991 = vpack.c.b16 %v1934, %v1933
      %v1992 = vpack.c.b16 %v1936, %v1935
      %v1993 = vpack.c.b16 %v1938, %v1937
      %v1994 = vpack.c.b16 %v1940, %v1939
      %v1995 = vpack.c.b16 %v1942, %v1941
      %v1996 = vpack.c.b16 %v1944, %v1943
      %v1997 = vpack.c.b16 %v1946, %v1945
      %v1998 = vpack.c.b16 %v1948, %v1947
      %v1999 = vpack.c.b16 %v1950, %v1949
      %v2000 = vpack.c.b16 %v1952, %v1951
      %v2001 = vpack.c.b16 %v1954, %v1953
      %v2002 = vpack.c.b16 %v1956, %v1955
      %v2003 = vpack.c.b16 %v1958, %v1957
      %v2004 = vpack.c.b16 %v1960, %v1959
      %v2005 = vpack.c.b16 %v1962, %v1961
      %v2006 = vpack.c.b16 %v1964, %v1963
      %v2007 = vpack.c.b16 %v1966, %v1965
      %v2008 = vpack.c.b16 %v1968, %v1967
      %v2009 = vpack.c.b16 %v1970, %v1969
      %v2010 = vpack.c.b16 %v1972, %v1971
      %v2011 = vpack.c.b16 %v1974, %v1973
      %v2012 = vpack.c.b16 %v1976, %v1975
      %v2013 = vpack.c.b16 %v1978, %v1977
      %v2014 = vpack.c.b16 %v1980, %v1979
      %v2015 = vpack.c.b16 %v1982, %v1981
      %v2016 = vpack.c.b16 %v1984, %v1983
      %2049 = vmatprep.subr.bf16.mxu0 0
      %2050 = vmatpush1.bf16.msra.mxu0 %v1992
      %2051 = vmatprep.subr.bf16.mxu0 0
      %2052 = vmatpush1.bf16.msra.mxu0 %v1991
      %2053 = vmatprep.subr.bf16.mxu0 0
      %2054 = vmatpush1.bf16.msra.mxu0 %v1990
      %2055 = vmatprep.subr.bf16.mxu0 0
      %2056 = vmatpush1.bf16.msra.mxu0 %v1989
      %2057 = vmatprep.subr.bf16.mxu0 0
      %2058 = vmatpush1.bf16.msra.mxu0 %v1988
      %2059 = vmatprep.subr.bf16.mxu0 0
      %2060 = vmatpush1.bf16.msra.mxu0 %v1987
      %2061 = vmatprep.subr.bf16.mxu0 0
      %2062 = vmatpush1.bf16.msra.mxu0 %v1986
      %2063 = vmatprep.subr.bf16.mxu0 0
      %2064 = vmatpush1.bf16.msra.mxu0 %v1985
      %2065 = vmatprep.subr.bf16.mxu0 0
      %2066 = vmatpush2.bf16.msra.mxu0 %v2000
      %2067 = vmatprep.subr.bf16.mxu0 0
      %2068 = vmatpush2.bf16.msra.mxu0 %v1999
      %2069 = vmatprep.subr.bf16.mxu0 0
      %2070 = vmatpush2.bf16.msra.mxu0 %v1998
      %2071 = vmatprep.subr.bf16.mxu0 0
      %2072 = vmatpush2.bf16.msra.mxu0 %v1997
      %2073 = vmatprep.subr.bf16.mxu0 0
      %2074 = vmatpush2.bf16.msra.mxu0 %v1996
      %2075 = vmatprep.subr.bf16.mxu0 0
      %2076 = vmatpush2.bf16.msra.mxu0 %v1995
      %2077 = vmatprep.subr.bf16.mxu0 0
      %2078 = vmatpush2.bf16.msra.mxu0 %v1994
      %2079 = vmatprep.subr.bf16.mxu0 0
      %2080 = vmatpush2.bf16.msra.mxu0 %v1993
      %2081 = vmatprep.mubr.bf16.mxu0 %v1783
      %2082 = vmatmul.mubr.bf16.gmra.mxu0 %v1782
      %v2083 = vpop.f32.mrf.mxu0
      %v2084 = vadd.f32 %v1855, %v2083
      %v2085 = vpop.f32.mrf.mxu0
      %v2086 = vpop.f32.mrf.mxu0
      %v2087 = vpop.f32.mrf.mxu0
      %2088 = vdwg.mxu0
      %2089 = vmatprep.subr.bf16.mxu0 0
      %2090 = vmatpush1.bf16.msra.mxu0 %v2008
      %2091 = vmatprep.subr.bf16.mxu0 0
      %2092 = vmatpush1.bf16.msra.mxu0 %v2007
      %2093 = vmatprep.subr.bf16.mxu0 0
      %2094 = vmatpush1.bf16.msra.mxu0 %v2006
      %2095 = vmatprep.subr.bf16.mxu0 0
      %2096 = vmatpush1.bf16.msra.mxu0 %v2005
      %2097 = vmatprep.subr.bf16.mxu0 0
      %2098 = vmatpush1.bf16.msra.mxu0 %v2004
      %2099 = vmatprep.subr.bf16.mxu0 0
      %2100 = vmatpush1.bf16.msra.mxu0 %v2003
      %2101 = vmatprep.subr.bf16.mxu0 0
      %2102 = vmatpush1.bf16.msra.mxu0 %v2002
      %2103 = vmatprep.subr.bf16.mxu0 0
      %2104 = vmatpush1.bf16.msra.mxu0 %v2001
      %2105 = vmatprep.subr.bf16.mxu0 0
      %2106 = vmatpush2.bf16.msra.mxu0 %v2016
      %2107 = vmatprep.subr.bf16.mxu0 0
      %2108 = vmatpush2.bf16.msra.mxu0 %v2015
      %2109 = vmatprep.subr.bf16.mxu0 0
      %2110 = vmatpush2.bf16.msra.mxu0 %v2014
      %2111 = vmatprep.subr.bf16.mxu0 0
      %2112 = vmatpush2.bf16.msra.mxu0 %v2013
      %2113 = vmatprep.subr.bf16.mxu0 0
      %2114 = vmatpush2.bf16.msra.mxu0 %v2012
      %2115 = vmatprep.subr.bf16.mxu0 0
      %2116 = vmatpush2.bf16.msra.mxu0 %v2011
      %2117 = vmatprep.subr.bf16.mxu0 0
      %2118 = vmatpush2.bf16.msra.mxu0 %v2010
      %2119 = vmatprep.subr.bf16.mxu0 0
      %2120 = vmatpush2.bf16.msra.mxu0 %v2009
      %2121 = vmatprep.mubr.bf16.mxu0 %v1785
      %2122 = vmatmul.mubr.bf16.gmra.mxu0 %v1784
      %v2123 = vpop.f32.mrf.mxu0
      %v2124 = vadd.f32 %v2084, %v2123
      %v2125 = vpop.f32.mrf.mxu0
      %v2126 = vpop.f32.mrf.mxu0
      %v2127 = vpop.f32.mrf.mxu0
      %2128 = vdwg.mxu0
      %v2129 = vmul.f32 %v1448, 2.0
      %v2130 = vadd.f32 %v2129, %v2124
      %2131 = vst [vmem:[%s489] sm:$0xff] %v2130
      %p2132 = scmp.lt.s32.totalorder %s26, 1
      %s2133 = scalar_select %p2132, %s26, 1
      %s2134 = smul.addr %s2133, 8
      %s2135 = scalar_lea.vmem %s15, %s2134
      // Predicated region
      $region81: #{xiaohua_forward.4} parent=79 // pred_check
        %p2136 = pneg %p364
      $region82: #{xiaohua_forward.4} parent=79 // pred_check_branch
        %2138 = sbr.rel (%p2136) target = $region84
      $region83: #{xiaohua_forward.4} parent=79 // pred_region
        _
      $region84: #{xiaohua_forward.4} parent=79 // pred_fallthru
        _
    $region80: #{xiaohua_forward.4} parent=5 // pred_fallthru
      _
    %p2139 = scmp.le.s32.totalorder 2, %s21
    // Predicated region
    $region85: #{xiaohua_forward.4} parent=5 // pred_check
      %p2140 = pneg %p2139
    $region86: #{xiaohua_forward.4} parent=5 // pred_check_branch
      %2142 = sbr.rel (%p2140) target = $region88
    $region87: #{xiaohua_forward.4} parent=5 // pred_region
      %s2143 = ssub.s32 %s21, 2
      // Predicated region
      $region89: #{xiaohua_forward.4} parent=87 // pred_check
        %p2144 = pneg %p370
      $region90: #{xiaohua_forward.4} parent=87 // pred_check_branch
        %2146 = sbr.rel (%p2144) target = $region92
      $region91: #{xiaohua_forward.4} parent=87 // pred_region
        %p2147 = scmp.lt.s32.totalorder %s27, 1
        %s2148 = scalar_select %p2147, %s27, 1
        %s2149 = smul.addr %s2148, 8
        %s2150 = scalar_lea.vmem %s15, %s2149
      $region92: #{xiaohua_forward.4} parent=87 // pred_fallthru
        _
    $region88: #{xiaohua_forward.4} parent=5 // pred_fallthru
      _
  $region6: #{xiaohua_forward.4} parent=0 // loop_footer
    %s25 = sadd.s32 1, %s21
  $region7: #{xiaohua_forward.4} parent=0 // loop_footer_branch
    %20 = sbr.rel target = $region3
  $region8: #{xiaohua_forward.4} parent=0 // loop_exit
    _

// kernel: xiaohua_forward.3
$region0: #{xiaohua_forward.3}
  #allocation0 [shape = 'u32[]', space=smem, size = 0x4, offset = 0x4, fixed_abs, tag = 'smem constant byte address 0x4 - core index']
  #allocation1 [shape = 'u32[144,128]{1,0:T(1,128)}', space=vmem, size = 0x12000, scoped, tag = 'internal scratch']
  %s0 = inlined_call_operand.vmem [shape: f32[16,128], index: 0, kind: input, shape index: {}]
  %s1 = inlined_call_operand.vmem [shape: f32[8,128], index: 1, kind: input, shape index: {}]
  %s2 = inlined_call_operand.vmem [shape: f32[8,128], index: 2, kind: input, shape index: {}]
  %s3 = inlined_call_operand.vmem [shape: f32[1,128], index: 3, kind: input, shape index: {}]
  %s4 = inlined_call_operand.vmem [shape: f32[1,128], index: 4, kind: input, shape index: {}]
  %s5 = inlined_call_operand.hbm [shape: bf16[128,384], index: 5, kind: input, shape index: {}]
  %s6 = inlined_call_operand.vmem [shape: f32[1,384], index: 6, kind: input, shape index: {}]
  %s7 = inlined_call_operand.vmem [shape: bf16[128,128], index: 7, kind: input, shape index: {}]
  %s8 = inlined_call_operand.vmem [shape: f32[1,128], index: 8, kind: input, shape index: {}]
  %s9 = inlined_call_operand.vmem [shape: f32[1,128], index: 9, kind: input, shape index: {}]
  %s10 = inlined_call_operand.vmem [shape: f32[1,128], index: 10, kind: input, shape index: {}]
  %s11 = inlined_call_operand.vmem [shape: bf16[128,512], index: 11, kind: input, shape index: {}]
  %s12 = inlined_call_operand.vmem [shape: f32[1,512], index: 12, kind: input, shape index: {}]
  %s13 = inlined_call_operand.hbm [shape: bf16[512,128], index: 13, kind: input, shape index: {}]
  %s14 = inlined_call_operand.vmem [shape: f32[1,128], index: 14, kind: input, shape index: {}]
  %s15 = inlined_call_operand.vmem [shape: f32[16,128], index: 15, kind: output, shape index: {}]
  %s16 = sld [smem:[#allocation0]]
  $region101: #{xiaohua_forward.3} parent=0
    _
  %s18 = ssub.s32 1, %s16
  %s19 = scalar_select 0, %s18, %s16
  $region1: #{xiaohua_forward.3} parent=0
    #allocation2 [shape = 'u8[98304]{0}', space=vmem, size = 0x18000, scoped, tag = 'input window, operand 5, single buffered']
    #allocation3 [shape = 's32[2]{0}', space=sflag, size = 0x8, scoped, tag = 'scoped memory for xiaohua_forward.3']
    #allocation4 [shape = 'u8[131072]{0}', space=vmem, size = 0x20000, scoped, tag = 'input window, operand 13, single buffered']
    #allocation5 [shape = 's32[1]{0}', space=sflag, size = 0x4, scoped, tag = 'scoped memory for xiaohua_forward.3']
    %20 = vsyncpa [#allocation3], 0
    %21 = vsyncpa [#allocation5], 0
    loop: start=0, step=1, limit=4
    $region2: #{xiaohua_forward.3} parent=1 // loop_pre_header
      _
    $region3: #{xiaohua_forward.3} parent=1 // loop_header
      %s23 = sphi 0, %s27
      %p24 = scmp.ge.s32.totalorder %s23, 4
      %s33 = sphi 0, %s35
      %s36 = sphi 0, %s33
      %s37 = sphi 0, %s36
      %s53 = sphi 0, %s37
      %s57 = sphi 0, %s57
      %s59 = sphi 0, %s57
      %s60 = sphi 0, %s59
      %s74 = sphi 0, %s60
      %s78 = sphi 0, %s78
      %s80 = sphi 0, %s78
      %s81 = sphi 0, %s80
      %s95 = sphi 0, %s81
      %s99 = sphi 0, %s99
      %s101 = sphi 0, %s99
      %s102 = sphi 0, %s101
      %s116 = sphi 0, %s102
      %s120 = sphi 0, %s120
      %s122 = sphi 0, %s120
      %s123 = sphi 0, %s122
      %s137 = sphi 0, %s123
      %s141 = sphi 0, %s141
      %s143 = sphi 0, %s141
      %s144 = sphi 0, %s143
      %s158 = sphi 0, %s144
      %s162 = sphi 0, %s162
      %s164 = sphi 0, %s162
      %s165 = sphi 0, %s164
      %s179 = sphi 0, %s165
      %s183 = sphi 0, %s183
      %s185 = sphi 0, %s183
      %s186 = sphi 0, %s185
      %s200 = sphi 0, %s186
      %s204 = sphi 0, %s204
      %s206 = sphi 0, %s204
      %s207 = sphi 0, %s206
      %s221 = sphi 0, %s207
      %s225 = sphi 0, %s225
      %s227 = sphi 0, %s225
      %s228 = sphi 0, %s227
      %s242 = sphi 0, %s228
      %s246 = sphi 0, %s246
      %s248 = sphi 0, %s246
      %s249 = sphi 0, %s248
      %s263 = sphi 0, %s249
      %s267 = sphi 0, %s267
      %s269 = sphi 0, %s267
      %s270 = sphi 0, %s269
      %s284 = sphi 0, %s270
      %s288 = sphi 0, %s288
      %s290 = sphi 0, %s288
      %s291 = sphi 0, %s290
      %s305 = sphi 0, %s291
      %s309 = sphi 0, %s309
      %s311 = sphi 0, %s309
      %s312 = sphi 0, %s311
      %s326 = sphi 0, %s312
      %s330 = sphi 0, %s330
      %s332 = sphi 0, %s330
      %s333 = sphi 0, %s332
      %s347 = sphi 0, %s333
      %s353 = sphi 0, %s355
      %s356 = sphi 0, %s353
      %s357 = sphi 0, %s356
      %s373 = sphi 0, %s357
    $region4: #{xiaohua_forward.3} parent=1 // loop_header_branch
      %26 = sbr.rel (%p24) target = $region8
    $region5: #{xiaohua_forward.3} parent=1 // loop_body
      %s28 = ssub.s32 %s23, 1
      %s29 = ssub.s32 %s23, 2
      %s30 = sadd.s32 %s23, 1
      %s31 = ssub.s32 %s23, %s30
      %p32 = scmp.eq.s32.totalorder %s31, 0
      %s34 = sadd.s32 %s33, 1
      %s35 = scalar_select %p32, %s33, %s34
      %p38 = pneg %p32
      %p39 = scmp.eq.s32.totalorder %s23, 1
      %p40 = por %p38, %p39
      %p41 = scmp.ne.s32.totalorder %s33, %s36
      %p42 = scmp.eq.s32.totalorder %s23, 0
      %p43 = por %p41, %p42
      %p44 = scmp.ne.s32.totalorder %s33, %s36
      %p45 = scmp.eq.s32.totalorder %s28, 1
      %p46 = por %p44, %p45
      %p47 = scmp.ne.s32.totalorder %s36, %s37
      %p48 = scmp.eq.s32.totalorder %s28, 0
      %p49 = por %p47, %p48
      %p50 = scmp.ne.s32.totalorder %s36, %s37
      %p51 = scmp.eq.s32.totalorder %s29, 1
      %p52 = por %p50, %p51
      %p54 = scmp.ne.s32.totalorder %s37, %s53
      %p55 = scmp.eq.s32.totalorder %s29, 0
      %p56 = por %p54, %p55
      %s58 = sadd.s32 %s57, 1
      %p61 = scmp.eq.s32.totalorder %s23, 1
      %p62 = scmp.ne.s32.totalorder %s57, %s59
      %p63 = scmp.eq.s32.totalorder %s23, 0
      %p64 = por %p62, %p63
      %p65 = scmp.ne.s32.totalorder %s57, %s59
      %p66 = scmp.eq.s32.totalorder %s28, 1
      %p67 = por %p65, %p66
      %p68 = scmp.ne.s32.totalorder %s59, %s60
      %p69 = scmp.eq.s32.totalorder %s28, 0
      %p70 = por %p68, %p69
      %p71 = scmp.ne.s32.totalorder %s59, %s60
      %p72 = scmp.eq.s32.totalorder %s29, 1
      %p73 = por %p71, %p72
      %p75 = scmp.ne.s32.totalorder %s60, %s74
      %p76 = scmp.eq.s32.totalorder %s29, 0
      %p77 = por %p75, %p76
      %s79 = sadd.s32 %s78, 1
      %p82 = scmp.eq.s32.totalorder %s23, 1
      %p83 = scmp.ne.s32.totalorder %s78, %s80
      %p84 = scmp.eq.s32.totalorder %s23, 0
      %p85 = por %p83, %p84
      %p86 = scmp.ne.s32.totalorder %s78, %s80
      %p87 = scmp.eq.s32.totalorder %s28, 1
      %p88 = por %p86, %p87
      %p89 = scmp.ne.s32.totalorder %s80, %s81
      %p90 = scmp.eq.s32.totalorder %s28, 0
      %p91 = por %p89, %p90
      %p92 = scmp.ne.s32.totalorder %s80, %s81
      %p93 = scmp.eq.s32.totalorder %s29, 1
      %p94 = por %p92, %p93
      %p96 = scmp.ne.s32.totalorder %s81, %s95
      %p97 = scmp.eq.s32.totalorder %s29, 0
      %p98 = por %p96, %p97
      %s100 = sadd.s32 %s99, 1
      %p103 = scmp.eq.s32.totalorder %s23, 1
      %p104 = scmp.ne.s32.totalorder %s99, %s101
      %p105 = scmp.eq.s32.totalorder %s23, 0
      %p106 = por %p104, %p105
      %p107 = scmp.ne.s32.totalorder %s99, %s101
      %p108 = scmp.eq.s32.totalorder %s28, 1
      %p109 = por %p107, %p108
      %p110 = scmp.ne.s32.totalorder %s101, %s102
      %p111 = scmp.eq.s32.totalorder %s28, 0
      %p112 = por %p110, %p111
      %p113 = scmp.ne.s32.totalorder %s101, %s102
      %p114 = scmp.eq.s32.totalorder %s29, 1
      %p115 = por %p113, %p114
      %p117 = scmp.ne.s32.totalorder %s102, %s116
      %p118 = scmp.eq.s32.totalorder %s29, 0
      %p119 = por %p117, %p118
      %s121 = sadd.s32 %s120, 1
      %p124 = scmp.eq.s32.totalorder %s23, 1
      %p125 = scmp.ne.s32.totalorder %s120, %s122
      %p126 = scmp.eq.s32.totalorder %s23, 0
      %p127 = por %p125, %p126
      %p128 = scmp.ne.s32.totalorder %s120, %s122
      %p129 = scmp.eq.s32.totalorder %s28, 1
      %p130 = por %p128, %p129
      %p131 = scmp.ne.s32.totalorder %s122, %s123
      %p132 = scmp.eq.s32.totalorder %s28, 0
      %p133 = por %p131, %p132
      %p134 = scmp.ne.s32.totalorder %s122, %s123
      %p135 = scmp.eq.s32.totalorder %s29, 1
      %p136 = por %p134, %p135
      %p138 = scmp.ne.s32.totalorder %s123, %s137
      %p139 = scmp.eq.s32.totalorder %s29, 0
      %p140 = por %p138, %p139
      %s142 = sadd.s32 %s141, 1
      %p145 = scmp.eq.s32.totalorder %s23, 1
      %p146 = scmp.ne.s32.totalorder %s141, %s143
      %p147 = scmp.eq.s32.totalorder %s23, 0
      %p148 = por %p146, %p147
      %p149 = scmp.ne.s32.totalorder %s141, %s143
      %p150 = scmp.eq.s32.totalorder %s28, 1
      %p151 = por %p149, %p150
      %p152 = scmp.ne.s32.totalorder %s143, %s144
      %p153 = scmp.eq.s32.totalorder %s28, 0
      %p154 = por %p152, %p153
      %p155 = scmp.ne.s32.totalorder %s143, %s144
      %p156 = scmp.eq.s32.totalorder %s29, 1
      %p157 = por %p155, %p156
      %p159 = scmp.ne.s32.totalorder %s144, %s158
      %p160 = scmp.eq.s32.totalorder %s29, 0
      %p161 = por %p159, %p160
      %s163 = sadd.s32 %s162, 1
      %p166 = scmp.eq.s32.totalorder %s23, 1
      %p167 = scmp.ne.s32.totalorder %s162, %s164
      %p168 = scmp.eq.s32.totalorder %s23, 0
      %p169 = por %p167, %p168
      %p170 = scmp.ne.s32.totalorder %s162, %s164
      %p171 = scmp.eq.s32.totalorder %s28, 1
      %p172 = por %p170, %p171
      %p173 = scmp.ne.s32.totalorder %s164, %s165
      %p174 = scmp.eq.s32.totalorder %s28, 0
      %p175 = por %p173, %p174
      %p176 = scmp.ne.s32.totalorder %s164, %s165
      %p177 = scmp.eq.s32.totalorder %s29, 1
      %p178 = por %p176, %p177
      %p180 = scmp.ne.s32.totalorder %s165, %s179
      %p181 = scmp.eq.s32.totalorder %s29, 0
      %p182 = por %p180, %p181
      %s184 = sadd.s32 %s183, 1
      %p187 = scmp.eq.s32.totalorder %s23, 1
      %p188 = scmp.ne.s32.totalorder %s183, %s185
      %p189 = scmp.eq.s32.totalorder %s23, 0
      %p190 = por %p188, %p189
      %p191 = scmp.ne.s32.totalorder %s183, %s185
      %p192 = scmp.eq.s32.totalorder %s28, 1
      %p193 = por %p191, %p192
      %p194 = scmp.ne.s32.totalorder %s185, %s186
      %p195 = scmp.eq.s32.totalorder %s28, 0
      %p196 = por %p194, %p195
      %p197 = scmp.ne.s32.totalorder %s185, %s186
      %p198 = scmp.eq.s32.totalorder %s29, 1
      %p199 = por %p197, %p198
      %p201 = scmp.ne.s32.totalorder %s186, %s200
      %p202 = scmp.eq.s32.totalorder %s29, 0
      %p203 = por %p201, %p202
      %s205 = sadd.s32 %s204, 1
      %p208 = scmp.eq.s32.totalorder %s23, 1
      %p209 = scmp.ne.s32.totalorder %s204, %s206
      %p210 = scmp.eq.s32.totalorder %s23, 0
      %p211 = por %p209, %p210
      %p212 = scmp.ne.s32.totalorder %s204, %s206
      %p213 = scmp.eq.s32.totalorder %s28, 1
      %p214 = por %p212, %p213
      %p215 = scmp.ne.s32.totalorder %s206, %s207
      %p216 = scmp.eq.s32.totalorder %s28, 0
      %p217 = por %p215, %p216
      %p218 = scmp.ne.s32.totalorder %s206, %s207
      %p219 = scmp.eq.s32.totalorder %s29, 1
      %p220 = por %p218, %p219
      %p222 = scmp.ne.s32.totalorder %s207, %s221
      %p223 = scmp.eq.s32.totalorder %s29, 0
      %p224 = por %p222, %p223
      %s226 = sadd.s32 %s225, 1
      %p229 = scmp.eq.s32.totalorder %s23, 1
      %p230 = scmp.ne.s32.totalorder %s225, %s227
      %p231 = scmp.eq.s32.totalorder %s23, 0
      %p232 = por %p230, %p231
      %p233 = scmp.ne.s32.totalorder %s225, %s227
      %p234 = scmp.eq.s32.totalorder %s28, 1
      %p235 = por %p233, %p234
      %p236 = scmp.ne.s32.totalorder %s227, %s228
      %p237 = scmp.eq.s32.totalorder %s28, 0
      %p238 = por %p236, %p237
      %p239 = scmp.ne.s32.totalorder %s227, %s228
      %p240 = scmp.eq.s32.totalorder %s29, 1
      %p241 = por %p239, %p240
      %p243 = scmp.ne.s32.totalorder %s228, %s242
      %p244 = scmp.eq.s32.totalorder %s29, 0
      %p245 = por %p243, %p244
      %s247 = sadd.s32 %s246, 1
      %p250 = scmp.eq.s32.totalorder %s23, 1
      %p251 = scmp.ne.s32.totalorder %s246, %s248
      %p252 = scmp.eq.s32.totalorder %s23, 0
      %p253 = por %p251, %p252
      %p254 = scmp.ne.s32.totalorder %s246, %s248
      %p255 = scmp.eq.s32.totalorder %s28, 1
      %p256 = por %p254, %p255
      %p257 = scmp.ne.s32.totalorder %s248, %s249
      %p258 = scmp.eq.s32.totalorder %s28, 0
      %p259 = por %p257, %p258
      %p260 = scmp.ne.s32.totalorder %s248, %s249
      %p261 = scmp.eq.s32.totalorder %s29, 1
      %p262 = por %p260, %p261
      %p264 = scmp.ne.s32.totalorder %s249, %s263
      %p265 = scmp.eq.s32.totalorder %s29, 0
      %p266 = por %p264, %p265
      %s268 = sadd.s32 %s267, 1
      %p271 = scmp.eq.s32.totalorder %s23, 1
      %p272 = scmp.ne.s32.totalorder %s267, %s269
      %p273 = scmp.eq.s32.totalorder %s23, 0
      %p274 = por %p272, %p273
      %p275 = scmp.ne.s32.totalorder %s267, %s269
      %p276 = scmp.eq.s32.totalorder %s28, 1
      %p277 = por %p275, %p276
      %p278 = scmp.ne.s32.totalorder %s269, %s270
      %p279 = scmp.eq.s32.totalorder %s28, 0
      %p280 = por %p278, %p279
      %p281 = scmp.ne.s32.totalorder %s269, %s270
      %p282 = scmp.eq.s32.totalorder %s29, 1
      %p283 = por %p281, %p282
      %p285 = scmp.ne.s32.totalorder %s270, %s284
      %p286 = scmp.eq.s32.totalorder %s29, 0
      %p287 = por %p285, %p286
      %s289 = sadd.s32 %s288, 1
      %p292 = scmp.eq.s32.totalorder %s23, 1
      %p293 = scmp.ne.s32.totalorder %s288, %s290
      %p294 = scmp.eq.s32.totalorder %s23, 0
      %p295 = por %p293, %p294
      %p296 = scmp.ne.s32.totalorder %s288, %s290
      %p297 = scmp.eq.s32.totalorder %s28, 1
      %p298 = por %p296, %p297
      %p299 = scmp.ne.s32.totalorder %s290, %s291
      %p300 = scmp.eq.s32.totalorder %s28, 0
      %p301 = por %p299, %p300
      %p302 = scmp.ne.s32.totalorder %s290, %s291
      %p303 = scmp.eq.s32.totalorder %s29, 1
      %p304 = por %p302, %p303
      %p306 = scmp.ne.s32.totalorder %s291, %s305
      %p307 = scmp.eq.s32.totalorder %s29, 0
      %p308 = por %p306, %p307
      %s310 = sadd.s32 %s309, 1
      %p313 = scmp.eq.s32.totalorder %s23, 1
      %p314 = scmp.ne.s32.totalorder %s309, %s311
      %p315 = scmp.eq.s32.totalorder %s23, 0
      %p316 = por %p314, %p315
      %p317 = scmp.ne.s32.totalorder %s309, %s311
      %p318 = scmp.eq.s32.totalorder %s28, 1
      %p319 = por %p317, %p318
      %p320 = scmp.ne.s32.totalorder %s311, %s312
      %p321 = scmp.eq.s32.totalorder %s28, 0
      %p322 = por %p320, %p321
      %p323 = scmp.ne.s32.totalorder %s311, %s312
      %p324 = scmp.eq.s32.totalorder %s29, 1
      %p325 = por %p323, %p324
      %p327 = scmp.ne.s32.totalorder %s312, %s326
      %p328 = scmp.eq.s32.totalorder %s29, 0
      %p329 = por %p327, %p328
      %s331 = sadd.s32 %s330, 1
      %p334 = scmp.eq.s32.totalorder %s23, 1
      %p335 = scmp.ne.s32.totalorder %s330, %s332
      %p336 = scmp.eq.s32.totalorder %s23, 0
      %p337 = por %p335, %p336
      %p338 = scmp.ne.s32.totalorder %s330, %s332
      %p339 = scmp.eq.s32.totalorder %s28, 1
      %p340 = por %p338, %p339
      %p341 = scmp.ne.s32.totalorder %s332, %s333
      %p342 = scmp.eq.s32.totalorder %s28, 0
      %p343 = por %p341, %p342
      %p344 = scmp.ne.s32.totalorder %s332, %s333
      %p345 = scmp.eq.s32.totalorder %s29, 1
      %p346 = por %p344, %p345
      %p348 = scmp.ne.s32.totalorder %s333, %s347
      %p349 = scmp.eq.s32.totalorder %s29, 0
      %p350 = por %p348, %p349
      %s351 = ssub.s32 %s23, %s30
      %p352 = scmp.eq.s32.totalorder %s351, 0
      %s354 = sadd.s32 %s353, 1
      %s355 = scalar_select %p352, %s353, %s354
      %p358 = pneg %p352
      %p359 = scmp.eq.s32.totalorder %s23, 1
      %p360 = por %p358, %p359
      %p361 = scmp.ne.s32.totalorder %s353, %s356
      %p362 = scmp.eq.s32.totalorder %s23, 0
      %p363 = por %p361, %p362
      %p364 = scmp.ne.s32.totalorder %s353, %s356
      %p365 = scmp.eq.s32.totalorder %s28, 1
      %p366 = por %p364, %p365
      %p367 = scmp.ne.s32.totalorder %s356, %s357
      %p368 = scmp.eq.s32.totalorder %s28, 0
      %p369 = por %p367, %p368
      %p370 = scmp.ne.s32.totalorder %s356, %s357
      %p371 = scmp.eq.s32.totalorder %s29, 1
      %p372 = por %p370, %p371
      %p374 = scmp.ne.s32.totalorder %s357, %s373
      %p375 = scmp.eq.s32.totalorder %s29, 0
      %p376 = por %p374, %p375
      %p377 = scmp.le.s32.totalorder 1, %s23
      %p378 = scmp.lt.s32.totalorder %s23, 3
      %p379 = pnand %p377, %p378
      %p380 = pneg %p379
      // Predicated region
      $region9: #{xiaohua_forward.3} parent=5 // pred_check
        _
      $region10: #{xiaohua_forward.3} parent=5 // pred_check_branch
        %382 = sbr.rel (%p379) target = $region12
      $region11: #{xiaohua_forward.3} parent=5 // pred_region
        %s383 = ssub.s32 %s23, 1
        // Predicated region
        $region13: #{xiaohua_forward.3} parent=11 // pred_check
          %p384 = pneg %p70
        $region14: #{xiaohua_forward.3} parent=11 // pred_check_branch
          %386 = sbr.rel (%p384) target = $region16
        $region15: #{xiaohua_forward.3} parent=11 // pred_region
          _
        $region16: #{xiaohua_forward.3} parent=11 // pred_fallthru
          _
        // Predicated region
        $region17: #{xiaohua_forward.3} parent=11 // pred_check
          %p387 = pneg %p91
        $region18: #{xiaohua_forward.3} parent=11 // pred_check_branch
          %389 = sbr.rel (%p387) target = $region20
        $region19: #{xiaohua_forward.3} parent=11 // pred_region
          _
        $region20: #{xiaohua_forward.3} parent=11 // pred_fallthru
          _
        // Predicated region
        $region21: #{xiaohua_forward.3} parent=11 // pred_check
          %p390 = pneg %p112
        $region22: #{xiaohua_forward.3} parent=11 // pred_check_branch
          %392 = sbr.rel (%p390) target = $region24
        $region23: #{xiaohua_forward.3} parent=11 // pred_region
          _
        $region24: #{xiaohua_forward.3} parent=11 // pred_fallthru
          _
        // Predicated region
        $region25: #{xiaohua_forward.3} parent=11 // pred_check
          %p393 = pneg %p133
        $region26: #{xiaohua_forward.3} parent=11 // pred_check_branch
          %395 = sbr.rel (%p393) target = $region28
        $region27: #{xiaohua_forward.3} parent=11 // pred_region
          _
        $region28: #{xiaohua_forward.3} parent=11 // pred_fallthru
          _
        // Predicated region
        $region29: #{xiaohua_forward.3} parent=11 // pred_check
          %p396 = pneg %p154
        $region30: #{xiaohua_forward.3} parent=11 // pred_check_branch
          %398 = sbr.rel (%p396) target = $region32
        $region31: #{xiaohua_forward.3} parent=11 // pred_region
          %s400 = ssub.s32 3072, 3072
          %401 = vsyncadd [#allocation3], %s400
          %s402 = sshll.u32 [#allocation2], 4
          %s403 = int_to_ptr.vmem [resolvable:$true] %s402
          %408 = dma.hbm_to_vmem [thread:$0]  %s5, 3072, %s403, [#allocation3], 192, 192, 12
        $region32: #{xiaohua_forward.3} parent=11 // pred_fallthru
          _
        // Predicated region
        $region33: #{xiaohua_forward.3} parent=11 // pred_check
          %p409 = pneg %p175
        $region34: #{xiaohua_forward.3} parent=11 // pred_check_branch
          %411 = sbr.rel (%p409) target = $region36
        $region35: #{xiaohua_forward.3} parent=11 // pred_region
          _
        $region36: #{xiaohua_forward.3} parent=11 // pred_fallthru
          _
        // Predicated region
        $region37: #{xiaohua_forward.3} parent=11 // pred_check
          %p412 = pneg %p196
        $region38: #{xiaohua_forward.3} parent=11 // pred_check_branch
          %414 = sbr.rel (%p412) target = $region40
        $region39: #{xiaohua_forward.3} parent=11 // pred_region
          _
        $region40: #{xiaohua_forward.3} parent=11 // pred_fallthru
          _
        // Predicated region
        $region41: #{xiaohua_forward.3} parent=11 // pred_check
          %p415 = pneg %p217
        $region42: #{xiaohua_forward.3} parent=11 // pred_check_branch
          %417 = sbr.rel (%p415) target = $region44
        $region43: #{xiaohua_forward.3} parent=11 // pred_region
          _
        $region44: #{xiaohua_forward.3} parent=11 // pred_fallthru
          _
        // Predicated region
        $region45: #{xiaohua_forward.3} parent=11 // pred_check
          %p418 = pneg %p238
        $region46: #{xiaohua_forward.3} parent=11 // pred_check_branch
          %420 = sbr.rel (%p418) target = $region48
        $region47: #{xiaohua_forward.3} parent=11 // pred_region
          _
        $region48: #{xiaohua_forward.3} parent=11 // pred_fallthru
          _
        // Predicated region
        $region49: #{xiaohua_forward.3} parent=11 // pred_check
          %p421 = pneg %p259
        $region50: #{xiaohua_forward.3} parent=11 // pred_check_branch
          %423 = sbr.rel (%p421) target = $region52
        $region51: #{xiaohua_forward.3} parent=11 // pred_region
          _
        $region52: #{xiaohua_forward.3} parent=11 // pred_fallthru
          _
        // Predicated region
        $region53: #{xiaohua_forward.3} parent=11 // pred_check
          %p424 = pneg %p280
        $region54: #{xiaohua_forward.3} parent=11 // pred_check_branch
          %426 = sbr.rel (%p424) target = $region56
        $region55: #{xiaohua_forward.3} parent=11 // pred_region
          _
        $region56: #{xiaohua_forward.3} parent=11 // pred_fallthru
          _
        // Predicated region
        $region57: #{xiaohua_forward.3} parent=11 // pred_check
          %p427 = pneg %p301
        $region58: #{xiaohua_forward.3} parent=11 // pred_check_branch
          %429 = sbr.rel (%p427) target = $region60
        $region59: #{xiaohua_forward.3} parent=11 // pred_region
          _
        $region60: #{xiaohua_forward.3} parent=11 // pred_fallthru
          _
        // Predicated region
        $region61: #{xiaohua_forward.3} parent=11 // pred_check
          %p430 = pneg %p322
        $region62: #{xiaohua_forward.3} parent=11 // pred_check_branch
          %432 = sbr.rel (%p430) target = $region64
        $region63: #{xiaohua_forward.3} parent=11 // pred_region
          %s434 = ssub.s32 4096, 4096
          %435 = vsyncadd [#allocation5], %s434
          %s436 = sshll.u32 [#allocation4], 4
          %s437 = int_to_ptr.vmem [resolvable:$true] %s436
          %442 = dma.hbm_to_vmem [thread:$0]  %s13, 4096, %s437, [#allocation5], 64, 64, 4
        $region64: #{xiaohua_forward.3} parent=11 // pred_fallthru
          _
        // Predicated region
        $region65: #{xiaohua_forward.3} parent=11 // pred_check
          %p443 = pneg %p343
        $region66: #{xiaohua_forward.3} parent=11 // pred_check_branch
          %445 = sbr.rel (%p443) target = $region68
        $region67: #{xiaohua_forward.3} parent=11 // pred_region
          _
        $region68: #{xiaohua_forward.3} parent=11 // pred_fallthru
          _
      $region12: #{xiaohua_forward.3} parent=5 // pred_fallthru
        _
      %p446 = scmp.lt.s32.totalorder %s23, 2
      // Predicated region
      $region69: #{xiaohua_forward.3} parent=5 // pred_check
        %p447 = pneg %p446
      $region70: #{xiaohua_forward.3} parent=5 // pred_check_branch
        %449 = sbr.rel (%p447) target = $region72
      $region71: #{xiaohua_forward.3} parent=5 // pred_region
        // Predicated region
        $region73: #{xiaohua_forward.3} parent=71 // pred_check
          %p450 = pneg %p43
        $region74: #{xiaohua_forward.3} parent=71 // pred_check_branch
          %452 = sbr.rel (%p450) target = $region76
        $region75: #{xiaohua_forward.3} parent=71 // pred_region
          %p453 = scmp.lt.s32.totalorder %s23, 1
          %s454 = scalar_select %p453, %s23, 1
          %s455 = smul.addr %s454, 8
          %s456 = scalar_lea.vmem %s0, %s455
        $region76: #{xiaohua_forward.3} parent=71 // pred_fallthru
          _
      $region72: #{xiaohua_forward.3} parent=5 // pred_fallthru
        _
      %p457 = scmp.le.s32.totalorder 1, %s23
      %p458 = scmp.lt.s32.totalorder %s23, 3
      %p459 = pnand %p457, %p458
      %p460 = pneg %p459
      // Predicated region
      $region77: #{xiaohua_forward.3} parent=5 // pred_check
        _
      $region78: #{xiaohua_forward.3} parent=5 // pred_check_branch
        %462 = sbr.rel (%p459) target = $region80
      $region79: #{xiaohua_forward.3} parent=5 // pred_region
        %s463 = ssub.s32 %s23, 1
        // Predicated region
        $region81: #{xiaohua_forward.3} parent=79 // pred_check
          %p464 = pneg %p154
        $region82: #{xiaohua_forward.3} parent=79 // pred_check_branch
          %466 = sbr.rel (%p464) target = $region84
        $region83: #{xiaohua_forward.3} parent=79 // pred_region
          %467 = dma.done [#allocation3], 3072
        $region84: #{xiaohua_forward.3} parent=79 // pred_fallthru
          _
        // Predicated region
        $region85: #{xiaohua_forward.3} parent=79 // pred_check
          %p468 = pneg %p322
        $region86: #{xiaohua_forward.3} parent=79 // pred_check_branch
          %470 = sbr.rel (%p468) target = $region88
        $region87: #{xiaohua_forward.3} parent=79 // pred_region
          %471 = dma.done [#allocation5], 4096
        $region88: #{xiaohua_forward.3} parent=79 // pred_fallthru
          _
        %p472 = scmp.lt.s32.totalorder %s28, 1
        %s473 = scalar_select %p472, %s28, 1
        %s474 = smul.addr %s473, 8
        %s475 = scalar_lea.vmem %s0, %s474
        %p476 = pneg %p49
        %p477 = pneg %p46
        %p478 = pneg %p70
        %p479 = pneg %p67
        %p480 = pneg %p91
        %p481 = pneg %p88
        %p482 = pneg %p112
        %p483 = pneg %p109
        %p484 = pneg %p133
        %p485 = pneg %p130
        %p486 = pneg %p154
        %p487 = pneg %p151
        %p488 = pneg %p175
        %p489 = pneg %p172
        %p490 = pneg %p196
        %p491 = pneg %p193
        %p492 = pneg %p217
        %p493 = pneg %p214
        %p494 = pneg %p238
        %p495 = pneg %p235
        %p496 = pneg %p259
        %p497 = pneg %p256
        %p498 = pneg %p280
        %p499 = pneg %p277
        %p500 = pneg %p301
        %p501 = pneg %p298
        %p502 = pneg %p322
        %p503 = pneg %p319
        %p504 = pneg %p343
        %p505 = pneg %p340
        %p506 = pneg %p369
        %p507 = pneg %p366
        %p508 = scmp.lt.s32.totalorder %s28, 1
        %s509 = scalar_select %p508, %s28, 1
        %s510 = smul.addr %s509, 8
        %s511 = scalar_lea.vmem %s15, %s510
        %p512 = scmp.lt.s32.totalorder %s28, 1
        %s513 = scalar_select %p512, %s28, 1
        %s514 = smul.addr %s513, 8
        %s515 = scalar_lea.vmem %s0, %s514
        %p516 = scmp.lt.s32.totalorder %s28, 1
        %s517 = scalar_select %p516, %s28, 1
        %s518 = smul.addr %s517, 8
        %s519 = scalar_lea.vmem %s15, %s518
        %v521 = vld [vmem:[%s515] sm:$0xff]
        %v522 = vld [vmem:[%s3] sm:$0x1]
        %v523 = vld [vmem:[%s4] sm:$0x1]
        %524 = vadd.xlane.f32.xlu0 %v521
        %v525 = vpop.xlane.xlu0 %524
        %v526 = vrcp.pop 128.0
        %v527 = vmul.f32 %v525, %v526
        %v528 = vsub.f32 %v521, %v527
        %v529 = vmul.f32 %v528, %v528
        %530 = vadd.xlane.f32.xlu0 %v529
        %v531 = vpop.xlane.xlu0 %530
        %v532 = vmul.f32 %v531, %v526
        %v533 = vadd.f32 %v532, 1e-05
        %v534 = vrsqrt.pop %v533
        %v535 = vmul.f32 %v528, %v534
        %v537 = vlaneseq
        %v538 = vshrl.u32 %v537, 7
        %v539 = vsub.s32 0, %v538
        %v540 = vrot.slane %v522, %v539
        %v542 = vmul.f32 %v535, %v540
        %v544 = vlaneseq
        %v545 = vshrl.u32 %v544, 7
        %v546 = vsub.s32 0, %v545
        %v547 = vrot.slane %v523, %v546
        %v549 = vadd.f32 %v542, %v547
        %v550 = vpack.c.bf16 %v549, %v549
        %v551 = vld [vmem:[#allocation2] sm:$0xff]
        %v552 = vld [vmem:[#allocation2 + $0x8] sm:$0xf]
        %v553 = vld [vmem:[#allocation2 + $0xc] sm:$0xff]
        %v554 = vld [vmem:[#allocation2 + $0x14] sm:$0xf]
        %v555 = vld [vmem:[#allocation2 + $0x18] sm:$0xff]
        %v556 = vld [vmem:[#allocation2 + $0x20] sm:$0xf]
        %v557 = vld [vmem:[#allocation2 + $0x24] sm:$0xff]
        %v558 = vld [vmem:[#allocation2 + $0x2c] sm:$0xf]
        %v559 = vld [vmem:[#allocation2 + $0x30] sm:$0xff]
        %v560 = vld [vmem:[#allocation2 + $0x38] sm:$0xf]
        %v561 = vld [vmem:[#allocation2 + $0x3c] sm:$0xff]
        %v562 = vld [vmem:[#allocation2 + $0x44] sm:$0xf]
        %v563 = vld [vmem:[#allocation2 + $0x48] sm:$0xff]
        %v564 = vld [vmem:[#allocation2 + $0x50] sm:$0xf]
        %v565 = vld [vmem:[#allocation2 + $0x54] sm:$0xff]
        %v566 = vld [vmem:[#allocation2 + $0x5c] sm:$0xf]
        %v567 = vld [vmem:[#allocation2 + $0x60] sm:$0xff]
        %v568 = vld [vmem:[#allocation2 + $0x68] sm:$0xf]
        %v569 = vld [vmem:[#allocation2 + $0x6c] sm:$0xff]
        %v570 = vld [vmem:[#allocation2 + $0x74] sm:$0xf]
        %v571 = vld [vmem:[#allocation2 + $0x78] sm:$0xff]
        %v572 = vld [vmem:[#allocation2 + $0x80] sm:$0xf]
        %v573 = vld [vmem:[#allocation2 + $0x84] sm:$0xff]
        %v574 = vld [vmem:[#allocation2 + $0x8c] sm:$0xf]
        %v575 = vld [vmem:[#allocation2 + $0x90] sm:$0xff]
        %v576 = vld [vmem:[#allocation2 + $0x98] sm:$0xf]
        %v577 = vld [vmem:[#allocation2 + $0x9c] sm:$0xff]
        %v578 = vld [vmem:[#allocation2 + $0xa4] sm:$0xf]
        %v579 = vld [vmem:[#allocation2 + $0xa8] sm:$0xff]
        %v580 = vld [vmem:[#allocation2 + $0xb0] sm:$0xf]
        %v581 = vld [vmem:[#allocation2 + $0xb4] sm:$0xff]
        %v582 = vld [vmem:[#allocation2 + $0xbc] sm:$0xf]
        %v583 = vld [vmem:[%s6] sm:$0x7]
        %v585 = vlaneseq
        %v586 = vshrl.u32 %v585, 7
        %v587 = vsub.s32 0, %v586
        %v588 = vrot.slane %v583, %v587
        %v589 = vlaneseq
        %v590 = vshrl.u32 %v589, 7
        %v591 = vsub.s32 1, %v590
        %v592 = vrot.slane %v583, %v591
        %v593 = vlaneseq
        %v594 = vshrl.u32 %v593, 7
        %v595 = vsub.s32 2, %v594
        %v596 = vrot.slane %v583, %v595
        %v632 = vunpack.c.l.b16 %v551
        %v633 = vunpack.c.h.b16 %v551
        %v634 = vunpack.c.l.b16 %v552
        %v635 = vunpack.c.l.b16 %v553
        %v636 = vunpack.c.h.b16 %v553
        %v637 = vunpack.c.l.b16 %v554
        %v638 = vunpack.c.l.b16 %v555
        %v639 = vunpack.c.h.b16 %v555
        %v640 = vunpack.c.l.b16 %v556
        %v641 = vunpack.c.l.b16 %v557
        %v642 = vunpack.c.h.b16 %v557
        %v643 = vunpack.c.l.b16 %v558
        %v644 = vunpack.c.l.b16 %v559
        %v645 = vunpack.c.h.b16 %v559
        %v646 = vunpack.c.l.b16 %v560
        %v647 = vunpack.c.l.b16 %v561
        %v648 = vunpack.c.h.b16 %v561
        %v649 = vunpack.c.l.b16 %v562
        %v650 = vunpack.c.l.b16 %v563
        %v651 = vunpack.c.h.b16 %v563
        %v652 = vunpack.c.l.b16 %v564
        %v653 = vunpack.c.l.b16 %v565
        %v654 = vunpack.c.h.b16 %v565
        %v655 = vunpack.c.l.b16 %v566
        %v656 = vunpack.c.l.b16 %v567
        %v657 = vunpack.c.h.b16 %v567
        %v658 = vunpack.c.l.b16 %v568
        %v659 = vunpack.c.l.b16 %v569
        %v660 = vunpack.c.h.b16 %v569
        %v661 = vunpack.c.l.b16 %v570
        %v662 = vunpack.c.l.b16 %v571
        %v663 = vunpack.c.h.b16 %v571
        %v664 = vunpack.c.l.b16 %v572
        %v665 = vunpack.c.l.b16 %v573
        %v666 = vunpack.c.h.b16 %v573
        %v667 = vunpack.c.l.b16 %v574
        %v668 = vunpack.c.l.b16 %v575
        %v669 = vunpack.c.h.b16 %v575
        %v670 = vunpack.c.l.b16 %v576
        %v671 = vunpack.c.l.b16 %v577
        %v672 = vunpack.c.h.b16 %v577
        %v673 = vunpack.c.l.b16 %v578
        %v674 = vunpack.c.l.b16 %v579
        %v675 = vunpack.c.h.b16 %v579
        %v676 = vunpack.c.l.b16 %v580
        %v677 = vunpack.c.l.b16 %v581
        %v678 = vunpack.c.h.b16 %v581
        %v679 = vunpack.c.l.b16 %v582
        %v680 = vpack.c.b16 %v635, %v632
        %v681 = vpack.c.b16 %v636, %v633
        %v682 = vpack.c.b16 %v637, %v634
        %v683 = vpack.c.b16 %v641, %v638
        %v684 = vpack.c.b16 %v642, %v639
        %v685 = vpack.c.b16 %v643, %v640
        %v686 = vpack.c.b16 %v647, %v644
        %v687 = vpack.c.b16 %v648, %v645
        %v688 = vpack.c.b16 %v649, %v646
        %v689 = vpack.c.b16 %v653, %v650
        %v690 = vpack.c.b16 %v654, %v651
        %v691 = vpack.c.b16 %v655, %v652
        %v692 = vpack.c.b16 %v659, %v656
        %v693 = vpack.c.b16 %v660, %v657
        %v694 = vpack.c.b16 %v661, %v658
        %v695 = vpack.c.b16 %v665, %v662
        %v696 = vpack.c.b16 %v666, %v663
        %v697 = vpack.c.b16 %v667, %v664
        %v698 = vpack.c.b16 %v671, %v668
        %v699 = vpack.c.b16 %v672, %v669
        %v700 = vpack.c.b16 %v673, %v670
        %v701 = vpack.c.b16 %v677, %v674
        %v702 = vpack.c.b16 %v678, %v675
        %v703 = vpack.c.b16 %v679, %v676
        %728 = vmatprep.subr.bf16.mxu0 %v702
        %729 = vmatpush1.bf16.msra.mxu0 %v701
        %730 = vmatprep.subr.bf16.mxu0 %v699
        %731 = vmatpush1.bf16.msra.mxu0 %v698
        %732 = vmatprep.subr.bf16.mxu0 %v696
        %733 = vmatpush1.bf16.msra.mxu0 %v695
        %734 = vmatprep.subr.bf16.mxu0 %v693
        %735 = vmatpush1.bf16.msra.mxu0 %v692
        %736 = vmatprep.subr.bf16.mxu0 %v690
        %737 = vmatpush1.bf16.msra.mxu0 %v689
        %738 = vmatprep.subr.bf16.mxu0 %v687
        %739 = vmatpush1.bf16.msra.mxu0 %v686
        %740 = vmatprep.subr.bf16.mxu0 %v684
        %741 = vmatpush1.bf16.msra.mxu0 %v683
        %742 = vmatprep.subr.bf16.mxu0 %v681
        %743 = vmatpush1.bf16.msra.mxu0 %v680
        %744 = vmatprep.subr.bf16.mxu0 0
        %745 = vmatpush2.bf16.msra.mxu0 0
        %746 = vmatprep.subr.bf16.mxu0 0
        %747 = vmatpush2.bf16.msra.mxu0 0
        %748 = vmatprep.subr.bf16.mxu0 0
        %749 = vmatpush2.bf16.msra.mxu0 0
        %750 = vmatprep.subr.bf16.mxu0 0
        %751 = vmatpush2.bf16.msra.mxu0 0
        %752 = vmatprep.subr.bf16.mxu0 0
        %753 = vmatpush2.bf16.msra.mxu0 0
        %754 = vmatprep.subr.bf16.mxu0 0
        %755 = vmatpush2.bf16.msra.mxu0 0
        %756 = vmatprep.subr.bf16.mxu0 0
        %757 = vmatpush2.bf16.msra.mxu0 0
        %758 = vmatprep.subr.bf16.mxu0 0
        %759 = vmatpush2.bf16.msra.mxu0 0
        %760 = vmatprep.mubr.bf16.mxu0 0
        %761 = vmatmul.mubr.bf16.gmra.mxu0 %v550
        %v762 = vpop.f32.mrf.mxu0
        %v763 = vadd.f32 %v588, %v762
        %v764 = vpop.f32.mrf.mxu0
        %v765 = vadd.f32 %v592, %v764
        %v766 = vpop.f32.mrf.mxu0
        %v767 = vpop.f32.mrf.mxu0
        %768 = vdwg.mxu0
        %769 = vmatprep.subr.bf16.mxu0 0
        %770 = vmatpush1.bf16.msra.mxu0 %v703
        %771 = vmatprep.subr.bf16.mxu0 0
        %772 = vmatpush1.bf16.msra.mxu0 %v700
        %773 = vmatprep.subr.bf16.mxu0 0
        %774 = vmatpush1.bf16.msra.mxu0 %v697
        %775 = vmatprep.subr.bf16.mxu0 0
        %776 = vmatpush1.bf16.msra.mxu0 %v694
        %777 = vmatprep.subr.bf16.mxu0 0
        %778 = vmatpush1.bf16.msra.mxu0 %v691
        %779 = vmatprep.subr.bf16.mxu0 0
        %780 = vmatpush1.bf16.msra.mxu0 %v688
        %781 = vmatprep.subr.bf16.mxu0 0
        %782 = vmatpush1.bf16.msra.mxu0 %v685
        %783 = vmatprep.subr.bf16.mxu0 0
        %784 = vmatpush1.bf16.msra.mxu0 %v682
        %785 = vmatprep.subr.bf16.mxu0 0
        %786 = vmatpush2.bf16.msra.mxu0 0
        %787 = vmatprep.subr.bf16.mxu0 0
        %788 = vmatpush2.bf16.msra.mxu0 0
        %789 = vmatprep.subr.bf16.mxu0 0
        %790 = vmatpush2.bf16.msra.mxu0 0
        %791 = vmatprep.subr.bf16.mxu0 0
        %792 = vmatpush2.bf16.msra.mxu0 0
        %793 = vmatprep.subr.bf16.mxu0 0
        %794 = vmatpush2.bf16.msra.mxu0 0
        %795 = vmatprep.subr.bf16.mxu0 0
        %796 = vmatpush2.bf16.msra.mxu0 0
        %797 = vmatprep.subr.bf16.mxu0 0
        %798 = vmatpush2.bf16.msra.mxu0 0
        %799 = vmatprep.subr.bf16.mxu0 0
        %800 = vmatpush2.bf16.msra.mxu0 0
        %801 = vmatprep.mubr.bf16.mxu0 0
        %802 = vmatmul.mubr.bf16.gmra.mxu0 %v550
        %v803 = vpop.f32.mrf.mxu0
        %v804 = vadd.f32 %v596, %v803
        %v805 = vpop.f32.mrf.mxu0
        %v806 = vpop.f32.mrf.mxu0
        %v807 = vpop.f32.mrf.mxu0
        %808 = vdwg.mxu0
        %v809 = vld [vmem:[%s1] sm:$0xff]
        %v810 = vld [vmem:[%s2] sm:$0xff]
        %v811 = vmul.f32 %v763, %v809
        %v812 = vsub.f32 0.0, %v763
        %814 = vrot.lane.b32.xlu0 %v812, 120
        %v815 = vpop.permute.xlu0 %814
        %818 = vrot.lane.b32.xlu0 %v763, 8
        %v819 = vpop.permute.xlu0 %818
        %vm821 = vcmask 64512
        %v822 = vsel %vm821, %v815, %v819
        %vm823 = vcmask 130048
        %v824 = vsel %vm823, %v822, %v763
        %vm825 = vcmask 261120
        %v826 = vsel %vm825, %v824, %v815
        %vm827 = vcmask 326656
        %v828 = vsel %vm827, %v826, %v819
        %vm829 = vcmask 392192
        %v830 = vsel %vm829, %v828, %v763
        %vm831 = vcmask 523264
        %v832 = vsel %vm831, %v830, %v815
        %vm833 = vcmask 588800
        %v834 = vsel %vm833, %v832, %v819
        %vm835 = vcmask 654336
        %v836 = vsel %vm835, %v834, %v763
        %vm837 = vcmask 785408
        %v838 = vsel %vm837, %v836, %v815
        %vm839 = vcmask 850944
        %v840 = vsel %vm839, %v838, %v819
        %vm841 = vcmask 916480
        %v842 = vsel %vm841, %v840, %v763
        %v843 = vmul.f32 %v842, %v810
        %v844 = vadd.f32 %v811, %v843
        %v845 = vmul.f32 %v765, %v809
        %v846 = vsub.f32 0.0, %v765
        %848 = vrot.lane.b32.xlu0 %v846, 120
        %v849 = vpop.permute.xlu0 %848
        %852 = vrot.lane.b32.xlu0 %v765, 8
        %v853 = vpop.permute.xlu0 %852
        %v855 = vsel %vm821, %v849, %v853
        %v856 = vsel %vm823, %v855, %v765
        %v857 = vsel %vm825, %v856, %v849
        %v858 = vsel %vm827, %v857, %v853
        %v859 = vsel %vm829, %v858, %v765
        %v860 = vsel %vm831, %v859, %v849
        %v861 = vsel %vm833, %v860, %v853
        %v862 = vsel %vm835, %v861, %v765
        %v863 = vsel %vm837, %v862, %v849
        %v864 = vsel %vm839, %v863, %v853
        %v865 = vsel %vm841, %v864, %v765
        %v866 = vmul.f32 %v865, %v810
        %v867 = vadd.f32 %v845, %v866
        %v868 = vlaneseq
        %v869 = vshrl.u32 %v868, 7
        %v870 = vlaneseq
        %v871 = vand.u32 %v870, 127
        %vm872 = vcmp.le.s32.totalorder %v871, %v869
        %v873 = vmul.f32 %v844, 0.17677669
        %v874 = vpack.c.bf16 %v873, %v873
        %v875 = vpack.c.bf16 %v867, %v867
        %v876 = vpack.c.bf16 %v804, %v804
        %v878 = vsel %vm825, %v874, 0
        %v881 = vsel %vm825, %v875, 0
        %883 = vmatprep.subr.bf16.mxu0 0
        %884 = vmatpush1.bf16.xpose.msra.mxu0 0
        %885 = vmatprep.subr.bf16.mxu0 0
        %886 = vmatpush1.bf16.xpose.msra.mxu0 0
        %887 = vmatprep.subr.bf16.mxu0 0
        %888 = vmatpush1.bf16.xpose.msra.mxu0 0
        %889 = vmatprep.subr.bf16.mxu0 0
        %890 = vmatpush1.bf16.xpose.msra.mxu0 0
        %891 = vmatprep.subr.bf16.mxu0 0
        %892 = vmatpush1.bf16.xpose.msra.mxu0 0
        %893 = vmatprep.subr.bf16.mxu0 0
        %894 = vmatpush1.bf16.xpose.msra.mxu0 0
        %895 = vmatprep.subr.bf16.mxu0 0
        %896 = vmatpush1.bf16.xpose.msra.mxu0 0
        %897 = vmatprep.subr.bf16.mxu0 0
        %898 = vmatpush1.bf16.xpose.msra.mxu0 %v881
        %899 = vmatprep.subr.bf16.mxu0 0
        %900 = vmatpush2.bf16.xpose.msra.mxu0 0
        %901 = vmatprep.subr.bf16.mxu0 0
        %902 = vmatpush2.bf16.xpose.msra.mxu0 0
        %903 = vmatprep.subr.bf16.mxu0 0
        %904 = vmatpush2.bf16.xpose.msra.mxu0 0
        %905 = vmatprep.subr.bf16.mxu0 0
        %906 = vmatpush2.bf16.xpose.msra.mxu0 0
        %907 = vmatprep.subr.bf16.mxu0 0
        %908 = vmatpush2.bf16.xpose.msra.mxu0 0
        %909 = vmatprep.subr.bf16.mxu0 0
        %910 = vmatpush2.bf16.xpose.msra.mxu0 0
        %911 = vmatprep.subr.bf16.mxu0 0
        %912 = vmatpush2.bf16.xpose.msra.mxu0 0
        %913 = vmatprep.subr.bf16.mxu0 0
        %914 = vmatpush2.bf16.xpose.msra.mxu0 0
        %915 = vmatprep.mubr.bf16.mxu0 0
        %916 = vmatmul.mubr.bf16.gmra.mxu0 %v878
        %v917 = vpop.f32.mrf.mxu0
        %v918 = vadd.f32 0.0, %v917
        %v919 = vpop.f32.mrf.mxu0
        %v920 = vpop.f32.mrf.mxu0
        %v921 = vpop.f32.mrf.mxu0
        %922 = vdwg.mxu0
        %v923 = vsel %vm872, %v918, -1e+30
        %v924 = vsel %vm821, %v923, -inf
        %925 = vmax.xlane.f32.xlu0 %v924
        %v926 = vpop.xlane.xlu0 %925
        %v927 = vsub.f32 %v923, %v926
        %v928 = vmul.f32 %v927, 1.442695
        %v929 = vpow.pop %v928
        %v930 = vsel %vm821, %v929, 0.0
        %931 = vadd.xlane.f32.xlu0 %v930
        %v932 = vpop.xlane.xlu0 %931
        %v933 = vrcp.pop %v932
        %v934 = vmul.f32 %v929, %v933
        %v935 = vpack.c.bf16 %v934, %v934
        %v937 = vsel %vm821, %v935, 0
        %vm939 = vcmask 1043456
        %v941 = vsel %vm939, %v876, 0
        %943 = vmatprep.subr.bf16.mxu0 0
        %944 = vmatpush1.bf16.msra.mxu0 0
        %945 = vmatprep.subr.bf16.mxu0 0
        %946 = vmatpush1.bf16.msra.mxu0 0
        %947 = vmatprep.subr.bf16.mxu0 0
        %948 = vmatpush1.bf16.msra.mxu0 0
        %949 = vmatprep.subr.bf16.mxu0 0
        %950 = vmatpush1.bf16.msra.mxu0 0
        %951 = vmatprep.subr.bf16.mxu0 0
        %952 = vmatpush1.bf16.msra.mxu0 0
        %953 = vmatprep.subr.bf16.mxu0 0
        %954 = vmatpush1.bf16.msra.mxu0 0
        %955 = vmatprep.subr.bf16.mxu0 0
        %956 = vmatpush1.bf16.msra.mxu0 0
        %957 = vmatprep.subr.bf16.mxu0 0
        %958 = vmatpush1.bf16.msra.mxu0 %v941
        %959 = vmatprep.subr.bf16.mxu0 0
        %960 = vmatpush2.bf16.msra.mxu0 0
        %961 = vmatprep.subr.bf16.mxu0 0
        %962 = vmatpush2.bf16.msra.mxu0 0
        %963 = vmatprep.subr.bf16.mxu0 0
        %964 = vmatpush2.bf16.msra.mxu0 0
        %965 = vmatprep.subr.bf16.mxu0 0
        %966 = vmatpush2.bf16.msra.mxu0 0
        %967 = vmatprep.subr.bf16.mxu0 0
        %968 = vmatpush2.bf16.msra.mxu0 0
        %969 = vmatprep.subr.bf16.mxu0 0
        %970 = vmatpush2.bf16.msra.mxu0 0
        %971 = vmatprep.subr.bf16.mxu0 0
        %972 = vmatpush2.bf16.msra.mxu0 0
        %973 = vmatprep.subr.bf16.mxu0 0
        %974 = vmatpush2.bf16.msra.mxu0 0
        %975 = vmatprep.mubr.bf16.mxu0 0
        %976 = vmatmul.mubr.bf16.gmra.mxu0 %v937
        %v977 = vpop.f32.mrf.mxu0
        %v978 = vadd.f32 0.0, %v977
        %v979 = vpop.f32.mrf.mxu0
        %v980 = vpop.f32.mrf.mxu0
        %v981 = vpop.f32.mrf.mxu0
        %982 = vdwg.mxu0
        %984 = vrot.lane.b32.xlu0 %v874, 96
        %v985 = vpop.permute.xlu0 %984
        %987 = vrot.lane.b32.xlu0 %v875, 96
        %v988 = vpop.permute.xlu0 %987
        %v990 = vsel %vm825, %v985, 0
        %v993 = vsel %vm825, %v988, 0
        %995 = vmatprep.subr.bf16.mxu0 0
        %996 = vmatpush1.bf16.xpose.msra.mxu0 0
        %997 = vmatprep.subr.bf16.mxu0 0
        %998 = vmatpush1.bf16.xpose.msra.mxu0 0
        %999 = vmatprep.subr.bf16.mxu0 0
        %1000 = vmatpush1.bf16.xpose.msra.mxu0 0
        %1001 = vmatprep.subr.bf16.mxu0 0
        %1002 = vmatpush1.bf16.xpose.msra.mxu0 0
        %1003 = vmatprep.subr.bf16.mxu0 0
        %1004 = vmatpush1.bf16.xpose.msra.mxu0 0
        %1005 = vmatprep.subr.bf16.mxu0 0
        %1006 = vmatpush1.bf16.xpose.msra.mxu0 0
        %1007 = vmatprep.subr.bf16.mxu0 0
        %1008 = vmatpush1.bf16.xpose.msra.mxu0 0
        %1009 = vmatprep.subr.bf16.mxu0 0
        %1010 = vmatpush1.bf16.xpose.msra.mxu0 %v993
        %1011 = vmatprep.subr.bf16.mxu0 0
        %1012 = vmatpush2.bf16.xpose.msra.mxu0 0
        %1013 = vmatprep.subr.bf16.mxu0 0
        %1014 = vmatpush2.bf16.xpose.msra.mxu0 0
        %1015 = vmatprep.subr.bf16.mxu0 0
        %1016 = vmatpush2.bf16.xpose.msra.mxu0 0
        %1017 = vmatprep.subr.bf16.mxu0 0
        %1018 = vmatpush2.bf16.xpose.msra.mxu0 0
        %1019 = vmatprep.subr.bf16.mxu0 0
        %1020 = vmatpush2.bf16.xpose.msra.mxu0 0
        %1021 = vmatprep.subr.bf16.mxu0 0
        %1022 = vmatpush2.bf16.xpose.msra.mxu0 0
        %1023 = vmatprep.subr.bf16.mxu0 0
        %1024 = vmatpush2.bf16.xpose.msra.mxu0 0
        %1025 = vmatprep.subr.bf16.mxu0 0
        %1026 = vmatpush2.bf16.xpose.msra.mxu0 0
        %1027 = vmatprep.mubr.bf16.mxu0 0
        %1028 = vmatmul.mubr.bf16.gmra.mxu0 %v990
        %v1029 = vpop.f32.mrf.mxu0
        %v1030 = vadd.f32 0.0, %v1029
        %v1031 = vpop.f32.mrf.mxu0
        %v1032 = vpop.f32.mrf.mxu0
        %v1033 = vpop.f32.mrf.mxu0
        %1034 = vdwg.mxu0
        %v1035 = vsel %vm872, %v1030, -1e+30
        %v1036 = vsel %vm821, %v1035, -inf
        %1037 = vmax.xlane.f32.xlu0 %v1036
        %v1038 = vpop.xlane.xlu0 %1037
        %v1039 = vsub.f32 %v1035, %v1038
        %v1040 = vmul.f32 %v1039, 1.442695
        %v1041 = vpow.pop %v1040
        %v1042 = vsel %vm821, %v1041, 0.0
        %1043 = vadd.xlane.f32.xlu0 %v1042
        %v1044 = vpop.xlane.xlu0 %1043
        %v1045 = vrcp.pop %v1044
        %v1046 = vmul.f32 %v1041, %v1045
        %v1047 = vpack.c.bf16 %v1046, %v1046
        %1049 = vrot.lane.b32.xlu0 %v876, 96
        %v1050 = vpop.permute.xlu0 %1049
        %v1052 = vsel %vm821, %v1047, 0
        %v1055 = vsel %vm939, %v1050, 0
        %1057 = vmatprep.subr.bf16.mxu0 0
        %1058 = vmatpush1.bf16.msra.mxu0 0
        %1059 = vmatprep.subr.bf16.mxu0 0
        %1060 = vmatpush1.bf16.msra.mxu0 0
        %1061 = vmatprep.subr.bf16.mxu0 0
        %1062 = vmatpush1.bf16.msra.mxu0 0
        %1063 = vmatprep.subr.bf16.mxu0 0
        %1064 = vmatpush1.bf16.msra.mxu0 0
        %1065 = vmatprep.subr.bf16.mxu0 0
        %1066 = vmatpush1.bf16.msra.mxu0 0
        %1067 = vmatprep.subr.bf16.mxu0 0
        %1068 = vmatpush1.bf16.msra.mxu0 0
        %1069 = vmatprep.subr.bf16.mxu0 0
        %1070 = vmatpush1.bf16.msra.mxu0 0
        %1071 = vmatprep.subr.bf16.mxu0 0
        %1072 = vmatpush1.bf16.msra.mxu0 %v1055
        %1073 = vmatprep.subr.bf16.mxu0 0
        %1074 = vmatpush2.bf16.msra.mxu0 0
        %1075 = vmatprep.subr.bf16.mxu0 0
        %1076 = vmatpush2.bf16.msra.mxu0 0
        %1077 = vmatprep.subr.bf16.mxu0 0
        %1078 = vmatpush2.bf16.msra.mxu0 0
        %1079 = vmatprep.subr.bf16.mxu0 0
        %1080 = vmatpush2.bf16.msra.mxu0 0
        %1081 = vmatprep.subr.bf16.mxu0 0
        %1082 = vmatpush2.bf16.msra.mxu0 0
        %1083 = vmatprep.subr.bf16.mxu0 0
        %1084 = vmatpush2.bf16.msra.mxu0 0
        %1085 = vmatprep.subr.bf16.mxu0 0
        %1086 = vmatpush2.bf16.msra.mxu0 0
        %1087 = vmatprep.subr.bf16.mxu0 0
        %1088 = vmatpush2.bf16.msra.mxu0 0
        %1089 = vmatprep.mubr.bf16.mxu0 0
        %1090 = vmatmul.mubr.bf16.gmra.mxu0 %v1052
        %v1091 = vpop.f32.mrf.mxu0
        %v1092 = vadd.f32 0.0, %v1091
        %v1093 = vpop.f32.mrf.mxu0
        %v1094 = vpop.f32.mrf.mxu0
        %v1095 = vpop.f32.mrf.mxu0
        %1096 = vdwg.mxu0
        %1097 = vrot.lane.b32.xlu0 %v874, 64
        %v1098 = vpop.permute.xlu0 %1097
        %1099 = vrot.lane.b32.xlu0 %v875, 64
        %v1100 = vpop.permute.xlu0 %1099
        %v1102 = vsel %vm825, %v1098, 0
        %v1105 = vsel %vm825, %v1100, 0
        %1107 = vmatprep.subr.bf16.mxu0 0
        %1108 = vmatpush1.bf16.xpose.msra.mxu0 0
        %1109 = vmatprep.subr.bf16.mxu0 0
        %1110 = vmatpush1.bf16.xpose.msra.mxu0 0
        %1111 = vmatprep.subr.bf16.mxu0 0
        %1112 = vmatpush1.bf16.xpose.msra.mxu0 0
        %1113 = vmatprep.subr.bf16.mxu0 0
        %1114 = vmatpush1.bf16.xpose.msra.mxu0 0
        %1115 = vmatprep.subr.bf16.mxu0 0
        %1116 = vmatpush1.bf16.xpose.msra.mxu0 0
        %1117 = vmatprep.subr.bf16.mxu0 0
        %1118 = vmatpush1.bf16.xpose.msra.mxu0 0
        %1119 = vmatprep.subr.bf16.mxu0 0
        %1120 = vmatpush1.bf16.xpose.msra.mxu0 0
        %1121 = vmatprep.subr.bf16.mxu0 0
        %1122 = vmatpush1.bf16.xpose.msra.mxu0 %v1105
        %1123 = vmatprep.subr.bf16.mxu0 0
        %1124 = vmatpush2.bf16.xpose.msra.mxu0 0
        %1125 = vmatprep.subr.bf16.mxu0 0
        %1126 = vmatpush2.bf16.xpose.msra.mxu0 0
        %1127 = vmatprep.subr.bf16.mxu0 0
        %1128 = vmatpush2.bf16.xpose.msra.mxu0 0
        %1129 = vmatprep.subr.bf16.mxu0 0
        %1130 = vmatpush2.bf16.xpose.msra.mxu0 0
        %1131 = vmatprep.subr.bf16.mxu0 0
        %1132 = vmatpush2.bf16.xpose.msra.mxu0 0
        %1133 = vmatprep.subr.bf16.mxu0 0
        %1134 = vmatpush2.bf16.xpose.msra.mxu0 0
        %1135 = vmatprep.subr.bf16.mxu0 0
        %1136 = vmatpush2.bf16.xpose.msra.mxu0 0
        %1137 = vmatprep.subr.bf16.mxu0 0
        %1138 = vmatpush2.bf16.xpose.msra.mxu0 0
        %1139 = vmatprep.mubr.bf16.mxu0 0
        %1140 = vmatmul.mubr.bf16.gmra.mxu0 %v1102
        %v1141 = vpop.f32.mrf.mxu0
        %v1142 = vadd.f32 0.0, %v1141
        %v1143 = vpop.f32.mrf.mxu0
        %v1144 = vpop.f32.mrf.mxu0
        %v1145 = vpop.f32.mrf.mxu0
        %1146 = vdwg.mxu0
        %v1147 = vsel %vm872, %v1142, -1e+30
        %v1148 = vsel %vm821, %v1147, -inf
        %1149 = vmax.xlane.f32.xlu0 %v1148
        %v1150 = vpop.xlane.xlu0 %1149
        %v1151 = vsub.f32 %v1147, %v1150
        %v1152 = vmul.f32 %v1151, 1.442695
        %v1153 = vpow.pop %v1152
        %v1154 = vsel %vm821, %v1153, 0.0
        %1155 = vadd.xlane.f32.xlu0 %v1154
        %v1156 = vpop.xlane.xlu0 %1155
        %v1157 = vrcp.pop %v1156
        %v1158 = vmul.f32 %v1153, %v1157
        %v1159 = vpack.c.bf16 %v1158, %v1158
        %1160 = vrot.lane.b32.xlu0 %v876, 64
        %v1161 = vpop.permute.xlu0 %1160
        %v1163 = vsel %vm821, %v1159, 0
        %v1166 = vsel %vm939, %v1161, 0
        %1168 = vmatprep.subr.bf16.mxu0 0
        %1169 = vmatpush1.bf16.msra.mxu0 0
        %1170 = vmatprep.subr.bf16.mxu0 0
        %1171 = vmatpush1.bf16.msra.mxu0 0
        %1172 = vmatprep.subr.bf16.mxu0 0
        %1173 = vmatpush1.bf16.msra.mxu0 0
        %1174 = vmatprep.subr.bf16.mxu0 0
        %1175 = vmatpush1.bf16.msra.mxu0 0
        %1176 = vmatprep.subr.bf16.mxu0 0
        %1177 = vmatpush1.bf16.msra.mxu0 0
        %1178 = vmatprep.subr.bf16.mxu0 0
        %1179 = vmatpush1.bf16.msra.mxu0 0
        %1180 = vmatprep.subr.bf16.mxu0 0
        %1181 = vmatpush1.bf16.msra.mxu0 0
        %1182 = vmatprep.subr.bf16.mxu0 0
        %1183 = vmatpush1.bf16.msra.mxu0 %v1166
        %1184 = vmatprep.subr.bf16.mxu0 0
        %1185 = vmatpush2.bf16.msra.mxu0 0
        %1186 = vmatprep.subr.bf16.mxu0 0
        %1187 = vmatpush2.bf16.msra.mxu0 0
        %1188 = vmatprep.subr.bf16.mxu0 0
        %1189 = vmatpush2.bf16.msra.mxu0 0
        %1190 = vmatprep.subr.bf16.mxu0 0
        %1191 = vmatpush2.bf16.msra.mxu0 0
        %1192 = vmatprep.subr.bf16.mxu0 0
        %1193 = vmatpush2.bf16.msra.mxu0 0
        %1194 = vmatprep.subr.bf16.mxu0 0
        %1195 = vmatpush2.bf16.msra.mxu0 0
        %1196 = vmatprep.subr.bf16.mxu0 0
        %1197 = vmatpush2.bf16.msra.mxu0 0
        %1198 = vmatprep.subr.bf16.mxu0 0
        %1199 = vmatpush2.bf16.msra.mxu0 0
        %1200 = vmatprep.mubr.bf16.mxu0 0
        %1201 = vmatmul.mubr.bf16.gmra.mxu0 %v1163
        %v1202 = vpop.f32.mrf.mxu0
        %v1203 = vadd.f32 0.0, %v1202
        %v1204 = vpop.f32.mrf.mxu0
        %v1205 = vpop.f32.mrf.mxu0
        %v1206 = vpop.f32.mrf.mxu0
        %1207 = vdwg.mxu0
        %1208 = vrot.lane.b32.xlu0 %v874, 32
        %v1209 = vpop.permute.xlu0 %1208
        %1210 = vrot.lane.b32.xlu0 %v875, 32
        %v1211 = vpop.permute.xlu0 %1210
        %v1213 = vsel %vm825, %v1209, 0
        %v1216 = vsel %vm825, %v1211, 0
        %1218 = vmatprep.subr.bf16.mxu0 0
        %1219 = vmatpush1.bf16.xpose.msra.mxu0 0
        %1220 = vmatprep.subr.bf16.mxu0 0
        %1221 = vmatpush1.bf16.xpose.msra.mxu0 0
        %1222 = vmatprep.subr.bf16.mxu0 0
        %1223 = vmatpush1.bf16.xpose.msra.mxu0 0
        %1224 = vmatprep.subr.bf16.mxu0 0
        %1225 = vmatpush1.bf16.xpose.msra.mxu0 0
        %1226 = vmatprep.subr.bf16.mxu0 0
        %1227 = vmatpush1.bf16.xpose.msra.mxu0 0
        %1228 = vmatprep.subr.bf16.mxu0 0
        %1229 = vmatpush1.bf16.xpose.msra.mxu0 0
        %1230 = vmatprep.subr.bf16.mxu0 0
        %1231 = vmatpush1.bf16.xpose.msra.mxu0 0
        %1232 = vmatprep.subr.bf16.mxu0 0
        %1233 = vmatpush1.bf16.xpose.msra.mxu0 %v1216
        %1234 = vmatprep.subr.bf16.mxu0 0
        %1235 = vmatpush2.bf16.xpose.msra.mxu0 0
        %1236 = vmatprep.subr.bf16.mxu0 0
        %1237 = vmatpush2.bf16.xpose.msra.mxu0 0
        %1238 = vmatprep.subr.bf16.mxu0 0
        %1239 = vmatpush2.bf16.xpose.msra.mxu0 0
        %1240 = vmatprep.subr.bf16.mxu0 0
        %1241 = vmatpush2.bf16.xpose.msra.mxu0 0
        %1242 = vmatprep.subr.bf16.mxu0 0
        %1243 = vmatpush2.bf16.xpose.msra.mxu0 0
        %1244 = vmatprep.subr.bf16.mxu0 0
        %1245 = vmatpush2.bf16.xpose.msra.mxu0 0
        %1246 = vmatprep.subr.bf16.mxu0 0
        %1247 = vmatpush2.bf16.xpose.msra.mxu0 0
        %1248 = vmatprep.subr.bf16.mxu0 0
        %1249 = vmatpush2.bf16.xpose.msra.mxu0 0
        %1250 = vmatprep.mubr.bf16.mxu0 0
        %1251 = vmatmul.mubr.bf16.gmra.mxu0 %v1213
        %v1252 = vpop.f32.mrf.mxu0
        %v1253 = vadd.f32 0.0, %v1252
        %v1254 = vpop.f32.mrf.mxu0
        %v1255 = vpop.f32.mrf.mxu0
        %v1256 = vpop.f32.mrf.mxu0
        %1257 = vdwg.mxu0
        %v1258 = vsel %vm872, %v1253, -1e+30
        %v1259 = vsel %vm821, %v1258, -inf
        %1260 = vmax.xlane.f32.xlu0 %v1259
        %v1261 = vpop.xlane.xlu0 %1260
        %v1262 = vsub.f32 %v1258, %v1261
        %v1263 = vmul.f32 %v1262, 1.442695
        %v1264 = vpow.pop %v1263
        %v1265 = vsel %vm821, %v1264, 0.0
        %1266 = vadd.xlane.f32.xlu0 %v1265
        %v1267 = vpop.xlane.xlu0 %1266
        %v1268 = vrcp.pop %v1267
        %v1269 = vmul.f32 %v1264, %v1268
        %v1270 = vpack.c.bf16 %v1269, %v1269
        %1271 = vrot.lane.b32.xlu0 %v876, 32
        %v1272 = vpop.permute.xlu0 %1271
        %v1274 = vsel %vm821, %v1270, 0
        %v1277 = vsel %vm939, %v1272, 0
        %1279 = vmatprep.subr.bf16.mxu0 0
        %1280 = vmatpush1.bf16.msra.mxu0 0
        %1281 = vmatprep.subr.bf16.mxu0 0
        %1282 = vmatpush1.bf16.msra.mxu0 0
        %1283 = vmatprep.subr.bf16.mxu0 0
        %1284 = vmatpush1.bf16.msra.mxu0 0
        %1285 = vmatprep.subr.bf16.mxu0 0
        %1286 = vmatpush1.bf16.msra.mxu0 0
        %1287 = vmatprep.subr.bf16.mxu0 0
        %1288 = vmatpush1.bf16.msra.mxu0 0
        %1289 = vmatprep.subr.bf16.mxu0 0
        %1290 = vmatpush1.bf16.msra.mxu0 0
        %1291 = vmatprep.subr.bf16.mxu0 0
        %1292 = vmatpush1.bf16.msra.mxu0 0
        %1293 = vmatprep.subr.bf16.mxu0 0
        %1294 = vmatpush1.bf16.msra.mxu0 %v1277
        %1295 = vmatprep.subr.bf16.mxu0 0
        %1296 = vmatpush2.bf16.msra.mxu0 0
        %1297 = vmatprep.subr.bf16.mxu0 0
        %1298 = vmatpush2.bf16.msra.mxu0 0
        %1299 = vmatprep.subr.bf16.mxu0 0
        %1300 = vmatpush2.bf16.msra.mxu0 0
        %1301 = vmatprep.subr.bf16.mxu0 0
        %1302 = vmatpush2.bf16.msra.mxu0 0
        %1303 = vmatprep.subr.bf16.mxu0 0
        %1304 = vmatpush2.bf16.msra.mxu0 0
        %1305 = vmatprep.subr.bf16.mxu0 0
        %1306 = vmatpush2.bf16.msra.mxu0 0
        %1307 = vmatprep.subr.bf16.mxu0 0
        %1308 = vmatpush2.bf16.msra.mxu0 0
        %1309 = vmatprep.subr.bf16.mxu0 0
        %1310 = vmatpush2.bf16.msra.mxu0 0
        %1311 = vmatprep.mubr.bf16.mxu0 0
        %1312 = vmatmul.mubr.bf16.gmra.mxu0 %v1274
        %v1313 = vpop.f32.mrf.mxu0
        %v1314 = vadd.f32 0.0, %v1313
        %v1315 = vpop.f32.mrf.mxu0
        %v1316 = vpop.f32.mrf.mxu0
        %v1317 = vpop.f32.mrf.mxu0
        %1318 = vdwg.mxu0
        %1320 = vrot.lane.b32.xlu0 %v1092, 32
        %v1321 = vpop.permute.xlu0 %1320
        %1324 = vrot.lane.b32.xlu0 %v1203, 64
        %v1325 = vpop.permute.xlu0 %1324
        %1328 = vrot.lane.b32.xlu0 %v1314, 96
        %v1329 = vpop.permute.xlu0 %1328
        %v1331 = vsel %vm825, %v978, %v1321
        %v1332 = vsel %vm831, %v1331, %v1325
        %v1333 = vsel %vm837, %v1332, %v1329
        %v1334 = vpack.c.bf16 %v1333, %v1333
        %v1335 = vld [vmem:[%s7] sm:$0xf]
        %v1336 = vld [vmem:[%s7 + $0x4] sm:$0xf]
        %v1337 = vld [vmem:[%s7 + $0x8] sm:$0xf]
        %v1338 = vld [vmem:[%s7 + $0xc] sm:$0xf]
        %v1339 = vld [vmem:[%s7 + $0x10] sm:$0xf]
        %v1340 = vld [vmem:[%s7 + $0x14] sm:$0xf]
        %v1341 = vld [vmem:[%s7 + $0x18] sm:$0xf]
        %v1342 = vld [vmem:[%s7 + $0x1c] sm:$0xf]
        %v1343 = vld [vmem:[%s7 + $0x20] sm:$0xf]
        %v1344 = vld [vmem:[%s7 + $0x24] sm:$0xf]
        %v1345 = vld [vmem:[%s7 + $0x28] sm:$0xf]
        %v1346 = vld [vmem:[%s7 + $0x2c] sm:$0xf]
        %v1347 = vld [vmem:[%s7 + $0x30] sm:$0xf]
        %v1348 = vld [vmem:[%s7 + $0x34] sm:$0xf]
        %v1349 = vld [vmem:[%s7 + $0x38] sm:$0xf]
        %v1350 = vld [vmem:[%s7 + $0x3c] sm:$0xf]
        %v1351 = vld [vmem:[%s8] sm:$0x1]
        %v1353 = vlaneseq
        %v1354 = vshrl.u32 %v1353, 7
        %v1355 = vsub.s32 0, %v1354
        %v1356 = vrot.slane %v1351, %v1355
        %v1374 = vunpack.c.l.b16 %v1335
        %v1375 = vunpack.c.l.b16 %v1336
        %v1376 = vunpack.c.l.b16 %v1337
        %v1377 = vunpack.c.l.b16 %v1338
        %v1378 = vunpack.c.l.b16 %v1339
        %v1379 = vunpack.c.l.b16 %v1340
        %v1380 = vunpack.c.l.b16 %v1341
        %v1381 = vunpack.c.l.b16 %v1342
        %v1382 = vunpack.c.l.b16 %v1343
        %v1383 = vunpack.c.l.b16 %v1344
        %v1384 = vunpack.c.l.b16 %v1345
        %v1385 = vunpack.c.l.b16 %v1346
        %v1386 = vunpack.c.l.b16 %v1347
        %v1387 = vunpack.c.l.b16 %v1348
        %v1388 = vunpack.c.l.b16 %v1349
        %v1389 = vunpack.c.l.b16 %v1350
        %v1390 = vpack.c.b16 %v1375, %v1374
        %v1391 = vpack.c.b16 %v1377, %v1376
        %v1392 = vpack.c.b16 %v1379, %v1378
        %v1393 = vpack.c.b16 %v1381, %v1380
        %v1394 = vpack.c.b16 %v1383, %v1382
        %v1395 = vpack.c.b16 %v1385, %v1384
        %v1396 = vpack.c.b16 %v1387, %v1386
        %v1397 = vpack.c.b16 %v1389, %v1388
        %1406 = vmatprep.subr.bf16.mxu0 0
        %1407 = vmatpush1.bf16.msra.mxu0 %v1397
        %1408 = vmatprep.subr.bf16.mxu0 0
        %1409 = vmatpush1.bf16.msra.mxu0 %v1396
        %1410 = vmatprep.subr.bf16.mxu0 0
        %1411 = vmatpush1.bf16.msra.mxu0 %v1395
        %1412 = vmatprep.subr.bf16.mxu0 0
        %1413 = vmatpush1.bf16.msra.mxu0 %v1394
        %1414 = vmatprep.subr.bf16.mxu0 0
        %1415 = vmatpush1.bf16.msra.mxu0 %v1393
        %1416 = vmatprep.subr.bf16.mxu0 0
        %1417 = vmatpush1.bf16.msra.mxu0 %v1392
        %1418 = vmatprep.subr.bf16.mxu0 0
        %1419 = vmatpush1.bf16.msra.mxu0 %v1391
        %1420 = vmatprep.subr.bf16.mxu0 0
        %1421 = vmatpush1.bf16.msra.mxu0 %v1390
        %1422 = vmatprep.subr.bf16.mxu0 0
        %1423 = vmatpush2.bf16.msra.mxu0 0
        %1424 = vmatprep.subr.bf16.mxu0 0
        %1425 = vmatpush2.bf16.msra.mxu0 0
        %1426 = vmatprep.subr.bf16.mxu0 0
        %1427 = vmatpush2.bf16.msra.mxu0 0
        %1428 = vmatprep.subr.bf16.mxu0 0
        %1429 = vmatpush2.bf16.msra.mxu0 0
        %1430 = vmatprep.subr.bf16.mxu0 0
        %1431 = vmatpush2.bf16.msra.mxu0 0
        %1432 = vmatprep.subr.bf16.mxu0 0
        %1433 = vmatpush2.bf16.msra.mxu0 0
        %1434 = vmatprep.subr.bf16.mxu0 0
        %1435 = vmatpush2.bf16.msra.mxu0 0
        %1436 = vmatprep.subr.bf16.mxu0 0
        %1437 = vmatpush2.bf16.msra.mxu0 0
        %1438 = vmatprep.mubr.bf16.mxu0 0
        %1439 = vmatmul.mubr.bf16.gmra.mxu0 %v1334
        %v1440 = vpop.f32.mrf.mxu0
        %v1441 = vadd.f32 %v1356, %v1440
        %v1442 = vpop.f32.mrf.mxu0
        %v1443 = vpop.f32.mrf.mxu0
        %v1444 = vpop.f32.mrf.mxu0
        %1445 = vdwg.mxu0
        %v1446 = vmul.f32 %v549, 2.0
        %v1447 = vadd.f32 %v1446, %v1441
        %v1448 = vld [vmem:[%s9] sm:$0x1]
        %v1449 = vld [vmem:[%s10] sm:$0x1]
        %1450 = vadd.xlane.f32.xlu0 %v1447
        %v1451 = vpop.xlane.xlu0 %1450
        %v1452 = vmul.f32 %v1451, %v526
        %v1453 = vsub.f32 %v1447, %v1452
        %v1454 = vmul.f32 %v1453, %v1453
        %1455 = vadd.xlane.f32.xlu0 %v1454
        %v1456 = vpop.xlane.xlu0 %1455
        %v1457 = vmul.f32 %v1456, %v526
        %v1458 = vadd.f32 %v1457, 1e-05
        %v1459 = vrsqrt.pop %v1458
        %v1460 = vmul.f32 %v1453, %v1459
        %v1462 = vlaneseq
        %v1463 = vshrl.u32 %v1462, 7
        %v1464 = vsub.s32 0, %v1463
        %v1465 = vrot.slane %v1448, %v1464
        %v1467 = vmul.f32 %v1460, %v1465
        %v1469 = vlaneseq
        %v1470 = vshrl.u32 %v1469, 7
        %v1471 = vsub.s32 0, %v1470
        %v1472 = vrot.slane %v1449, %v1471
        %v1474 = vadd.f32 %v1467, %v1472
        %v1475 = vpack.c.bf16 %v1474, %v1474
        %v1476 = vld [vmem:[%s11] sm:$0xff]
        %v1477 = vld [vmem:[%s11 + $0x8] sm:$0xff]
        %v1478 = vld [vmem:[%s11 + $0x10] sm:$0xff]
        %v1479 = vld [vmem:[%s11 + $0x18] sm:$0xff]
        %v1480 = vld [vmem:[%s11 + $0x20] sm:$0xff]
        %v1481 = vld [vmem:[%s11 + $0x28] sm:$0xff]
        %v1482 = vld [vmem:[%s11 + $0x30] sm:$0xff]
        %v1483 = vld [vmem:[%s11 + $0x38] sm:$0xff]
        %v1484 = vld [vmem:[%s11 + $0x40] sm:$0xff]
        %v1485 = vld [vmem:[%s11 + $0x48] sm:$0xff]
        %v1486 = vld [vmem:[%s11 + $0x50] sm:$0xff]
        %v1487 = vld [vmem:[%s11 + $0x58] sm:$0xff]
        %v1488 = vld [vmem:[%s11 + $0x60] sm:$0xff]
        %v1489 = vld [vmem:[%s11 + $0x68] sm:$0xff]
        %v1490 = vld [vmem:[%s11 + $0x70] sm:$0xff]
        %v1491 = vld [vmem:[%s11 + $0x78] sm:$0xff]
        %v1492 = vld [vmem:[%s11 + $0x80] sm:$0xff]
        %v1493 = vld [vmem:[%s11 + $0x88] sm:$0xff]
        %v1494 = vld [vmem:[%s11 + $0x90] sm:$0xff]
        %v1495 = vld [vmem:[%s11 + $0x98] sm:$0xff]
        %v1496 = vld [vmem:[%s11 + $0xa0] sm:$0xff]
        %v1497 = vld [vmem:[%s11 + $0xa8] sm:$0xff]
        %v1498 = vld [vmem:[%s11 + $0xb0] sm:$0xff]
        %v1499 = vld [vmem:[%s11 + $0xb8] sm:$0xff]
        %v1500 = vld [vmem:[%s11 + $0xc0] sm:$0xff]
        %v1501 = vld [vmem:[%s11 + $0xc8] sm:$0xff]
        %v1502 = vld [vmem:[%s11 + $0xd0] sm:$0xff]
        %v1503 = vld [vmem:[%s11 + $0xd8] sm:$0xff]
        %v1504 = vld [vmem:[%s11 + $0xe0] sm:$0xff]
        %v1505 = vld [vmem:[%s11 + $0xe8] sm:$0xff]
        %v1506 = vld [vmem:[%s11 + $0xf0] sm:$0xff]
        %v1507 = vld [vmem:[%s11 + $0xf8] sm:$0xff]
        %v1508 = vld [vmem:[%s12] sm:$0xf]
        %v1510 = vlaneseq
        %v1511 = vshrl.u32 %v1510, 7
        %v1512 = vsub.s32 0, %v1511
        %v1513 = vrot.slane %v1508, %v1512
        %v1514 = vlaneseq
        %v1515 = vshrl.u32 %v1514, 7
        %v1516 = vsub.s32 1, %v1515
        %v1517 = vrot.slane %v1508, %v1516
        %v1518 = vlaneseq
        %v1519 = vshrl.u32 %v1518, 7
        %v1520 = vsub.s32 2, %v1519
        %v1521 = vrot.slane %v1508, %v1520
        %v1522 = vlaneseq
        %v1523 = vshrl.u32 %v1522, 7
        %v1524 = vsub.s32 3, %v1523
        %v1525 = vrot.slane %v1508, %v1524
        %v1562 = vunpack.c.l.b16 %v1476
        %v1563 = vunpack.c.h.b16 %v1476
        %v1564 = vunpack.c.l.b16 %v1477
        %v1565 = vunpack.c.h.b16 %v1477
        %v1566 = vunpack.c.l.b16 %v1478
        %v1567 = vunpack.c.h.b16 %v1478
        %v1568 = vunpack.c.l.b16 %v1479
        %v1569 = vunpack.c.h.b16 %v1479
        %v1570 = vunpack.c.l.b16 %v1480
        %v1571 = vunpack.c.h.b16 %v1480
        %v1572 = vunpack.c.l.b16 %v1481
        %v1573 = vunpack.c.h.b16 %v1481
        %v1574 = vunpack.c.l.b16 %v1482
        %v1575 = vunpack.c.h.b16 %v1482
        %v1576 = vunpack.c.l.b16 %v1483
        %v1577 = vunpack.c.h.b16 %v1483
        %v1578 = vunpack.c.l.b16 %v1484
        %v1579 = vunpack.c.h.b16 %v1484
        %v1580 = vunpack.c.l.b16 %v1485
        %v1581 = vunpack.c.h.b16 %v1485
        %v1582 = vunpack.c.l.b16 %v1486
        %v1583 = vunpack.c.h.b16 %v1486
        %v1584 = vunpack.c.l.b16 %v1487
        %v1585 = vunpack.c.h.b16 %v1487
        %v1586 = vunpack.c.l.b16 %v1488
        %v1587 = vunpack.c.h.b16 %v1488
        %v1588 = vunpack.c.l.b16 %v1489
        %v1589 = vunpack.c.h.b16 %v1489
        %v1590 = vunpack.c.l.b16 %v1490
        %v1591 = vunpack.c.h.b16 %v1490
        %v1592 = vunpack.c.l.b16 %v1491
        %v1593 = vunpack.c.h.b16 %v1491
        %v1594 = vunpack.c.l.b16 %v1492
        %v1595 = vunpack.c.h.b16 %v1492
        %v1596 = vunpack.c.l.b16 %v1493
        %v1597 = vunpack.c.h.b16 %v1493
        %v1598 = vunpack.c.l.b16 %v1494
        %v1599 = vunpack.c.h.b16 %v1494
        %v1600 = vunpack.c.l.b16 %v1495
        %v1601 = vunpack.c.h.b16 %v1495
        %v1602 = vunpack.c.l.b16 %v1496
        %v1603 = vunpack.c.h.b16 %v1496
        %v1604 = vunpack.c.l.b16 %v1497
        %v1605 = vunpack.c.h.b16 %v1497
        %v1606 = vunpack.c.l.b16 %v1498
        %v1607 = vunpack.c.h.b16 %v1498
        %v1608 = vunpack.c.l.b16 %v1499
        %v1609 = vunpack.c.h.b16 %v1499
        %v1610 = vunpack.c.l.b16 %v1500
        %v1611 = vunpack.c.h.b16 %v1500
        %v1612 = vunpack.c.l.b16 %v1501
        %v1613 = vunpack.c.h.b16 %v1501
        %v1614 = vunpack.c.l.b16 %v1502
        %v1615 = vunpack.c.h.b16 %v1502
        %v1616 = vunpack.c.l.b16 %v1503
        %v1617 = vunpack.c.h.b16 %v1503
        %v1618 = vunpack.c.l.b16 %v1504
        %v1619 = vunpack.c.h.b16 %v1504
        %v1620 = vunpack.c.l.b16 %v1505
        %v1621 = vunpack.c.h.b16 %v1505
        %v1622 = vunpack.c.l.b16 %v1506
        %v1623 = vunpack.c.h.b16 %v1506
        %v1624 = vunpack.c.l.b16 %v1507
        %v1625 = vunpack.c.h.b16 %v1507
        %v1626 = vpack.c.b16 %v1566, %v1562
        %v1627 = vpack.c.b16 %v1567, %v1563
        %v1628 = vpack.c.b16 %v1568, %v1564
        %v1629 = vpack.c.b16 %v1569, %v1565
        %v1630 = vpack.c.b16 %v1574, %v1570
        %v1631 = vpack.c.b16 %v1575, %v1571
        %v1632 = vpack.c.b16 %v1576, %v1572
        %v1633 = vpack.c.b16 %v1577, %v1573
        %v1634 = vpack.c.b16 %v1582, %v1578
        %v1635 = vpack.c.b16 %v1583, %v1579
        %v1636 = vpack.c.b16 %v1584, %v1580
        %v1637 = vpack.c.b16 %v1585, %v1581
        %v1638 = vpack.c.b16 %v1590, %v1586
        %v1639 = vpack.c.b16 %v1591, %v1587
        %v1640 = vpack.c.b16 %v1592, %v1588
        %v1641 = vpack.c.b16 %v1593, %v1589
        %v1642 = vpack.c.b16 %v1598, %v1594
        %v1643 = vpack.c.b16 %v1599, %v1595
        %v1644 = vpack.c.b16 %v1600, %v1596
        %v1645 = vpack.c.b16 %v1601, %v1597
        %v1646 = vpack.c.b16 %v1606, %v1602
        %v1647 = vpack.c.b16 %v1607, %v1603
        %v1648 = vpack.c.b16 %v1608, %v1604
        %v1649 = vpack.c.b16 %v1609, %v1605
        %v1650 = vpack.c.b16 %v1614, %v1610
        %v1651 = vpack.c.b16 %v1615, %v1611
        %v1652 = vpack.c.b16 %v1616, %v1612
        %v1653 = vpack.c.b16 %v1617, %v1613
        %v1654 = vpack.c.b16 %v1622, %v1618
        %v1655 = vpack.c.b16 %v1623, %v1619
        %v1656 = vpack.c.b16 %v1624, %v1620
        %v1657 = vpack.c.b16 %v1625, %v1621
        %1690 = vmatprep.subr.bf16.mxu0 %v1655
        %1691 = vmatpush1.bf16.msra.mxu0 %v1654
        %1692 = vmatprep.subr.bf16.mxu0 %v1651
        %1693 = vmatpush1.bf16.msra.mxu0 %v1650
        %1694 = vmatprep.subr.bf16.mxu0 %v1647
        %1695 = vmatpush1.bf16.msra.mxu0 %v1646
        %1696 = vmatprep.subr.bf16.mxu0 %v1643
        %1697 = vmatpush1.bf16.msra.mxu0 %v1642
        %1698 = vmatprep.subr.bf16.mxu0 %v1639
        %1699 = vmatpush1.bf16.msra.mxu0 %v1638
        %1700 = vmatprep.subr.bf16.mxu0 %v1635
        %1701 = vmatpush1.bf16.msra.mxu0 %v1634
        %1702 = vmatprep.subr.bf16.mxu0 %v1631
        %1703 = vmatpush1.bf16.msra.mxu0 %v1630
        %1704 = vmatprep.subr.bf16.mxu0 %v1627
        %1705 = vmatpush1.bf16.msra.mxu0 %v1626
        %1706 = vmatprep.subr.bf16.mxu0 0
        %1707 = vmatpush2.bf16.msra.mxu0 0
        %1708 = vmatprep.subr.bf16.mxu0 0
        %1709 = vmatpush2.bf16.msra.mxu0 0
        %1710 = vmatprep.subr.bf16.mxu0 0
        %1711 = vmatpush2.bf16.msra.mxu0 0
        %1712 = vmatprep.subr.bf16.mxu0 0
        %1713 = vmatpush2.bf16.msra.mxu0 0
        %1714 = vmatprep.subr.bf16.mxu0 0
        %1715 = vmatpush2.bf16.msra.mxu0 0
        %1716 = vmatprep.subr.bf16.mxu0 0
        %1717 = vmatpush2.bf16.msra.mxu0 0
        %1718 = vmatprep.subr.bf16.mxu0 0
        %1719 = vmatpush2.bf16.msra.mxu0 0
        %1720 = vmatprep.subr.bf16.mxu0 0
        %1721 = vmatpush2.bf16.msra.mxu0 0
        %1722 = vmatprep.mubr.bf16.mxu0 0
        %1723 = vmatmul.mubr.bf16.gmra.mxu0 %v1475
        %v1724 = vpop.f32.mrf.mxu0
        %v1725 = vadd.f32 %v1513, %v1724
        %v1726 = vpop.f32.mrf.mxu0
        %v1727 = vadd.f32 %v1517, %v1726
        %v1728 = vpop.f32.mrf.mxu0
        %v1729 = vpop.f32.mrf.mxu0
        %1730 = vdwg.mxu0
        %1731 = vmatprep.subr.bf16.mxu0 %v1657
        %1732 = vmatpush1.bf16.msra.mxu0 %v1656
        %1733 = vmatprep.subr.bf16.mxu0 %v1653
        %1734 = vmatpush1.bf16.msra.mxu0 %v1652
        %1735 = vmatprep.subr.bf16.mxu0 %v1649
        %1736 = vmatpush1.bf16.msra.mxu0 %v1648
        %1737 = vmatprep.subr.bf16.mxu0 %v1645
        %1738 = vmatpush1.bf16.msra.mxu0 %v1644
        %1739 = vmatprep.subr.bf16.mxu0 %v1641
        %1740 = vmatpush1.bf16.msra.mxu0 %v1640
        %1741 = vmatprep.subr.bf16.mxu0 %v1637
        %1742 = vmatpush1.bf16.msra.mxu0 %v1636
        %1743 = vmatprep.subr.bf16.mxu0 %v1633
        %1744 = vmatpush1.bf16.msra.mxu0 %v1632
        %1745 = vmatprep.subr.bf16.mxu0 %v1629
        %1746 = vmatpush1.bf16.msra.mxu0 %v1628
        %1747 = vmatprep.subr.bf16.mxu0 0
        %1748 = vmatpush2.bf16.msra.mxu0 0
        %1749 = vmatprep.subr.bf16.mxu0 0
        %1750 = vmatpush2.bf16.msra.mxu0 0
        %1751 = vmatprep.subr.bf16.mxu0 0
        %1752 = vmatpush2.bf16.msra.mxu0 0
        %1753 = vmatprep.subr.bf16.mxu0 0
        %1754 = vmatpush2.bf16.msra.mxu0 0
        %1755 = vmatprep.subr.bf16.mxu0 0
        %1756 = vmatpush2.bf16.msra.mxu0 0
        %1757 = vmatprep.subr.bf16.mxu0 0
        %1758 = vmatpush2.bf16.msra.mxu0 0
        %1759 = vmatprep.subr.bf16.mxu0 0
        %1760 = vmatpush2.bf16.msra.mxu0 0
        %1761 = vmatprep.subr.bf16.mxu0 0
        %1762 = vmatpush2.bf16.msra.mxu0 0
        %1763 = vmatprep.mubr.bf16.mxu0 0
        %1764 = vmatmul.mubr.bf16.gmra.mxu0 %v1475
        %v1765 = vpop.f32.mrf.mxu0
        %v1766 = vadd.f32 %v1521, %v1765
        %v1767 = vpop.f32.mrf.mxu0
        %v1768 = vadd.f32 %v1525, %v1767
        %v1769 = vpop.f32.mrf.mxu0
        %v1770 = vpop.f32.mrf.mxu0
        %1771 = vdwg.mxu0
        %v1772 = vmul.f32 %v1725, 0.5
        %v1773 = vmul.f32 %v1727, 0.5
        %v1774 = vmul.f32 %v1766, 0.5
        %v1775 = vmul.f32 %v1768, 0.5
        %v1776 = vmul.f32 %v1725, 0.7978846
        %v1777 = vmul.f32 %v1727, 0.7978846
        %v1778 = vmul.f32 %v1766, 0.7978846
        %v1779 = vmul.f32 %v1768, 0.7978846
        %v1780 = vmul.f32 %v1725, 0.044715
        %v1781 = vmul.f32 %v1727, 0.044715
        %v1782 = vmul.f32 %v1766, 0.044715
        %v1783 = vmul.f32 %v1768, 0.044715
        %v1784 = vmul.f32 %v1780, %v1725
        %v1785 = vmul.f32 %v1781, %v1727
        %v1786 = vmul.f32 %v1782, %v1766
        %v1787 = vmul.f32 %v1783, %v1768
        %v1788 = vadd.f32 %v1784, 1.0
        %v1789 = vadd.f32 %v1785, 1.0
        %v1790 = vadd.f32 %v1786, 1.0
        %v1791 = vadd.f32 %v1787, 1.0
        %v1792 = vmul.f32 %v1776, %v1788
        %v1793 = vmul.f32 %v1777, %v1789
        %v1794 = vmul.f32 %v1778, %v1790
        %v1795 = vmul.f32 %v1779, %v1791
        %v1796 = vtanh.pop %v1792
        %v1797 = vtanh.pop %v1793
        %v1798 = vtanh.pop %v1794
        %v1799 = vtanh.pop %v1795
        %v1800 = vadd.f32 %v1796, 1.0
        %v1801 = vadd.f32 %v1797, 1.0
        %v1802 = vadd.f32 %v1798, 1.0
        %v1803 = vadd.f32 %v1799, 1.0
        %v1804 = vmul.f32 %v1772, %v1800
        %v1805 = vmul.f32 %v1773, %v1801
        %v1806 = vmul.f32 %v1774, %v1802
        %v1807 = vmul.f32 %v1775, %v1803
        %v1808 = vpack.c.bf16 %v1804, %v1804
        %v1809 = vpack.c.bf16 %v1805, %v1805
        %v1810 = vpack.c.bf16 %v1806, %v1806
        %v1811 = vpack.c.bf16 %v1807, %v1807
        %v1812 = vld [vmem:[#allocation4] sm:$0xf]
        %v1813 = vld [vmem:[#allocation4 + $0x4] sm:$0xf]
        %v1814 = vld [vmem:[#allocation4 + $0x8] sm:$0xf]
        %v1815 = vld [vmem:[#allocation4 + $0xc] sm:$0xf]
        %v1816 = vld [vmem:[#allocation4 + $0x10] sm:$0xf]
        %v1817 = vld [vmem:[#allocation4 + $0x14] sm:$0xf]
        %v1818 = vld [vmem:[#allocation4 + $0x18] sm:$0xf]
        %v1819 = vld [vmem:[#allocation4 + $0x1c] sm:$0xf]
        %v1820 = vld [vmem:[#allocation4 + $0x20] sm:$0xf]
        %v1821 = vld [vmem:[#allocation4 + $0x24] sm:$0xf]
        %v1822 = vld [vmem:[#allocation4 + $0x28] sm:$0xf]
        %v1823 = vld [vmem:[#allocation4 + $0x2c] sm:$0xf]
        %v1824 = vld [vmem:[#allocation4 + $0x30] sm:$0xf]
        %v1825 = vld [vmem:[#allocation4 + $0x34] sm:$0xf]
        %v1826 = vld [vmem:[#allocation4 + $0x38] sm:$0xf]
        %v1827 = vld [vmem:[#allocation4 + $0x3c] sm:$0xf]
        %v1828 = vld [vmem:[#allocation4 + $0x40] sm:$0xf]
        %v1829 = vld [vmem:[#allocation4 + $0x44] sm:$0xf]
        %v1830 = vld [vmem:[#allocation4 + $0x48] sm:$0xf]
        %v1831 = vld [vmem:[#allocation4 + $0x4c] sm:$0xf]
        %v1832 = vld [vmem:[#allocation4 + $0x50] sm:$0xf]
        %v1833 = vld [vmem:[#allocation4 + $0x54] sm:$0xf]
        %v1834 = vld [vmem:[#allocation4 + $0x58] sm:$0xf]
        %v1835 = vld [vmem:[#allocation4 + $0x5c] sm:$0xf]
        %v1836 = vld [vmem:[#allocation4 + $0x60] sm:$0xf]
        %v1837 = vld [vmem:[#allocation4 + $0x64] sm:$0xf]
        %v1838 = vld [vmem:[#allocation4 + $0x68] sm:$0xf]
        %v1839 = vld [vmem:[#allocation4 + $0x6c] sm:$0xf]
        %v1840 = vld [vmem:[#allocation4 + $0x70] sm:$0xf]
        %v1841 = vld [vmem:[#allocation4 + $0x74] sm:$0xf]
        %v1842 = vld [vmem:[#allocation4 + $0x78] sm:$0xf]
        %v1843 = vld [vmem:[#allocation4 + $0x7c] sm:$0xf]
        %v1844 = vld [vmem:[#allocation4 + $0x80] sm:$0xf]
        %v1845 = vld [vmem:[#allocation4 + $0x84] sm:$0xf]
        %v1846 = vld [vmem:[#allocation4 + $0x88] sm:$0xf]
        %v1847 = vld [vmem:[#allocation4 + $0x8c] sm:$0xf]
        %v1848 = vld [vmem:[#allocation4 + $0x90] sm:$0xf]
        %v1849 = vld [vmem:[#allocation4 + $0x94] sm:$0xf]
        %v1850 = vld [vmem:[#allocation4 + $0x98] sm:$0xf]
        %v1851 = vld [vmem:[#allocation4 + $0x9c] sm:$0xf]
        %v1852 = vld [vmem:[#allocation4 + $0xa0] sm:$0xf]
        %v1853 = vld [vmem:[#allocation4 + $0xa4] sm:$0xf]
        %v1854 = vld [vmem:[#allocation4 + $0xa8] sm:$0xf]
        %v1855 = vld [vmem:[#allocation4 + $0xac] sm:$0xf]
        %v1856 = vld [vmem:[#allocation4 + $0xb0] sm:$0xf]
        %v1857 = vld [vmem:[#allocation4 + $0xb4] sm:$0xf]
        %v1858 = vld [vmem:[#allocation4 + $0xb8] sm:$0xf]
        %v1859 = vld [vmem:[#allocation4 + $0xbc] sm:$0xf]
        %v1860 = vld [vmem:[#allocation4 + $0xc0] sm:$0xf]
        %v1861 = vld [vmem:[#allocation4 + $0xc4] sm:$0xf]
        %v1862 = vld [vmem:[#allocation4 + $0xc8] sm:$0xf]
        %v1863 = vld [vmem:[#allocation4 + $0xcc] sm:$0xf]
        %v1864 = vld [vmem:[#allocation4 + $0xd0] sm:$0xf]
        %v1865 = vld [vmem:[#allocation4 + $0xd4] sm:$0xf]
        %v1866 = vld [vmem:[#allocation4 + $0xd8] sm:$0xf]
        %v1867 = vld [vmem:[#allocation4 + $0xdc] sm:$0xf]
        %v1868 = vld [vmem:[#allocation4 + $0xe0] sm:$0xf]
        %v1869 = vld [vmem:[#allocation4 + $0xe4] sm:$0xf]
        %v1870 = vld [vmem:[#allocation4 + $0xe8] sm:$0xf]
        %v1871 = vld [vmem:[#allocation4 + $0xec] sm:$0xf]
        %v1872 = vld [vmem:[#allocation4 + $0xf0] sm:$0xf]
        %v1873 = vld [vmem:[#allocation4 + $0xf4] sm:$0xf]
        %v1874 = vld [vmem:[#allocation4 + $0xf8] sm:$0xf]
        %v1875 = vld [vmem:[#allocation4 + $0xfc] sm:$0xf]
        %v1876 = vld [vmem:[%s14] sm:$0x1]
        %v1878 = vlaneseq
        %v1879 = vshrl.u32 %v1878, 7
        %v1880 = vsub.s32 0, %v1879
        %v1881 = vrot.slane %v1876, %v1880
        %v1947 = vunpack.c.l.b16 %v1812
        %v1948 = vunpack.c.l.b16 %v1813
        %v1949 = vunpack.c.l.b16 %v1814
        %v1950 = vunpack.c.l.b16 %v1815
        %v1951 = vunpack.c.l.b16 %v1816
        %v1952 = vunpack.c.l.b16 %v1817
        %v1953 = vunpack.c.l.b16 %v1818
        %v1954 = vunpack.c.l.b16 %v1819
        %v1955 = vunpack.c.l.b16 %v1820
        %v1956 = vunpack.c.l.b16 %v1821
        %v1957 = vunpack.c.l.b16 %v1822
        %v1958 = vunpack.c.l.b16 %v1823
        %v1959 = vunpack.c.l.b16 %v1824
        %v1960 = vunpack.c.l.b16 %v1825
        %v1961 = vunpack.c.l.b16 %v1826
        %v1962 = vunpack.c.l.b16 %v1827
        %v1963 = vunpack.c.l.b16 %v1828
        %v1964 = vunpack.c.l.b16 %v1829
        %v1965 = vunpack.c.l.b16 %v1830
        %v1966 = vunpack.c.l.b16 %v1831
        %v1967 = vunpack.c.l.b16 %v1832
        %v1968 = vunpack.c.l.b16 %v1833
        %v1969 = vunpack.c.l.b16 %v1834
        %v1970 = vunpack.c.l.b16 %v1835
        %v1971 = vunpack.c.l.b16 %v1836
        %v1972 = vunpack.c.l.b16 %v1837
        %v1973 = vunpack.c.l.b16 %v1838
        %v1974 = vunpack.c.l.b16 %v1839
        %v1975 = vunpack.c.l.b16 %v1840
        %v1976 = vunpack.c.l.b16 %v1841
        %v1977 = vunpack.c.l.b16 %v1842
        %v1978 = vunpack.c.l.b16 %v1843
        %v1979 = vunpack.c.l.b16 %v1844
        %v1980 = vunpack.c.l.b16 %v1845
        %v1981 = vunpack.c.l.b16 %v1846
        %v1982 = vunpack.c.l.b16 %v1847
        %v1983 = vunpack.c.l.b16 %v1848
        %v1984 = vunpack.c.l.b16 %v1849
        %v1985 = vunpack.c.l.b16 %v1850
        %v1986 = vunpack.c.l.b16 %v1851
        %v1987 = vunpack.c.l.b16 %v1852
        %v1988 = vunpack.c.l.b16 %v1853
        %v1989 = vunpack.c.l.b16 %v1854
        %v1990 = vunpack.c.l.b16 %v1855
        %v1991 = vunpack.c.l.b16 %v1856
        %v1992 = vunpack.c.l.b16 %v1857
        %v1993 = vunpack.c.l.b16 %v1858
        %v1994 = vunpack.c.l.b16 %v1859
        %v1995 = vunpack.c.l.b16 %v1860
        %v1996 = vunpack.c.l.b16 %v1861
        %v1997 = vunpack.c.l.b16 %v1862
        %v1998 = vunpack.c.l.b16 %v1863
        %v1999 = vunpack.c.l.b16 %v1864
        %v2000 = vunpack.c.l.b16 %v1865
        %v2001 = vunpack.c.l.b16 %v1866
        %v2002 = vunpack.c.l.b16 %v1867
        %v2003 = vunpack.c.l.b16 %v1868
        %v2004 = vunpack.c.l.b16 %v1869
        %v2005 = vunpack.c.l.b16 %v1870
        %v2006 = vunpack.c.l.b16 %v1871
        %v2007 = vunpack.c.l.b16 %v1872
        %v2008 = vunpack.c.l.b16 %v1873
        %v2009 = vunpack.c.l.b16 %v1874
        %v2010 = vunpack.c.l.b16 %v1875
        %v2011 = vpack.c.b16 %v1948, %v1947
        %v2012 = vpack.c.b16 %v1950, %v1949
        %v2013 = vpack.c.b16 %v1952, %v1951
        %v2014 = vpack.c.b16 %v1954, %v1953
        %v2015 = vpack.c.b16 %v1956, %v1955
        %v2016 = vpack.c.b16 %v1958, %v1957
        %v2017 = vpack.c.b16 %v1960, %v1959
        %v2018 = vpack.c.b16 %v1962, %v1961
        %v2019 = vpack.c.b16 %v1964, %v1963
        %v2020 = vpack.c.b16 %v1966, %v1965
        %v2021 = vpack.c.b16 %v1968, %v1967
        %v2022 = vpack.c.b16 %v1970, %v1969
        %v2023 = vpack.c.b16 %v1972, %v1971
        %v2024 = vpack.c.b16 %v1974, %v1973
        %v2025 = vpack.c.b16 %v1976, %v1975
        %v2026 = vpack.c.b16 %v1978, %v1977
        %v2027 = vpack.c.b16 %v1980, %v1979
        %v2028 = vpack.c.b16 %v1982, %v1981
        %v2029 = vpack.c.b16 %v1984, %v1983
        %v2030 = vpack.c.b16 %v1986, %v1985
        %v2031 = vpack.c.b16 %v1988, %v1987
        %v2032 = vpack.c.b16 %v1990, %v1989
        %v2033 = vpack.c.b16 %v1992, %v1991
        %v2034 = vpack.c.b16 %v1994, %v1993
        %v2035 = vpack.c.b16 %v1996, %v1995
        %v2036 = vpack.c.b16 %v1998, %v1997
        %v2037 = vpack.c.b16 %v2000, %v1999
        %v2038 = vpack.c.b16 %v2002, %v2001
        %v2039 = vpack.c.b16 %v2004, %v2003
        %v2040 = vpack.c.b16 %v2006, %v2005
        %v2041 = vpack.c.b16 %v2008, %v2007
        %v2042 = vpack.c.b16 %v2010, %v2009
        %2075 = vmatprep.subr.bf16.mxu0 0
        %2076 = vmatpush1.bf16.msra.mxu0 %v2018
        %2077 = vmatprep.subr.bf16.mxu0 0
        %2078 = vmatpush1.bf16.msra.mxu0 %v2017
        %2079 = vmatprep.subr.bf16.mxu0 0
        %2080 = vmatpush1.bf16.msra.mxu0 %v2016
        %2081 = vmatprep.subr.bf16.mxu0 0
        %2082 = vmatpush1.bf16.msra.mxu0 %v2015
        %2083 = vmatprep.subr.bf16.mxu0 0
        %2084 = vmatpush1.bf16.msra.mxu0 %v2014
        %2085 = vmatprep.subr.bf16.mxu0 0
        %2086 = vmatpush1.bf16.msra.mxu0 %v2013
        %2087 = vmatprep.subr.bf16.mxu0 0
        %2088 = vmatpush1.bf16.msra.mxu0 %v2012
        %2089 = vmatprep.subr.bf16.mxu0 0
        %2090 = vmatpush1.bf16.msra.mxu0 %v2011
        %2091 = vmatprep.subr.bf16.mxu0 0
        %2092 = vmatpush2.bf16.msra.mxu0 %v2026
        %2093 = vmatprep.subr.bf16.mxu0 0
        %2094 = vmatpush2.bf16.msra.mxu0 %v2025
        %2095 = vmatprep.subr.bf16.mxu0 0
        %2096 = vmatpush2.bf16.msra.mxu0 %v2024
        %2097 = vmatprep.subr.bf16.mxu0 0
        %2098 = vmatpush2.bf16.msra.mxu0 %v2023
        %2099 = vmatprep.subr.bf16.mxu0 0
        %2100 = vmatpush2.bf16.msra.mxu0 %v2022
        %2101 = vmatprep.subr.bf16.mxu0 0
        %2102 = vmatpush2.bf16.msra.mxu0 %v2021
        %2103 = vmatprep.subr.bf16.mxu0 0
        %2104 = vmatpush2.bf16.msra.mxu0 %v2020
        %2105 = vmatprep.subr.bf16.mxu0 0
        %2106 = vmatpush2.bf16.msra.mxu0 %v2019
        %2107 = vmatprep.mubr.bf16.mxu0 %v1809
        %2108 = vmatmul.mubr.bf16.gmra.mxu0 %v1808
        %v2109 = vpop.f32.mrf.mxu0
        %v2110 = vadd.f32 %v1881, %v2109
        %v2111 = vpop.f32.mrf.mxu0
        %v2112 = vpop.f32.mrf.mxu0
        %v2113 = vpop.f32.mrf.mxu0
        %2114 = vdwg.mxu0
        %2115 = vmatprep.subr.bf16.mxu0 0
        %2116 = vmatpush1.bf16.msra.mxu0 %v2034
        %2117 = vmatprep.subr.bf16.mxu0 0
        %2118 = vmatpush1.bf16.msra.mxu0 %v2033
        %2119 = vmatprep.subr.bf16.mxu0 0
        %2120 = vmatpush1.bf16.msra.mxu0 %v2032
        %2121 = vmatprep.subr.bf16.mxu0 0
        %2122 = vmatpush1.bf16.msra.mxu0 %v2031
        %2123 = vmatprep.subr.bf16.mxu0 0
        %2124 = vmatpush1.bf16.msra.mxu0 %v2030
        %2125 = vmatprep.subr.bf16.mxu0 0
        %2126 = vmatpush1.bf16.msra.mxu0 %v2029
        %2127 = vmatprep.subr.bf16.mxu0 0
        %2128 = vmatpush1.bf16.msra.mxu0 %v2028
        %2129 = vmatprep.subr.bf16.mxu0 0
        %2130 = vmatpush1.bf16.msra.mxu0 %v2027
        %2131 = vmatprep.subr.bf16.mxu0 0
        %2132 = vmatpush2.bf16.msra.mxu0 %v2042
        %2133 = vmatprep.subr.bf16.mxu0 0
        %2134 = vmatpush2.bf16.msra.mxu0 %v2041
        %2135 = vmatprep.subr.bf16.mxu0 0
        %2136 = vmatpush2.bf16.msra.mxu0 %v2040
        %2137 = vmatprep.subr.bf16.mxu0 0
        %2138 = vmatpush2.bf16.msra.mxu0 %v2039
        %2139 = vmatprep.subr.bf16.mxu0 0
        %2140 = vmatpush2.bf16.msra.mxu0 %v2038
        %2141 = vmatprep.subr.bf16.mxu0 0
        %2142 = vmatpush2.bf16.msra.mxu0 %v2037
        %2143 = vmatprep.subr.bf16.mxu0 0
        %2144 = vmatpush2.bf16.msra.mxu0 %v2036
        %2145 = vmatprep.subr.bf16.mxu0 0
        %2146 = vmatpush2.bf16.msra.mxu0 %v2035
        %2147 = vmatprep.mubr.bf16.mxu0 %v1811
        %2148 = vmatmul.mubr.bf16.gmra.mxu0 %v1810
        %v2149 = vpop.f32.mrf.mxu0
        %v2150 = vadd.f32 %v2110, %v2149
        %v2151 = vpop.f32.mrf.mxu0
        %v2152 = vpop.f32.mrf.mxu0
        %v2153 = vpop.f32.mrf.mxu0
        %2154 = vdwg.mxu0
        %v2155 = vmul.f32 %v1474, 2.0
        %v2156 = vadd.f32 %v2155, %v2150
        %2157 = vst [vmem:[%s519] sm:$0xff] %v2156
        %p2158 = scmp.lt.s32.totalorder %s28, 1
        %s2159 = scalar_select %p2158, %s28, 1
        %s2160 = smul.addr %s2159, 8
        %s2161 = scalar_lea.vmem %s15, %s2160
        // Predicated region
        $region89: #{xiaohua_forward.3} parent=79 // pred_check
          %p2162 = pneg %p366
        $region90: #{xiaohua_forward.3} parent=79 // pred_check_branch
          %2164 = sbr.rel (%p2162) target = $region92
        $region91: #{xiaohua_forward.3} parent=79 // pred_region
          _
        $region92: #{xiaohua_forward.3} parent=79 // pred_fallthru
          _
      $region80: #{xiaohua_forward.3} parent=5 // pred_fallthru
        _
      %p2165 = scmp.le.s32.totalorder 2, %s23
      // Predicated region
      $region93: #{xiaohua_forward.3} parent=5 // pred_check
        %p2166 = pneg %p2165
      $region94: #{xiaohua_forward.3} parent=5 // pred_check_branch
        %2168 = sbr.rel (%p2166) target = $region96
      $region95: #{xiaohua_forward.3} parent=5 // pred_region
        %s2169 = ssub.s32 %s23, 2
        // Predicated region
        $region97: #{xiaohua_forward.3} parent=95 // pred_check
          %p2170 = pneg %p372
        $region98: #{xiaohua_forward.3} parent=95 // pred_check_branch
          %2172 = sbr.rel (%p2170) target = $region100
        $region99: #{xiaohua_forward.3} parent=95 // pred_region
          %p2173 = scmp.lt.s32.totalorder %s29, 1
          %s2174 = scalar_select %p2173, %s29, 1
          %s2175 = smul.addr %s2174, 8
          %s2176 = scalar_lea.vmem %s15, %s2175
        $region100: #{xiaohua_forward.3} parent=95 // pred_fallthru
          _
      $region96: #{xiaohua_forward.3} parent=5 // pred_fallthru
        _
    $region6: #{xiaohua_forward.3} parent=1 // loop_footer
      %s27 = sadd.s32 1, %s23
    $region7: #{xiaohua_forward.3} parent=1 // loop_footer_branch
      %22 = sbr.rel target = $region3
    $region8: #{xiaohua_forward.3} parent=1 // loop_exit
      _
    %2177 = vsyncpa [#allocation3], 1
    %s2178 = scalar_lea.sflag [#allocation3], 1
    %2179 = vsyncpa %s2178, 1
    %2180 = vsyncpa [#allocation5], 1

</llo_original>
